<compile_context>
chip_gen: v5e
topology: v5e:2x2
jax: 0.10.0
libtpu: 0.0.40
codegen_flags: <defaults>
</compile_context>

<pallas_src>
import functools

import jax
import jax.numpy as jnp
from jax import lax
from jax.experimental import pallas as pl
from jax.experimental.pallas import tpu as pltpu

_EPS = 1e-5                      # torch BatchNorm2d default eps
_VMEM_LIMIT = 32 * 1024 * 1024   # safe on v5e / v6e / v7x


# ---------------------------------------------------------------------------
# Activation math (matches the torch `Activation` module exactly).
def _apply_activation(x, activation):
    if activation is None:
        return x
    if activation == "relu":
        return jnp.maximum(x, 0.0)
    if activation == "relu6":
        return jnp.clip(x, 0.0, 6.0)
    if activation == "swish":
        return x * jax.nn.sigmoid(x)
    if activation == "hswish":
        return x * jnp.clip(x + 3.0, 0.0, 6.0) * (1.0 / 6.0)
    if activation == "hard_sigmoid":
        # NOTE: this codebase's Hard_Sigmoid is 0.2*x + 0.5 clamped to [0, 1]
        # (NOT the relu6(x+3)/6 variant).
        return jnp.clip(0.2 * x + 0.5, 0.0, 1.0)
    raise NotImplementedError(activation)


# ---------------------------------------------------------------------------
# Pallas kernels
def _pw_conv_bn_act_kernel(x_ref, w_ref, b_ref, o_ref, *, activation):
    """Fused 1x1 conv (+ mask + BN, folded into w/b) + activation.

    x_ref: (1, Cin, L)   w_ref: (Cout, Cin)   b_ref: (Cout, 1)
    o_ref: (1, Cout, L)
    """
    x = x_ref[0].astype(jnp.float32)               # (Cin, L)
    w = w_ref[...].astype(jnp.float32)             # (Cout, Cin)
    y = jnp.dot(w, x, preferred_element_type=jnp.float32)   # (Cout, L) on MXU
    y = y + b_ref[...].astype(jnp.float32)         # per-channel bias (lane bcast)
    y = _apply_activation(y, activation)
    o_ref[0] = y.astype(o_ref.dtype)


def _dw_conv_bn_kernel(x_ref, w_ref, b_ref, o_ref, *, ksize, out_h, out_w):
    """Fused depthwise kxk conv (+ BN scale folded into weights) + bias.

    Computes the full stride-1 output; stride-2 subsampling happens outside.
    x_ref: (1, C, Hp, Wp)  w_ref: (k*k, C, 1, out_w)  b_ref: (C, 1, out_w)
    o_ref: (1, C, out_h, out_w)
    """
    x = x_ref[0].astype(jnp.float32)               # (C, Hp, Wp)
    acc = jnp.zeros(o_ref.shape[1:], jnp.float32)  # (C, out_h, out_w)
    for dh in range(ksize):
        for dw in range(ksize):
            tap = x[:, dh:dh + out_h, dw:dw + out_w]
            acc = acc + tap * w_ref[dh * ksize + dw].astype(jnp.float32)
    acc = acc + b_ref[...].astype(jnp.float32)
    o_ref[0] = acc.astype(o_ref.dtype)


# ---------------------------------------------------------------------------
# pallas_call wrappers
def _pointwise_call(x_bcl, w_eff, bias_col, act_name):
    """x_bcl: (B, Cin, L); w_eff: (Cout, Cin); bias_col: (Cout, 1)."""
    B, cin, L = x_bcl.shape
    cout = w_eff.shape[0]
    kern = functools.partial(_pw_conv_bn_act_kernel, activation=act_name)
    return pl.pallas_call(
        kern,
        out_shape=jax.ShapeDtypeStruct((B, cout, L), x_bcl.dtype),
        grid_spec=pltpu.PrefetchScalarGridSpec(
            num_scalar_prefetch=0,
            grid=(B,),
            in_specs=[
                pl.BlockSpec((1, cin, L), lambda b: (b, 0, 0)),
                pl.BlockSpec((cout, cin), lambda b: (0, 0)),
                pl.BlockSpec((cout, 1), lambda b: (0, 0)),
            ],
            out_specs=pl.BlockSpec((1, cout, L), lambda b: (b, 0, 0)),
        ),
        compiler_params=pltpu.CompilerParams(
            dimension_semantics=("parallel",),
            vmem_limit_bytes=_VMEM_LIMIT,
        ),
    )(x_bcl, w_eff.astype(x_bcl.dtype), bias_col.astype(x_bcl.dtype))


def _depthwise_call(x_nchw, wd_eff, bias_c, ksize):
    """x_nchw: (B, C, H, W); wd_eff: (k*k, C); bias_c: (C,).

    Returns the full stride-1 depthwise-conv output, (B, C, H, W).
    """
    B, C, H, W = x_nchw.shape
    pad = ksize // 2
    xp = jnp.pad(x_nchw, ((0, 0), (0, 0), (pad, pad), (pad, pad)))
    Hp, Wp = H + 2 * pad, W + 2 * pad
    # Pre-broadcast per-channel scalars along the lane (W) axis so the kernel
    # only needs a simple sublane broadcast (tiny arrays, done once).
    w_b = jnp.broadcast_to(
        wd_eff[:, :, None, None], (ksize * ksize, C, 1, W)).astype(x_nchw.dtype)
    b_b = jnp.broadcast_to(bias_c[:, None, None], (C, 1, W)).astype(x_nchw.dtype)

    kern = functools.partial(_dw_conv_bn_kernel, ksize=ksize, out_h=H, out_w=W)
    return pl.pallas_call(
        kern,
        out_shape=jax.ShapeDtypeStruct((B, C, H, W), x_nchw.dtype),
        grid_spec=pltpu.PrefetchScalarGridSpec(
            num_scalar_prefetch=0,
            grid=(B,),
            in_specs=[
                pl.BlockSpec((1, C, Hp, Wp), lambda b: (b, 0, 0, 0)),
                pl.BlockSpec((ksize * ksize, C, 1, W), lambda b: (0, 0, 0, 0)),
                pl.BlockSpec((C, 1, W), lambda b: (0, 0, 0)),
            ],
            out_specs=pl.BlockSpec((1, C, H, W), lambda b: (b, 0, 0, 0)),
        ),
        compiler_params=pltpu.CompilerParams(
            dimension_semantics=("parallel",),
            vmem_limit_bytes=_VMEM_LIMIT,
        ),
    )(xp, w_b, b_b)


# ---------------------------------------------------------------------------
# ShuffleNetCSBlock forward (Pallas path)
def _bn_fold(p, prefix):
    s = p[prefix + "_gamma"] * lax.rsqrt(p[prefix + "_var"] + _EPS)
    b = p[prefix + "_beta"] - p[prefix + "_mean"] * s
    return s, b


def _branch_main_pallas(x_main, channel_choice, p, *, mid, ksize, stride, act_name):
    B, cin, H, W = x_main.shape
    outputs = p["w3"].shape[0]

    # 1x1 conv -> ChannelSelector mask -> BN1 -> act   (all fused)
    s1, b1 = _bn_fold(p, "bn1")
    mask = channel_choice[0, :mid]                     # narrow(1, 0, mid)
    w1_eff = p["w1"] * (mask * s1)[:, None]            # (mid, cin)
    h = _pointwise_call(x_main.reshape(B, cin, H * W), w1_eff, b1[:, None], act_name)
    h = h.reshape(B, mid, H, W)

    # depthwise kxk conv (stride) -> BN2   (fused, no activation)
    s2, b2 = _bn_fold(p, "bn2")
    wd_eff = p["wd"] * s2[None, :]                     # (k*k, mid)
    h = _depthwise_call(h, wd_eff, b2, ksize)
    if stride == 2:
        h = h[:, :, ::2, ::2]
    Ho, Wo = h.shape[2], h.shape[3]

    # 1x1 conv -> BN3 -> act   (fused)
    s3, b3 = _bn_fold(p, "bn3")
    w3_eff = p["w3"] * s3[:, None]                     # (outputs, mid)
    h = _pointwise_call(h.reshape(B, mid, Ho * Wo), w3_eff, b3[:, None], act_name)
    return h.reshape(B, outputs, Ho, Wo)


def _branch_proj_pallas(x, p, *, ksize, act_name):
    B, C, H, W = x.shape
    sp1, bp1 = _bn_fold(p, "bnp1")
    wdp_eff = p["wdp"] * sp1[None, :]
    h = _depthwise_call(x, wdp_eff, bp1, ksize)
    h = h[:, :, ::2, ::2]                              # stride-2 depthwise
    Ho, Wo = h.shape[2], h.shape[3]
    sp2, bp2 = _bn_fold(p, "bnp2")
    wp_eff = p["wp"] * sp2[:, None]
    h = _pointwise_call(h.reshape(B, C, Ho * Wo), wp_eff, bp2[:, None], act_name)
    return h.reshape(B, C, Ho, Wo)


def shufflenet_cs_block(x, channel_choice, params, *, inp, oup, mid, ksize,
                        stride, act_name="relu", block_mode="ShuffleNetV2"):
    """JAX/Pallas equivalent of ShuffleNetCSBlock(...).forward(x, channel_choice)."""
    assert block_mode == "ShuffleNetV2"  # TODO(synk): ShuffleXception not implemented
    assert stride in (1, 2) and x.shape[1] == inp
    if stride == 1:
        # ShuffleChannels(groups=2): de-interleave even / odd channels.
        x_proj = x[:, 0::2]
        x_main = x[:, 1::2]
        main = _branch_main_pallas(x_main, channel_choice, params,
                                   mid=mid, ksize=ksize, stride=1, act_name=act_name)
        return jnp.concatenate([x_proj, main], axis=1)
    else:
        proj = _branch_proj_pallas(x, params, ksize=ksize, act_name=act_name)
        main = _branch_main_pallas(x, channel_choice, params,
                                   mid=mid, ksize=ksize, stride=2, act_name=act_name)
        return jnp.concatenate([proj, main], axis=1)


# ---------------------------------------------------------------------------
# Parameter construction (deterministic, inference-mode BN stats).
def make_params(key, *, inp, oup, mid, ksize, stride):
    main_in = inp // 2 if stride == 1 else inp
    proj_c = inp // 2 if stride == 1 else inp
    outputs = oup - proj_c
    ks = jax.random.split(key, 10)

    def bn(k, c):
        k1, k2, k3, k4 = jax.random.split(k, 4)
        return dict(gamma=1.0 + 0.1 * jax.random.normal(k1, (c,)),
                    beta=0.1 * jax.random.normal(k2, (c,)),
                    mean=0.1 * jax.random.normal(k3, (c,)),
                    var=0.5 + jax.random.uniform(k4, (c,)))

    p = {}
    p["w1"] = 0.3 * jax.random.normal(ks[0], (mid, main_in))           # (Cout, Cin)
    p.update({f"bn1_{k}": v for k, v in bn(ks[1], mid).items()})
    p["wd"] = 0.3 * jax.random.normal(ks[2], (ksize * ksize, mid))     # depthwise taps
    p.update({f"bn2_{k}": v for k, v in bn(ks[3], mid).items()})
    p["w3"] = 0.3 * jax.random.normal(ks[4], (outputs, mid))
    p.update({f"bn3_{k}": v for k, v in bn(ks[5], outputs).items()})
    if stride == 2:
        p["wdp"] = 0.3 * jax.random.normal(ks[6], (ksize * ksize, proj_c))
        p.update({f"bnp1_{k}": v for k, v in bn(ks[7], proj_c).items()})
        p["wp"] = 0.3 * jax.random.normal(ks[8], (proj_c, proj_c))
        p.update({f"bnp2_{k}": v for k, v in bn(ks[9], proj_c).items()})
    return jax.tree_util.tree_map(lambda a: a.astype(jnp.float32), p)


# ---------------------------------------------------------------------------
# Independent pure-JAX reference (lax convs, highest precision).
def _ref_bn(x, p, prefix):
    s = p[prefix + "_gamma"] / jnp.sqrt(p[prefix + "_var"] + _EPS)
    b = p[prefix + "_beta"] - p[prefix + "_mean"] * s
    return x * s[None, :, None, None] + b[None, :, None, None]


def _ref_pw(x, w):  # w: (Cout, Cin)
    return lax.conv_general_dilated(
        x, w[:, :, None, None], (1, 1), "VALID",
        dimension_numbers=("NCHW", "OIHW", "NCHW"),
        precision=lax.Precision.HIGHEST)


def _ref_dw(x, wd, ksize, stride):  # wd: (k*k, C)
    C = x.shape[1]
    w = jnp.transpose(wd.reshape(ksize, ksize, C), (2, 0, 1))[:, None]  # (C,1,k,k)
    pad = ksize // 2
    return lax.conv_general_dilated(
        x, w, (stride, stride), [(pad, pad), (pad, pad)],
        dimension_numbers=("NCHW", "OIHW", "NCHW"),
        feature_group_count=C, precision=lax.Precision.HIGHEST)


def ref_block(x, channel_choice, p, *, inp, oup, mid, ksize, stride, act_name="relu"):
    def branch_main(xm):
        y = _ref_pw(xm, p["w1"])
        y = y * channel_choice[0, :mid][None, :, None, None]   # ChannelSelector
        y = _apply_activation(_ref_bn(y, p, "bn1"), act_name)
        y = _ref_bn(_ref_dw(y, p["wd"], ksize, stride), p, "bn2")
        y = _apply_activation(_ref_bn(_ref_pw(y, p["w3"]), p, "bn3"), act_name)
        return y

    if stride == 1:
        x_proj, x_main = x[:, 0::2], x[:, 1::2]
        return jnp.concatenate([x_proj, branch_main(x_main)], axis=1)
    else:
        yp = _ref_bn(_ref_dw(x, p["wdp"], ksize, 2), p, "bnp1")
        yp = _apply_activation(_ref_bn(_ref_pw(yp, p["wp"]), p, "bnp2"), act_name)
        return jnp.concatenate([yp, branch_main(x)], axis=1)


# ---------------------------------------------------------------------------
if __name__ == "__main__":
    key = jax.random.PRNGKey(0)
    k_x1, k_p1, k_x2, k_p2 = jax.random.split(key, 4)

    ok = True

    # ---- Config A: regular block (stride=1, channel shuffle + split) ----
    B, H, W = 2, 16, 16
    inp, oup, mid, ksize, stride = 16, 16, 16, 3, 1
    x = jax.random.normal(k_x1, (B, inp, H, W), dtype=jnp.float32)
    channel_choice = (jnp.arange(mid) < 12).astype(jnp.float32)[None, :]
    params = make_params(k_p1, inp=inp, oup=oup, mid=mid, ksize=ksize, stride=stride)

    fwd = jax.jit(functools.partial(shufflenet_cs_block, inp=inp, oup=oup, mid=mid,
                                    ksize=ksize, stride=stride, act_name="relu"))
    out = jax.block_until_ready(fwd(x, channel_choice, params))
    ref = ref_block(x, channel_choice, params, inp=inp, oup=oup, mid=mid,
                    ksize=ksize, stride=stride, act_name="relu")
    if out.shape != (B, oup, H, W) or not jnp.allclose(out, ref, atol=2e-3, rtol=2e-3):
        ok = False
        print("MISMATCH stride=1:", float(jnp.max(jnp.abs(out - ref))))

    # ---- Config B: down-sample block (stride=2, exercises branch_proj) ----
    inp2, oup2, mid2, stride2 = 16, 32, 16, 2
    x2 = jax.random.normal(k_x2, (B, inp2, H, W), dtype=jnp.float32)
    cc2 = (jnp.arange(mid2) < 10).astype(jnp.float32)[None, :]
    params2 = make_params(k_p2, inp=inp2, oup=oup2, mid=mid2, ksize=ksize, stride=stride2)

    fwd2 = jax.jit(functools.partial(shufflenet_cs_block, inp=inp2, oup=oup2, mid=mid2,
                                     ksize=ksize, stride=stride2, act_name="relu"))
    out2 = jax.block_until_ready(fwd2(x2, cc2, params2))
    ref2 = ref_block(x2, cc2, params2, inp=inp2, oup=oup2, mid=mid2,
                     ksize=ksize, stride=stride2, act_name="relu")
    if out2.shape != (B, oup2, H // 2, W // 2) or not jnp.allclose(out2, ref2, atol=2e-3, rtol=2e-3):
        ok = False
        print("MISMATCH stride=2:", float(jnp.max(jnp.abs(out2 - ref2))))

    if ok:
        print("KERNEL_OK")
</pallas_src>

<mosaic_0001>
module attributes {stable_mosaic.version = 11 : i64} {
  func.func @_pw_conv_bn_act_kernel(%arg0: i32, %arg1: memref<1x8x256xf32, #tpu.memory_space<vmem>>, %arg2: memref<16x8xf32, #tpu.memory_space<vmem>>, %arg3: memref<16x1xf32, #tpu.memory_space<vmem>>, %arg4: memref<1x16x256xf32, #tpu.memory_space<vmem>>) attributes {dimension_semantics = [#tpu.dimension_semantics<parallel>], iteration_bounds = array<i64: 2>, scalar_prefetch = 0 : i64, scratch_operands = 0 : i64, tpu.core_type = #tpu.core_type<tc>, window_params = [{transform_indices = @transform_0, window_bounds = array<i64: 1, 8, 256>}, {pipeline_mode = #tpu.pipeline_mode<synchronous>, transform_indices = @transform_1, window_bounds = array<i64: 16, 8>}, {pipeline_mode = #tpu.pipeline_mode<synchronous>, transform_indices = @transform_2, window_bounds = array<i64: 16, 1>}, {transform_indices = @transform_3, window_bounds = array<i64: 1, 16, 256>}]} {
    %c0 = arith.constant 0 : index
    %c0_0 = arith.constant 0 : index
    %c0_1 = arith.constant 0 : index
    %0 = vector.load %arg1[%c0, %c0_0, %c0_1] : memref<1x8x256xf32, #tpu.memory_space<vmem>>, vector<1x8x256xf32>
    %1 = vector.shape_cast %0 : vector<1x8x256xf32> to vector<8x256xf32>
    %c0_2 = arith.constant 0 : index
    %c0_3 = arith.constant 0 : index
    %2 = vector.load %arg2[%c0_2, %c0_3] : memref<16x8xf32, #tpu.memory_space<vmem>>, vector<16x8xf32>
    %cst = arith.constant dense<0.000000e+00> : vector<16x256xf32>
    %3 = tpu.matmul %2, %1, %cst {dimension_numbers = #tpu.dot_dimension_numbers<[1], [0], [0], [1], [0, 0, 1, 1], [], []>} : vector<16x8xf32>, vector<8x256xf32>, vector<16x256xf32> -> vector<16x256xf32>
    %c0_4 = arith.constant 0 : index
    %c0_5 = arith.constant 0 : index
    %4 = vector.load %arg3[%c0_4, %c0_5] : memref<16x1xf32, #tpu.memory_space<vmem>>, vector<16x1xf32>
    %5 = vector.broadcast %4 : vector<16x1xf32> to vector<16x256xf32>
    %6 = arith.addf %3, %5 : vector<16x256xf32>
    %cst_6 = arith.constant 0.000000e+00 : f32
    %7 = vector.broadcast %cst_6 : f32 to vector<16x256xf32>
    %8 = arith.maximumf %6, %7 : vector<16x256xf32>
    %c0_7 = arith.constant 0 : index
    %c0_8 = arith.constant 0 : index
    %c0_9 = arith.constant 0 : index
    %9 = vector.load %arg4[%c0_7, %c0_8, %c0_9] : memref<1x16x256xf32, #tpu.memory_space<vmem>>, vector<1x16x256xf32>
    %10 = vector.shape_cast %9 : vector<1x16x256xf32> to vector<16x256xf32>
    %11 = vector.shape_cast %8 : vector<16x256xf32> to vector<1x16x256xf32>
    tpu.vector_store %arg4[%c0_7, %c0_8, %c0_9], %11 {strides = array<i32>} : memref<1x16x256xf32, #tpu.memory_space<vmem>>, vector<1x16x256xf32>,
    return
  }
  func.func @transform_0(%arg0: i32) -> (i32, i32, i32) {
    %c0_i32 = arith.constant 0 : i32
    %c0_i32_0 = arith.constant 0 : i32
    %c0_i32_1 = arith.constant 0 : i32
    return %arg0, %c0_i32, %c0_i32_0 : i32, i32, i32
  }
  func.func @transform_1(%arg0: i32) -> (i32, i32) {
    %c0_i32 = arith.constant 0 : i32
    %c0_i32_0 = arith.constant 0 : i32
    %c0_i32_1 = arith.constant 0 : i32
    return %c0_i32, %c0_i32_0 : i32, i32
  }
  func.func @transform_2(%arg0: i32) -> (i32, i32) {
    %c0_i32 = arith.constant 0 : i32
    %c0_i32_0 = arith.constant 0 : i32
    %c0_i32_1 = arith.constant 0 : i32
    return %c0_i32, %c0_i32_0 : i32, i32
  }
  func.func @transform_3(%arg0: i32) -> (i32, i32, i32) {
    %c0_i32 = arith.constant 0 : i32
    %c0_i32_0 = arith.constant 0 : i32
    %c0_i32_1 = arith.constant 0 : i32
    return %arg0, %c0_i32, %c0_i32_0 : i32, i32, i32
  }
}

module attributes {stable_mosaic.version = 11 : i64} {
  func.func @_dw_conv_bn_kernel(%arg0: i32, %arg1: memref<1x16x18x18xf32, #tpu.memory_space<vmem>>, %arg2: memref<9x16x1x16xf32, #tpu.memory_space<vmem>>, %arg3: memref<16x1x16xf32, #tpu.memory_space<vmem>>, %arg4: memref<1x16x16x16xf32, #tpu.memory_space<vmem>>) attributes {dimension_semantics = [#tpu.dimension_semantics<parallel>], iteration_bounds = array<i64: 2>, scalar_prefetch = 0 : i64, scratch_operands = 0 : i64, tpu.core_type = #tpu.core_type<tc>, window_params = [{transform_indices = @transform_0, window_bounds = array<i64: 1, 16, 18, 18>}, {pipeline_mode = #tpu.pipeline_mode<synchronous>, transform_indices = @transform_1, window_bounds = array<i64: 9, 16, 1, 16>}, {pipeline_mode = #tpu.pipeline_mode<synchronous>, transform_indices = @transform_2, window_bounds = array<i64: 16, 1, 16>}, {transform_indices = @transform_3, window_bounds = array<i64: 1, 16, 16, 16>}]} {
    %c0 = arith.constant 0 : index
    %c0_0 = arith.constant 0 : index
    %c0_1 = arith.constant 0 : index
    %c0_2 = arith.constant 0 : index
    %0 = vector.load %arg1[%c0, %c0_0, %c0_1, %c0_2] : memref<1x16x18x18xf32, #tpu.memory_space<vmem>>, vector<1x16x18x18xf32>
    %1 = vector.shape_cast %0 : vector<1x16x18x18xf32> to vector<16x18x18xf32>
    %cst = arith.constant 0.000000e+00 : f32
    %2 = vector.broadcast %cst : f32 to vector<16x16x16xf32>
    %3 = vector.extract_strided_slice %1 {offsets = [0, 0, 0], sizes = [16, 16, 16], strides = [1, 1, 1]} : vector<16x18x18xf32> to vector<16x16x16xf32>
    %c0_3 = arith.constant 0 : index
    %c0_4 = arith.constant 0 : index
    %c0_5 = arith.constant 0 : index
    %c0_6 = arith.constant 0 : index
    %4 = vector.load %arg2[%c0_3, %c0_4, %c0_5, %c0_6] : memref<9x16x1x16xf32, #tpu.memory_space<vmem>>, vector<1x16x1x16xf32>
    %5 = vector.shape_cast %4 : vector<1x16x1x16xf32> to vector<16x1x16xf32>
    %6 = vector.broadcast %5 : vector<16x1x16xf32> to vector<16x16x16xf32>
    %7 = arith.mulf %3, %6 : vector<16x16x16xf32>
    %8 = arith.addf %2, %7 : vector<16x16x16xf32>
    %9 = vector.extract_strided_slice %1 {offsets = [0, 0, 1], sizes = [16, 16, 16], strides = [1, 1, 1]} : vector<16x18x18xf32> to vector<16x16x16xf32>
    %c1 = arith.constant 1 : index
    %c0_7 = arith.constant 0 : index
    %c0_8 = arith.constant 0 : index
    %c0_9 = arith.constant 0 : index
    %10 = vector.load %arg2[%c1, %c0_7, %c0_8, %c0_9] : memref<9x16x1x16xf32, #tpu.memory_space<vmem>>, vector<1x16x1x16xf32>
    %11 = vector.shape_cast %10 : vector<1x16x1x16xf32> to vector<16x1x16xf32>
    %12 = vector.broadcast %11 : vector<16x1x16xf32> to vector<16x16x16xf32>
    %13 = arith.mulf %9, %12 : vector<16x16x16xf32>
    %14 = arith.addf %8, %13 : vector<16x16x16xf32>
    %15 = vector.extract_strided_slice %1 {offsets = [0, 0, 2], sizes = [16, 16, 16], strides = [1, 1, 1]} : vector<16x18x18xf32> to vector<16x16x16xf32>
    %c2 = arith.constant 2 : index
    %c0_10 = arith.constant 0 : index
    %c0_11 = arith.constant 0 : index
    %c0_12 = arith.constant 0 : index
    %16 = vector.load %arg2[%c2, %c0_10, %c0_11, %c0_12] : memref<9x16x1x16xf32, #tpu.memory_space<vmem>>, vector<1x16x1x16xf32>
    %17 = vector.shape_cast %16 : vector<1x16x1x16xf32> to vector<16x1x16xf32>
    %18 = vector.broadcast %17 : vector<16x1x16xf32> to vector<16x16x16xf32>
    %19 = arith.mulf %15, %18 : vector<16x16x16xf32>
    %20 = arith.addf %14, %19 : vector<16x16x16xf32>
    %21 = vector.extract_strided_slice %1 {offsets = [0, 1, 0], sizes = [16, 16, 16], strides = [1, 1, 1]} : vector<16x18x18xf32> to vector<16x16x16xf32>
    %c3 = arith.constant 3 : index
    %c0_13 = arith.constant 0 : index
    %c0_14 = arith.constant 0 : index
    %c0_15 = arith.constant 0 : index
    %22 = vector.load %arg2[%c3, %c0_13, %c0_14, %c0_15] : memref<9x16x1x16xf32, #tpu.memory_space<vmem>>, vector<1x16x1x16xf32>
    %23 = vector.shape_cast %22 : vector<1x16x1x16xf32> to vector<16x1x16xf32>
    %24 = vector.broadcast %23 : vector<16x1x16xf32> to vector<16x16x16xf32>
    %25 = arith.mulf %21, %24 : vector<16x16x16xf32>
    %26 = arith.addf %20, %25 : vector<16x16x16xf32>
    %27 = vector.extract_strided_slice %1 {offsets = [0, 1, 1], sizes = [16, 16, 16], strides = [1, 1, 1]} : vector<16x18x18xf32> to vector<16x16x16xf32>
    %c4 = arith.constant 4 : index
    %c0_16 = arith.constant 0 : index
    %c0_17 = arith.constant 0 : index
    %c0_18 = arith.constant 0 : index
    %28 = vector.load %arg2[%c4, %c0_16, %c0_17, %c0_18] : memref<9x16x1x16xf32, #tpu.memory_space<vmem>>, vector<1x16x1x16xf32>
    %29 = vector.shape_cast %28 : vector<1x16x1x16xf32> to vector<16x1x16xf32>
    %30 = vector.broadcast %29 : vector<16x1x16xf32> to vector<16x16x16xf32>
    %31 = arith.mulf %27, %30 : vector<16x16x16xf32>
    %32 = arith.addf %26, %31 : vector<16x16x16xf32>
    %33 = vector.extract_strided_slice %1 {offsets = [0, 1, 2], sizes = [16, 16, 16], strides = [1, 1, 1]} : vector<16x18x18xf32> to vector<16x16x16xf32>
    %c5 = arith.constant 5 : index
    %c0_19 = arith.constant 0 : index
    %c0_20 = arith.constant 0 : index
    %c0_21 = arith.constant 0 : index
    %34 = vector.load %arg2[%c5, %c0_19, %c0_20, %c0_21] : memref<9x16x1x16xf32, #tpu.memory_space<vmem>>, vector<1x16x1x16xf32>
    %35 = vector.shape_cast %34 : vector<1x16x1x16xf32> to vector<16x1x16xf32>
    %36 = vector.broadcast %35 : vector<16x1x16xf32> to vector<16x16x16xf32>
    %37 = arith.mulf %33, %36 : vector<16x16x16xf32>
    %38 = arith.addf %32, %37 : vector<16x16x16xf32>
    %39 = vector.extract_strided_slice %1 {offsets = [0, 2, 0], sizes = [16, 16, 16], strides = [1, 1, 1]} : vector<16x18x18xf32> to vector<16x16x16xf32>
    %c6 = arith.constant 6 : index
    %c0_22 = arith.constant 0 : index
    %c0_23 = arith.constant 0 : index
    %c0_24 = arith.constant 0 : index
    %40 = vector.load %arg2[%c6, %c0_22, %c0_23, %c0_24] : memref<9x16x1x16xf32, #tpu.memory_space<vmem>>, vector<1x16x1x16xf32>
    %41 = vector.shape_cast %40 : vector<1x16x1x16xf32> to vector<16x1x16xf32>
    %42 = vector.broadcast %41 : vector<16x1x16xf32> to vector<16x16x16xf32>
    %43 = arith.mulf %39, %42 : vector<16x16x16xf32>
    %44 = arith.addf %38, %43 : vector<16x16x16xf32>
    %45 = vector.extract_strided_slice %1 {offsets = [0, 2, 1], sizes = [16, 16, 16], strides = [1, 1, 1]} : vector<16x18x18xf32> to vector<16x16x16xf32>
    %c7 = arith.constant 7 : index
    %c0_25 = arith.constant 0 : index
    %c0_26 = arith.constant 0 : index
    %c0_27 = arith.constant 0 : index
    %46 = vector.load %arg2[%c7, %c0_25, %c0_26, %c0_27] : memref<9x16x1x16xf32, #tpu.memory_space<vmem>>, vector<1x16x1x16xf32>
    %47 = vector.shape_cast %46 : vector<1x16x1x16xf32> to vector<16x1x16xf32>
    %48 = vector.broadcast %47 : vector<16x1x16xf32> to vector<16x16x16xf32>
    %49 = arith.mulf %45, %48 : vector<16x16x16xf32>
    %50 = arith.addf %44, %49 : vector<16x16x16xf32>
    %51 = vector.extract_strided_slice %1 {offsets = [0, 2, 2], sizes = [16, 16, 16], strides = [1, 1, 1]} : vector<16x18x18xf32> to vector<16x16x16xf32>
    %c8 = arith.constant 8 : index
    %c0_28 = arith.constant 0 : index
    %c0_29 = arith.constant 0 : index
    %c0_30 = arith.constant 0 : index
    %52 = vector.load %arg2[%c8, %c0_28, %c0_29, %c0_30] : memref<9x16x1x16xf32, #tpu.memory_space<vmem>>, vector<1x16x1x16xf32>
    %53 = vector.shape_cast %52 : vector<1x16x1x16xf32> to vector<16x1x16xf32>
    %54 = vector.broadcast %53 : vector<16x1x16xf32> to vector<16x16x16xf32>
    %55 = arith.mulf %51, %54 : vector<16x16x16xf32>
    %56 = arith.addf %50, %55 : vector<16x16x16xf32>
    %c0_31 = arith.constant 0 : index
    %c0_32 = arith.constant 0 : index
    %c0_33 = arith.constant 0 : index
    %57 = vector.load %arg3[%c0_31, %c0_32, %c0_33] : memref<16x1x16xf32, #tpu.memory_space<vmem>>, vector<16x1x16xf32>
    %58 = vector.broadcast %57 : vector<16x1x16xf32> to vector<16x16x16xf32>
    %59 = arith.addf %56, %58 : vector<16x16x16xf32>
    %c0_34 = arith.constant 0 : index
    %c0_35 = arith.constant 0 : index
    %c0_36 = arith.constant 0 : index
    %c0_37 = arith.constant 0 : index
    %60 = vector.load %arg4[%c0_34, %c0_35, %c0_36, %c0_37] : memref<1x16x16x16xf32, #tpu.memory_space<vmem>>, vector<1x16x16x16xf32>
    %61 = vector.shape_cast %60 : vector<1x16x16x16xf32> to vector<16x16x16xf32>
    %62 = vector.shape_cast %59 : vector<16x16x16xf32> to vector<1x16x16x16xf32>
    tpu.vector_store %arg4[%c0_34, %c0_35, %c0_36, %c0_37], %62 {strides = array<i32>} : memref<1x16x16x16xf32, #tpu.memory_space<vmem>>, vector<1x16x16x16xf32>,
    return
  }
  func.func @transform_0(%arg0: i32) -> (i32, i32, i32, i32) {
    %c0_i32 = arith.constant 0 : i32
    %c0_i32_0 = arith.constant 0 : i32
    %c0_i32_1 = arith.constant 0 : i32
    %c0_i32_2 = arith.constant 0 : i32
    return %arg0, %c0_i32, %c0_i32_0, %c0_i32_1 : i32, i32, i32, i32
  }
  func.func @transform_1(%arg0: i32) -> (i32, i32, i32, i32) {
    %c0_i32 = arith.constant 0 : i32
    %c0_i32_0 = arith.constant 0 : i32
    %c0_i32_1 = arith.constant 0 : i32
    %c0_i32_2 = arith.constant 0 : i32
    %c0_i32_3 = arith.constant 0 : i32
    return %c0_i32, %c0_i32_0, %c0_i32_1, %c0_i32_2 : i32, i32, i32, i32
  }
  func.func @transform_2(%arg0: i32) -> (i32, i32, i32) {
    %c0_i32 = arith.constant 0 : i32
    %c0_i32_0 = arith.constant 0 : i32
    %c0_i32_1 = arith.constant 0 : i32
    %c0_i32_2 = arith.constant 0 : i32
    return %c0_i32, %c0_i32_0, %c0_i32_1 : i32, i32, i32
  }
  func.func @transform_3(%arg0: i32) -> (i32, i32, i32, i32) {
    %c0_i32 = arith.constant 0 : i32
    %c0_i32_0 = arith.constant 0 : i32
    %c0_i32_1 = arith.constant 0 : i32
    %c0_i32_2 = arith.constant 0 : i32
    return %arg0, %c0_i32, %c0_i32_0, %c0_i32_1 : i32, i32, i32, i32
  }
}

module attributes {stable_mosaic.version = 11 : i64} {
  func.func @_pw_conv_bn_act_kernel(%arg0: i32, %arg1: memref<1x16x256xf32, #tpu.memory_space<vmem>>, %arg2: memref<8x16xf32, #tpu.memory_space<vmem>>, %arg3: memref<8x1xf32, #tpu.memory_space<vmem>>, %arg4: memref<1x8x256xf32, #tpu.memory_space<vmem>>) attributes {dimension_semantics = [#tpu.dimension_semantics<parallel>], iteration_bounds = array<i64: 2>, scalar_prefetch = 0 : i64, scratch_operands = 0 : i64, tpu.core_type = #tpu.core_type<tc>, window_params = [{transform_indices = @transform_0, window_bounds = array<i64: 1, 16, 256>}, {pipeline_mode = #tpu.pipeline_mode<synchronous>, transform_indices = @transform_1, window_bounds = array<i64: 8, 16>}, {pipeline_mode = #tpu.pipeline_mode<synchronous>, transform_indices = @transform_2, window_bounds = array<i64: 8, 1>}, {transform_indices = @transform_3, window_bounds = array<i64: 1, 8, 256>}]} {
    %c0 = arith.constant 0 : index
    %c0_0 = arith.constant 0 : index
    %c0_1 = arith.constant 0 : index
    %0 = vector.load %arg1[%c0, %c0_0, %c0_1] : memref<1x16x256xf32, #tpu.memory_space<vmem>>, vector<1x16x256xf32>
    %1 = vector.shape_cast %0 : vector<1x16x256xf32> to vector<16x256xf32>
    %c0_2 = arith.constant 0 : index
    %c0_3 = arith.constant 0 : index
    %2 = vector.load %arg2[%c0_2, %c0_3] : memref<8x16xf32, #tpu.memory_space<vmem>>, vector<8x16xf32>
    %cst = arith.constant dense<0.000000e+00> : vector<8x256xf32>
    %3 = tpu.matmul %2, %1, %cst {dimension_numbers = #tpu.dot_dimension_numbers<[1], [0], [0], [1], [0, 0, 1, 1], [], []>} : vector<8x16xf32>, vector<16x256xf32>, vector<8x256xf32> -> vector<8x256xf32>
    %c0_4 = arith.constant 0 : index
    %c0_5 = arith.constant 0 : index
    %4 = vector.load %arg3[%c0_4, %c0_5] : memref<8x1xf32, #tpu.memory_space<vmem>>, vector<8x1xf32>
    %5 = vector.broadcast %4 : vector<8x1xf32> to vector<8x256xf32>
    %6 = arith.addf %3, %5 : vector<8x256xf32>
    %cst_6 = arith.constant 0.000000e+00 : f32
    %7 = vector.broadcast %cst_6 : f32 to vector<8x256xf32>
    %8 = arith.maximumf %6, %7 : vector<8x256xf32>
    %c0_7 = arith.constant 0 : index
    %c0_8 = arith.constant 0 : index
    %c0_9 = arith.constant 0 : index
    %9 = vector.load %arg4[%c0_7, %c0_8, %c0_9] : memref<1x8x256xf32, #tpu.memory_space<vmem>>, vector<1x8x256xf32>
    %10 = vector.shape_cast %9 : vector<1x8x256xf32> to vector<8x256xf32>
    %11 = vector.shape_cast %8 : vector<8x256xf32> to vector<1x8x256xf32>
    tpu.vector_store %arg4[%c0_7, %c0_8, %c0_9], %11 {strides = array<i32>} : memref<1x8x256xf32, #tpu.memory_space<vmem>>, vector<1x8x256xf32>,
    return
  }
  func.func @transform_0(%arg0: i32) -> (i32, i32, i32) {
    %c0_i32 = arith.constant 0 : i32
    %c0_i32_0 = arith.constant 0 : i32
    %c0_i32_1 = arith.constant 0 : i32
    return %arg0, %c0_i32, %c0_i32_0 : i32, i32, i32
  }
  func.func @transform_1(%arg0: i32) -> (i32, i32) {
    %c0_i32 = arith.constant 0 : i32
    %c0_i32_0 = arith.constant 0 : i32
    %c0_i32_1 = arith.constant 0 : i32
    return %c0_i32, %c0_i32_0 : i32, i32
  }
  func.func @transform_2(%arg0: i32) -> (i32, i32) {
    %c0_i32 = arith.constant 0 : i32
    %c0_i32_0 = arith.constant 0 : i32
    %c0_i32_1 = arith.constant 0 : i32
    return %c0_i32, %c0_i32_0 : i32, i32
  }
  func.func @transform_3(%arg0: i32) -> (i32, i32, i32) {
    %c0_i32 = arith.constant 0 : i32
    %c0_i32_0 = arith.constant 0 : i32
    %c0_i32_1 = arith.constant 0 : i32
    return %arg0, %c0_i32, %c0_i32_0 : i32, i32, i32
  }
}

</mosaic_0001>

<llo_original>
// kernel: shufflenet_cs_block.3
$region0: #{shufflenet_cs_block.3}
  #allocation0 [shape = 'u32[]', space=smem, size = 0x4, offset = 0x4, fixed_abs, tag = 'smem constant byte address 0x4 - core index']
  #allocation1 [shape = 'u32[72,128]{1,0:T(1,128)}', space=vmem, size = 0x9000, scoped, tag = 'internal scratch']
  %s0 = inlined_call_operand.vmem [shape: f32[2,8,256], index: 0, kind: input, shape index: {}]
  %s1 = inlined_call_operand.vmem [shape: f32[16,8], index: 1, kind: input, shape index: {}]
  %s2 = inlined_call_operand.vmem [shape: f32[16,1], index: 2, kind: input, shape index: {}]
  %s3 = inlined_call_operand.vmem [shape: f32[2,16,256], index: 3, kind: output, shape index: {}]
  %s4 = sld [smem:[#allocation0]]
  $region45: #{shufflenet_cs_block.3} parent=0
    _
  %s6 = ssub.s32 1, %s4
  %s7 = scalar_select 0, %s6, %s4
  loop: start=0, step=1, limit=4
  $region2: #{shufflenet_cs_block.3} parent=0 // loop_pre_header
    _
  $region3: #{shufflenet_cs_block.3} parent=0 // loop_header
    %s9 = sphi 0, %s13
    %p10 = scmp.ge.s32.totalorder %s9, 4
    %s19 = sphi 0, %s21
    %s22 = sphi 0, %s19
    %s23 = sphi 0, %s22
    %s39 = sphi 0, %s23
    %s43 = sphi 0, %s43
    %s45 = sphi 0, %s43
    %s46 = sphi 0, %s45
    %s60 = sphi 0, %s46
    %s64 = sphi 0, %s64
    %s66 = sphi 0, %s64
    %s67 = sphi 0, %s66
    %s81 = sphi 0, %s67
    %s87 = sphi 0, %s89
    %s90 = sphi 0, %s87
    %s91 = sphi 0, %s90
    %s107 = sphi 0, %s91
  $region4: #{shufflenet_cs_block.3} parent=0 // loop_header_branch
    %12 = sbr.rel (%p10) target = $region8
  $region5: #{shufflenet_cs_block.3} parent=0 // loop_body
    %s14 = ssub.s32 %s9, 1
    %s15 = ssub.s32 %s9, 2
    %s16 = sadd.s32 %s9, 1
    %s17 = ssub.s32 %s9, %s16
    %p18 = scmp.eq.s32.totalorder %s17, 0
    %s20 = sadd.s32 %s19, 1
    %s21 = scalar_select %p18, %s19, %s20
    %p24 = pneg %p18
    %p25 = scmp.eq.s32.totalorder %s9, 1
    %p26 = por %p24, %p25
    %p27 = scmp.ne.s32.totalorder %s19, %s22
    %p28 = scmp.eq.s32.totalorder %s9, 0
    %p29 = por %p27, %p28
    %p30 = scmp.ne.s32.totalorder %s19, %s22
    %p31 = scmp.eq.s32.totalorder %s14, 1
    %p32 = por %p30, %p31
    %p33 = scmp.ne.s32.totalorder %s22, %s23
    %p34 = scmp.eq.s32.totalorder %s14, 0
    %p35 = por %p33, %p34
    %p36 = scmp.ne.s32.totalorder %s22, %s23
    %p37 = scmp.eq.s32.totalorder %s15, 1
    %p38 = por %p36, %p37
    %p40 = scmp.ne.s32.totalorder %s23, %s39
    %p41 = scmp.eq.s32.totalorder %s15, 0
    %p42 = por %p40, %p41
    %s44 = sadd.s32 %s43, 1
    %p47 = scmp.eq.s32.totalorder %s9, 1
    %p48 = scmp.ne.s32.totalorder %s43, %s45
    %p49 = scmp.eq.s32.totalorder %s9, 0
    %p50 = por %p48, %p49
    %p51 = scmp.ne.s32.totalorder %s43, %s45
    %p52 = scmp.eq.s32.totalorder %s14, 1
    %p53 = por %p51, %p52
    %p54 = scmp.ne.s32.totalorder %s45, %s46
    %p55 = scmp.eq.s32.totalorder %s14, 0
    %p56 = por %p54, %p55
    %p57 = scmp.ne.s32.totalorder %s45, %s46
    %p58 = scmp.eq.s32.totalorder %s15, 1
    %p59 = por %p57, %p58
    %p61 = scmp.ne.s32.totalorder %s46, %s60
    %p62 = scmp.eq.s32.totalorder %s15, 0
    %p63 = por %p61, %p62
    %s65 = sadd.s32 %s64, 1
    %p68 = scmp.eq.s32.totalorder %s9, 1
    %p69 = scmp.ne.s32.totalorder %s64, %s66
    %p70 = scmp.eq.s32.totalorder %s9, 0
    %p71 = por %p69, %p70
    %p72 = scmp.ne.s32.totalorder %s64, %s66
    %p73 = scmp.eq.s32.totalorder %s14, 1
    %p74 = por %p72, %p73
    %p75 = scmp.ne.s32.totalorder %s66, %s67
    %p76 = scmp.eq.s32.totalorder %s14, 0
    %p77 = por %p75, %p76
    %p78 = scmp.ne.s32.totalorder %s66, %s67
    %p79 = scmp.eq.s32.totalorder %s15, 1
    %p80 = por %p78, %p79
    %p82 = scmp.ne.s32.totalorder %s67, %s81
    %p83 = scmp.eq.s32.totalorder %s15, 0
    %p84 = por %p82, %p83
    %s85 = ssub.s32 %s9, %s16
    %p86 = scmp.eq.s32.totalorder %s85, 0
    %s88 = sadd.s32 %s87, 1
    %s89 = scalar_select %p86, %s87, %s88
    %p92 = pneg %p86
    %p93 = scmp.eq.s32.totalorder %s9, 1
    %p94 = por %p92, %p93
    %p95 = scmp.ne.s32.totalorder %s87, %s90
    %p96 = scmp.eq.s32.totalorder %s9, 0
    %p97 = por %p95, %p96
    %p98 = scmp.ne.s32.totalorder %s87, %s90
    %p99 = scmp.eq.s32.totalorder %s14, 1
    %p100 = por %p98, %p99
    %p101 = scmp.ne.s32.totalorder %s90, %s91
    %p102 = scmp.eq.s32.totalorder %s14, 0
    %p103 = por %p101, %p102
    %p104 = scmp.ne.s32.totalorder %s90, %s91
    %p105 = scmp.eq.s32.totalorder %s15, 1
    %p106 = por %p104, %p105
    %p108 = scmp.ne.s32.totalorder %s91, %s107
    %p109 = scmp.eq.s32.totalorder %s15, 0
    %p110 = por %p108, %p109
    %p111 = scmp.le.s32.totalorder 1, %s9
    %p112 = scmp.lt.s32.totalorder %s9, 3
    %p113 = pnand %p111, %p112
    %p114 = pneg %p113
    // Predicated region
    $region9: #{shufflenet_cs_block.3} parent=5 // pred_check
      _
    $region10: #{shufflenet_cs_block.3} parent=5 // pred_check_branch
      %116 = sbr.rel (%p113) target = $region12
    $region11: #{shufflenet_cs_block.3} parent=5 // pred_region
      %s117 = ssub.s32 %s9, 1
      // Predicated region
      $region13: #{shufflenet_cs_block.3} parent=11 // pred_check
        %p118 = pneg %p56
      $region14: #{shufflenet_cs_block.3} parent=11 // pred_check_branch
        %120 = sbr.rel (%p118) target = $region16
      $region15: #{shufflenet_cs_block.3} parent=11 // pred_region
        _
      $region16: #{shufflenet_cs_block.3} parent=11 // pred_fallthru
        _
      // Predicated region
      $region17: #{shufflenet_cs_block.3} parent=11 // pred_check
        %p121 = pneg %p77
      $region18: #{shufflenet_cs_block.3} parent=11 // pred_check_branch
        %123 = sbr.rel (%p121) target = $region20
      $region19: #{shufflenet_cs_block.3} parent=11 // pred_region
        _
      $region20: #{shufflenet_cs_block.3} parent=11 // pred_fallthru
        _
    $region12: #{shufflenet_cs_block.3} parent=5 // pred_fallthru
      _
    %p124 = scmp.lt.s32.totalorder %s9, 2
    // Predicated region
    $region21: #{shufflenet_cs_block.3} parent=5 // pred_check
      %p125 = pneg %p124
    $region22: #{shufflenet_cs_block.3} parent=5 // pred_check_branch
      %127 = sbr.rel (%p125) target = $region24
    $region23: #{shufflenet_cs_block.3} parent=5 // pred_region
      // Predicated region
      $region25: #{shufflenet_cs_block.3} parent=23 // pred_check
        %p128 = pneg %p29
      $region26: #{shufflenet_cs_block.3} parent=23 // pred_check_branch
        %130 = sbr.rel (%p128) target = $region28
      $region27: #{shufflenet_cs_block.3} parent=23 // pred_region
        %p131 = scmp.lt.s32.totalorder %s9, 1
        %s132 = scalar_select %p131, %s9, 1
        %s133 = smul.addr %s132, 2
        %s134 = smul.addr %s133, 8
        %s135 = scalar_lea.vmem %s0, %s134
      $region28: #{shufflenet_cs_block.3} parent=23 // pred_fallthru
        _
    $region24: #{shufflenet_cs_block.3} parent=5 // pred_fallthru
      _
    %p136 = scmp.le.s32.totalorder 1, %s9
    %p137 = scmp.lt.s32.totalorder %s9, 3
    %p138 = pnand %p136, %p137
    %p139 = pneg %p138
    // Predicated region
    $region29: #{shufflenet_cs_block.3} parent=5 // pred_check
      _
    $region30: #{shufflenet_cs_block.3} parent=5 // pred_check_branch
      %141 = sbr.rel (%p138) target = $region32
    $region31: #{shufflenet_cs_block.3} parent=5 // pred_region
      %s142 = ssub.s32 %s9, 1
      %p143 = scmp.lt.s32.totalorder %s14, 1
      %s144 = scalar_select %p143, %s14, 1
      %s145 = smul.addr %s144, 2
      %s146 = smul.addr %s145, 8
      %s147 = scalar_lea.vmem %s0, %s146
      %p148 = pneg %p35
      %p149 = pneg %p32
      %p150 = pneg %p56
      %p151 = pneg %p53
      %p152 = pneg %p77
      %p153 = pneg %p74
      %p154 = pneg %p103
      %p155 = pneg %p100
      %p156 = scmp.lt.s32.totalorder %s14, 1
      %s157 = scalar_select %p156, %s14, 1
      %s158 = smul.addr %s157, 4
      %s159 = smul.addr %s158, 8
      %s160 = scalar_lea.vmem %s3, %s159
      %p161 = scmp.lt.s32.totalorder %s14, 1
      %s162 = scalar_select %p161, %s14, 1
      %s163 = smul.addr %s162, 2
      %s164 = smul.addr %s163, 8
      %s165 = scalar_lea.vmem %s0, %s164
      %p166 = scmp.lt.s32.totalorder %s14, 1
      %s167 = scalar_select %p166, %s14, 1
      %s168 = smul.addr %s167, 4
      %s169 = smul.addr %s168, 8
      %s170 = scalar_lea.vmem %s3, %s169
      %v171 = vld [vmem:[%s165] sm:$0xff]
      %v172 = vld [vmem:[%s165 + $0x8] sm:$0xff]
      %v173 = vld [vmem:[%s1] sm:$0xff]
      %v174 = vld [vmem:[%s1 + $0x8] sm:$0xff]
      %v175 = vld [vmem:[%s2] sm:$0xff]
      %v176 = vld [vmem:[%s2 + $0x8] sm:$0xff]
      %178 = vset.pattern.permute.xlu0 0
      %179 = vperm.xlu0 %178, %v175
      %v180 = vpop.permute.xlu0 %179
      %183 = vset.pattern.permute.xlu0 0
      %184 = vperm.xlu0 %183, %v176
      %v185 = vpop.permute.xlu0 %184
      %vm187 = vcmask 64512
      %v189 = vsel %vm187, %v173, 0
      %v192 = vsel %vm187, %v174, 0
      %194 = vmatpush.msra.mxu0 0.0
      %195 = vmatpush.msra.mxu0 0.0
      %196 = vmatpush.msra.mxu0 0.0
      %197 = vmatpush.msra.mxu0 0.0
      %198 = vmatpush.msra.mxu0 0.0
      %199 = vmatpush.msra.mxu0 0.0
      %200 = vmatpush.msra.mxu0 0.0
      %201 = vmatpush.msra.mxu0 0.0
      %202 = vmatpush.msra.mxu0 0.0
      %203 = vmatpush.msra.mxu0 0.0
      %204 = vmatpush.msra.mxu0 0.0
      %205 = vmatpush.msra.mxu0 0.0
      %206 = vmatpush.msra.mxu0 0.0
      %207 = vmatpush.msra.mxu0 0.0
      %208 = vmatpush.msra.mxu0 0.0
      %209 = vmatpush.msra.mxu0 %v171
      %210 = vmatmul.f32.gmra.mxu0 %v189
      %v211 = vpop.f32.mrf.mxu0
      %v212 = vadd.f32 %v180, %v211
      %213 = vmatmul.f32.gmra.mxu0 %v192
      %v214 = vpop.f32.mrf.mxu0
      %v215 = vadd.f32 %v185, %v214
      %216 = vdwg.mxu0
      %217 = vmatpush.msra.mxu0 0.0
      %218 = vmatpush.msra.mxu0 0.0
      %219 = vmatpush.msra.mxu0 0.0
      %220 = vmatpush.msra.mxu0 0.0
      %221 = vmatpush.msra.mxu0 0.0
      %222 = vmatpush.msra.mxu0 0.0
      %223 = vmatpush.msra.mxu0 0.0
      %224 = vmatpush.msra.mxu0 0.0
      %225 = vmatpush.msra.mxu0 0.0
      %226 = vmatpush.msra.mxu0 0.0
      %227 = vmatpush.msra.mxu0 0.0
      %228 = vmatpush.msra.mxu0 0.0
      %229 = vmatpush.msra.mxu0 0.0
      %230 = vmatpush.msra.mxu0 0.0
      %231 = vmatpush.msra.mxu0 0.0
      %232 = vmatpush.msra.mxu0 %v172
      %233 = vmatmul.f32.gmra.mxu0 %v189
      %v234 = vpop.f32.mrf.mxu0
      %v235 = vadd.f32 %v180, %v234
      %236 = vmatmul.f32.gmra.mxu0 %v192
      %v237 = vpop.f32.mrf.mxu0
      %v238 = vadd.f32 %v185, %v237
      %239 = vdwg.mxu0
      %v240 = vmax.f32 %v212, 0.0
      %v241 = vmax.f32 %v235, 0.0
      %v242 = vmax.f32 %v215, 0.0
      %v243 = vmax.f32 %v238, 0.0
      %244 = vst [vmem:[%s170] sm:$0xff] %v240
      %245 = vst [vmem:[%s170 + $0x8] sm:$0xff] %v241
      %246 = vst [vmem:[%s170 + $0x10] sm:$0xff] %v242
      %247 = vst [vmem:[%s170 + $0x18] sm:$0xff] %v243
      %p248 = scmp.lt.s32.totalorder %s14, 1
      %s249 = scalar_select %p248, %s14, 1
      %s250 = smul.addr %s249, 4
      %s251 = smul.addr %s250, 8
      %s252 = scalar_lea.vmem %s3, %s251
      // Predicated region
      $region33: #{shufflenet_cs_block.3} parent=31 // pred_check
        %p253 = pneg %p100
      $region34: #{shufflenet_cs_block.3} parent=31 // pred_check_branch
        %255 = sbr.rel (%p253) target = $region36
      $region35: #{shufflenet_cs_block.3} parent=31 // pred_region
        _
      $region36: #{shufflenet_cs_block.3} parent=31 // pred_fallthru
        _
    $region32: #{shufflenet_cs_block.3} parent=5 // pred_fallthru
      _
    %p256 = scmp.le.s32.totalorder 2, %s9
    // Predicated region
    $region37: #{shufflenet_cs_block.3} parent=5 // pred_check
      %p257 = pneg %p256
    $region38: #{shufflenet_cs_block.3} parent=5 // pred_check_branch
      %259 = sbr.rel (%p257) target = $region40
    $region39: #{shufflenet_cs_block.3} parent=5 // pred_region
      %s260 = ssub.s32 %s9, 2
      // Predicated region
      $region41: #{shufflenet_cs_block.3} parent=39 // pred_check
        %p261 = pneg %p106
      $region42: #{shufflenet_cs_block.3} parent=39 // pred_check_branch
        %263 = sbr.rel (%p261) target = $region44
      $region43: #{shufflenet_cs_block.3} parent=39 // pred_region
        %p264 = scmp.lt.s32.totalorder %s15, 1
        %s265 = scalar_select %p264, %s15, 1
        %s266 = smul.addr %s265, 4
        %s267 = smul.addr %s266, 8
        %s268 = scalar_lea.vmem %s3, %s267
      $region44: #{shufflenet_cs_block.3} parent=39 // pred_fallthru
        _
    $region40: #{shufflenet_cs_block.3} parent=5 // pred_fallthru
      _
  $region6: #{shufflenet_cs_block.3} parent=0 // loop_footer
    %s13 = sadd.s32 1, %s9
  $region7: #{shufflenet_cs_block.3} parent=0 // loop_footer_branch
    %8 = sbr.rel target = $region3
  $region8: #{shufflenet_cs_block.3} parent=0 // loop_exit
    _

// kernel: shufflenet_cs_block.5
$region0: #{shufflenet_cs_block.5}
  #allocation0 [shape = 'u32[]', space=smem, size = 0x4, offset = 0x4, fixed_abs, tag = 'smem constant byte address 0x4 - core index']
  #allocation1 [shape = 'u32[72,128]{1,0:T(1,128)}', space=vmem, size = 0x9000, scoped, tag = 'internal scratch']
  %s0 = inlined_call_operand.vmem [shape: f32[2,16,256], index: 0, kind: input, shape index: {}]
  %s1 = inlined_call_operand.vmem [shape: f32[8,16], index: 1, kind: input, shape index: {}]
  %s2 = inlined_call_operand.vmem [shape: f32[8,1], index: 2, kind: input, shape index: {}]
  %s3 = inlined_call_operand.vmem [shape: f32[2,8,256], index: 3, kind: output, shape index: {}]
  %s4 = sld [smem:[#allocation0]]
  $region45: #{shufflenet_cs_block.5} parent=0
    _
  %s6 = ssub.s32 1, %s4
  %s7 = scalar_select 0, %s6, %s4
  loop: start=0, step=1, limit=4
  $region2: #{shufflenet_cs_block.5} parent=0 // loop_pre_header
    _
  $region3: #{shufflenet_cs_block.5} parent=0 // loop_header
    %s9 = sphi 0, %s13
    %p10 = scmp.ge.s32.totalorder %s9, 4
    %s19 = sphi 0, %s21
    %s22 = sphi 0, %s19
    %s23 = sphi 0, %s22
    %s39 = sphi 0, %s23
    %s43 = sphi 0, %s43
    %s45 = sphi 0, %s43
    %s46 = sphi 0, %s45
    %s60 = sphi 0, %s46
    %s64 = sphi 0, %s64
    %s66 = sphi 0, %s64
    %s67 = sphi 0, %s66
    %s81 = sphi 0, %s67
    %s87 = sphi 0, %s89
    %s90 = sphi 0, %s87
    %s91 = sphi 0, %s90
    %s107 = sphi 0, %s91
  $region4: #{shufflenet_cs_block.5} parent=0 // loop_header_branch
    %12 = sbr.rel (%p10) target = $region8
  $region5: #{shufflenet_cs_block.5} parent=0 // loop_body
    %s14 = ssub.s32 %s9, 1
    %s15 = ssub.s32 %s9, 2
    %s16 = sadd.s32 %s9, 1
    %s17 = ssub.s32 %s9, %s16
    %p18 = scmp.eq.s32.totalorder %s17, 0
    %s20 = sadd.s32 %s19, 1
    %s21 = scalar_select %p18, %s19, %s20
    %p24 = pneg %p18
    %p25 = scmp.eq.s32.totalorder %s9, 1
    %p26 = por %p24, %p25
    %p27 = scmp.ne.s32.totalorder %s19, %s22
    %p28 = scmp.eq.s32.totalorder %s9, 0
    %p29 = por %p27, %p28
    %p30 = scmp.ne.s32.totalorder %s19, %s22
    %p31 = scmp.eq.s32.totalorder %s14, 1
    %p32 = por %p30, %p31
    %p33 = scmp.ne.s32.totalorder %s22, %s23
    %p34 = scmp.eq.s32.totalorder %s14, 0
    %p35 = por %p33, %p34
    %p36 = scmp.ne.s32.totalorder %s22, %s23
    %p37 = scmp.eq.s32.totalorder %s15, 1
    %p38 = por %p36, %p37
    %p40 = scmp.ne.s32.totalorder %s23, %s39
    %p41 = scmp.eq.s32.totalorder %s15, 0
    %p42 = por %p40, %p41
    %s44 = sadd.s32 %s43, 1
    %p47 = scmp.eq.s32.totalorder %s9, 1
    %p48 = scmp.ne.s32.totalorder %s43, %s45
    %p49 = scmp.eq.s32.totalorder %s9, 0
    %p50 = por %p48, %p49
    %p51 = scmp.ne.s32.totalorder %s43, %s45
    %p52 = scmp.eq.s32.totalorder %s14, 1
    %p53 = por %p51, %p52
    %p54 = scmp.ne.s32.totalorder %s45, %s46
    %p55 = scmp.eq.s32.totalorder %s14, 0
    %p56 = por %p54, %p55
    %p57 = scmp.ne.s32.totalorder %s45, %s46
    %p58 = scmp.eq.s32.totalorder %s15, 1
    %p59 = por %p57, %p58
    %p61 = scmp.ne.s32.totalorder %s46, %s60
    %p62 = scmp.eq.s32.totalorder %s15, 0
    %p63 = por %p61, %p62
    %s65 = sadd.s32 %s64, 1
    %p68 = scmp.eq.s32.totalorder %s9, 1
    %p69 = scmp.ne.s32.totalorder %s64, %s66
    %p70 = scmp.eq.s32.totalorder %s9, 0
    %p71 = por %p69, %p70
    %p72 = scmp.ne.s32.totalorder %s64, %s66
    %p73 = scmp.eq.s32.totalorder %s14, 1
    %p74 = por %p72, %p73
    %p75 = scmp.ne.s32.totalorder %s66, %s67
    %p76 = scmp.eq.s32.totalorder %s14, 0
    %p77 = por %p75, %p76
    %p78 = scmp.ne.s32.totalorder %s66, %s67
    %p79 = scmp.eq.s32.totalorder %s15, 1
    %p80 = por %p78, %p79
    %p82 = scmp.ne.s32.totalorder %s67, %s81
    %p83 = scmp.eq.s32.totalorder %s15, 0
    %p84 = por %p82, %p83
    %s85 = ssub.s32 %s9, %s16
    %p86 = scmp.eq.s32.totalorder %s85, 0
    %s88 = sadd.s32 %s87, 1
    %s89 = scalar_select %p86, %s87, %s88
    %p92 = pneg %p86
    %p93 = scmp.eq.s32.totalorder %s9, 1
    %p94 = por %p92, %p93
    %p95 = scmp.ne.s32.totalorder %s87, %s90
    %p96 = scmp.eq.s32.totalorder %s9, 0
    %p97 = por %p95, %p96
    %p98 = scmp.ne.s32.totalorder %s87, %s90
    %p99 = scmp.eq.s32.totalorder %s14, 1
    %p100 = por %p98, %p99
    %p101 = scmp.ne.s32.totalorder %s90, %s91
    %p102 = scmp.eq.s32.totalorder %s14, 0
    %p103 = por %p101, %p102
    %p104 = scmp.ne.s32.totalorder %s90, %s91
    %p105 = scmp.eq.s32.totalorder %s15, 1
    %p106 = por %p104, %p105
    %p108 = scmp.ne.s32.totalorder %s91, %s107
    %p109 = scmp.eq.s32.totalorder %s15, 0
    %p110 = por %p108, %p109
    %p111 = scmp.le.s32.totalorder 1, %s9
    %p112 = scmp.lt.s32.totalorder %s9, 3
    %p113 = pnand %p111, %p112
    %p114 = pneg %p113
    // Predicated region
    $region9: #{shufflenet_cs_block.5} parent=5 // pred_check
      _
    $region10: #{shufflenet_cs_block.5} parent=5 // pred_check_branch
      %116 = sbr.rel (%p113) target = $region12
    $region11: #{shufflenet_cs_block.5} parent=5 // pred_region
      %s117 = ssub.s32 %s9, 1
      // Predicated region
      $region13: #{shufflenet_cs_block.5} parent=11 // pred_check
        %p118 = pneg %p56
      $region14: #{shufflenet_cs_block.5} parent=11 // pred_check_branch
        %120 = sbr.rel (%p118) target = $region16
      $region15: #{shufflenet_cs_block.5} parent=11 // pred_region
        _
      $region16: #{shufflenet_cs_block.5} parent=11 // pred_fallthru
        _
      // Predicated region
      $region17: #{shufflenet_cs_block.5} parent=11 // pred_check
        %p121 = pneg %p77
      $region18: #{shufflenet_cs_block.5} parent=11 // pred_check_branch
        %123 = sbr.rel (%p121) target = $region20
      $region19: #{shufflenet_cs_block.5} parent=11 // pred_region
        _
      $region20: #{shufflenet_cs_block.5} parent=11 // pred_fallthru
        _
    $region12: #{shufflenet_cs_block.5} parent=5 // pred_fallthru
      _
    %p124 = scmp.lt.s32.totalorder %s9, 2
    // Predicated region
    $region21: #{shufflenet_cs_block.5} parent=5 // pred_check
      %p125 = pneg %p124
    $region22: #{shufflenet_cs_block.5} parent=5 // pred_check_branch
      %127 = sbr.rel (%p125) target = $region24
    $region23: #{shufflenet_cs_block.5} parent=5 // pred_region
      // Predicated region
      $region25: #{shufflenet_cs_block.5} parent=23 // pred_check
        %p128 = pneg %p29
      $region26: #{shufflenet_cs_block.5} parent=23 // pred_check_branch
        %130 = sbr.rel (%p128) target = $region28
      $region27: #{shufflenet_cs_block.5} parent=23 // pred_region
        %p131 = scmp.lt.s32.totalorder %s9, 1
        %s132 = scalar_select %p131, %s9, 1
        %s133 = smul.addr %s132, 4
        %s134 = smul.addr %s133, 8
        %s135 = scalar_lea.vmem %s0, %s134
      $region28: #{shufflenet_cs_block.5} parent=23 // pred_fallthru
        _
    $region24: #{shufflenet_cs_block.5} parent=5 // pred_fallthru
      _
    %p136 = scmp.le.s32.totalorder 1, %s9
    %p137 = scmp.lt.s32.totalorder %s9, 3
    %p138 = pnand %p136, %p137
    %p139 = pneg %p138
    // Predicated region
    $region29: #{shufflenet_cs_block.5} parent=5 // pred_check
      _
    $region30: #{shufflenet_cs_block.5} parent=5 // pred_check_branch
      %141 = sbr.rel (%p138) target = $region32
    $region31: #{shufflenet_cs_block.5} parent=5 // pred_region
      %s142 = ssub.s32 %s9, 1
      %p143 = scmp.lt.s32.totalorder %s14, 1
      %s144 = scalar_select %p143, %s14, 1
      %s145 = smul.addr %s144, 4
      %s146 = smul.addr %s145, 8
      %s147 = scalar_lea.vmem %s0, %s146
      %p148 = pneg %p35
      %p149 = pneg %p32
      %p150 = pneg %p56
      %p151 = pneg %p53
      %p152 = pneg %p77
      %p153 = pneg %p74
      %p154 = pneg %p103
      %p155 = pneg %p100
      %p156 = scmp.lt.s32.totalorder %s14, 1
      %s157 = scalar_select %p156, %s14, 1
      %s158 = smul.addr %s157, 2
      %s159 = smul.addr %s158, 8
      %s160 = scalar_lea.vmem %s3, %s159
      %p161 = scmp.lt.s32.totalorder %s14, 1
      %s162 = scalar_select %p161, %s14, 1
      %s163 = smul.addr %s162, 4
      %s164 = smul.addr %s163, 8
      %s165 = scalar_lea.vmem %s0, %s164
      %p166 = scmp.lt.s32.totalorder %s14, 1
      %s167 = scalar_select %p166, %s14, 1
      %s168 = smul.addr %s167, 2
      %s169 = smul.addr %s168, 8
      %s170 = scalar_lea.vmem %s3, %s169
      %v171 = vld [vmem:[%s165] sm:$0xff]
      %v172 = vld [vmem:[%s165 + $0x8] sm:$0xff]
      %v173 = vld [vmem:[%s165 + $0x10] sm:$0xff]
      %v174 = vld [vmem:[%s165 + $0x18] sm:$0xff]
      %v175 = vld [vmem:[%s1] sm:$0xff]
      %v176 = vld [vmem:[%s2] sm:$0xff]
      %178 = vset.pattern.permute.xlu0 0
      %179 = vperm.xlu0 %178, %v176
      %v180 = vpop.permute.xlu0 %179
      %vm182 = vcmask 130048
      %v184 = vsel %vm182, %v175, 0
      %186 = vmatpush.msra.mxu0 0.0
      %187 = vmatpush.msra.mxu0 0.0
      %188 = vmatpush.msra.mxu0 0.0
      %189 = vmatpush.msra.mxu0 0.0
      %190 = vmatpush.msra.mxu0 0.0
      %191 = vmatpush.msra.mxu0 0.0
      %192 = vmatpush.msra.mxu0 0.0
      %193 = vmatpush.msra.mxu0 0.0
      %194 = vmatpush.msra.mxu0 0.0
      %195 = vmatpush.msra.mxu0 0.0
      %196 = vmatpush.msra.mxu0 0.0
      %197 = vmatpush.msra.mxu0 0.0
      %198 = vmatpush.msra.mxu0 0.0
      %199 = vmatpush.msra.mxu0 0.0
      %200 = vmatpush.msra.mxu0 %v173
      %201 = vmatpush.msra.mxu0 %v171
      %202 = vmatmul.f32.gmra.mxu0 %v184
      %v203 = vpop.f32.mrf.mxu0
      %v204 = vadd.f32 %v180, %v203
      %205 = vdwg.mxu0
      %206 = vmatpush.msra.mxu0 0.0
      %207 = vmatpush.msra.mxu0 0.0
      %208 = vmatpush.msra.mxu0 0.0
      %209 = vmatpush.msra.mxu0 0.0
      %210 = vmatpush.msra.mxu0 0.0
      %211 = vmatpush.msra.mxu0 0.0
      %212 = vmatpush.msra.mxu0 0.0
      %213 = vmatpush.msra.mxu0 0.0
      %214 = vmatpush.msra.mxu0 0.0
      %215 = vmatpush.msra.mxu0 0.0
      %216 = vmatpush.msra.mxu0 0.0
      %217 = vmatpush.msra.mxu0 0.0
      %218 = vmatpush.msra.mxu0 0.0
      %219 = vmatpush.msra.mxu0 0.0
      %220 = vmatpush.msra.mxu0 %v174
      %221 = vmatpush.msra.mxu0 %v172
      %222 = vmatmul.f32.gmra.mxu0 %v184
      %v223 = vpop.f32.mrf.mxu0
      %v224 = vadd.f32 %v180, %v223
      %225 = vdwg.mxu0
      %v226 = vmax.f32 %v204, 0.0
      %v227 = vmax.f32 %v224, 0.0
      %228 = vst [vmem:[%s170] sm:$0xff] %v226
      %229 = vst [vmem:[%s170 + $0x8] sm:$0xff] %v227
      %p230 = scmp.lt.s32.totalorder %s14, 1
      %s231 = scalar_select %p230, %s14, 1
      %s232 = smul.addr %s231, 2
      %s233 = smul.addr %s232, 8
      %s234 = scalar_lea.vmem %s3, %s233
      // Predicated region
      $region33: #{shufflenet_cs_block.5} parent=31 // pred_check
        %p235 = pneg %p100
      $region34: #{shufflenet_cs_block.5} parent=31 // pred_check_branch
        %237 = sbr.rel (%p235) target = $region36
      $region35: #{shufflenet_cs_block.5} parent=31 // pred_region
        _
      $region36: #{shufflenet_cs_block.5} parent=31 // pred_fallthru
        _
    $region32: #{shufflenet_cs_block.5} parent=5 // pred_fallthru
      _
    %p238 = scmp.le.s32.totalorder 2, %s9
    // Predicated region
    $region37: #{shufflenet_cs_block.5} parent=5 // pred_check
      %p239 = pneg %p238
    $region38: #{shufflenet_cs_block.5} parent=5 // pred_check_branch
      %241 = sbr.rel (%p239) target = $region40
    $region39: #{shufflenet_cs_block.5} parent=5 // pred_region
      %s242 = ssub.s32 %s9, 2
      // Predicated region
      $region41: #{shufflenet_cs_block.5} parent=39 // pred_check
        %p243 = pneg %p106
      $region42: #{shufflenet_cs_block.5} parent=39 // pred_check_branch
        %245 = sbr.rel (%p243) target = $region44
      $region43: #{shufflenet_cs_block.5} parent=39 // pred_region
        %p246 = scmp.lt.s32.totalorder %s15, 1
        %s247 = scalar_select %p246, %s15, 1
        %s248 = smul.addr %s247, 2
        %s249 = smul.addr %s248, 8
        %s250 = scalar_lea.vmem %s3, %s249
      $region44: #{shufflenet_cs_block.5} parent=39 // pred_fallthru
        _
    $region40: #{shufflenet_cs_block.5} parent=5 // pred_fallthru
      _
  $region6: #{shufflenet_cs_block.5} parent=0 // loop_footer
    %s13 = sadd.s32 1, %s9
  $region7: #{shufflenet_cs_block.5} parent=0 // loop_footer_branch
    %8 = sbr.rel target = $region3
  $region8: #{shufflenet_cs_block.5} parent=0 // loop_exit
    _

// kernel: shufflenet_cs_block.4
$region0: #{shufflenet_cs_block.4}
  #allocation0 [shape = 'u32[]', space=smem, size = 0x4, offset = 0x4, fixed_abs, tag = 'smem constant byte address 0x4 - core index']
  #allocation1 [shape = 'u32[72,128]{1,0:T(1,128)}', space=vmem, size = 0x9000, scoped, tag = 'internal scratch']
  %s0 = inlined_call_operand.vmem [shape: f32[2,16,18,18], index: 0, kind: input, shape index: {}]
  %s1 = inlined_call_operand.vmem [shape: f32[9,16,1,16], index: 1, kind: input, shape index: {}]
  %s2 = inlined_call_operand.vmem [shape: f32[16,1,16], index: 2, kind: input, shape index: {}]
  %s3 = inlined_call_operand.vmem [shape: f32[2,16,16,16], index: 3, kind: output, shape index: {}]
  %s4 = sld [smem:[#allocation0]]
  $region45: #{shufflenet_cs_block.4} parent=0
    _
  %s6 = ssub.s32 1, %s4
  %s7 = scalar_select 0, %s6, %s4
  loop: start=0, step=1, limit=4
  $region2: #{shufflenet_cs_block.4} parent=0 // loop_pre_header
    _
  $region3: #{shufflenet_cs_block.4} parent=0 // loop_header
    %s9 = sphi 0, %s13
    %p10 = scmp.ge.s32.totalorder %s9, 4
    %s19 = sphi 0, %s21
    %s22 = sphi 0, %s19
    %s23 = sphi 0, %s22
    %s39 = sphi 0, %s23
    %s43 = sphi 0, %s43
    %s45 = sphi 0, %s43
    %s46 = sphi 0, %s45
    %s60 = sphi 0, %s46
    %s64 = sphi 0, %s64
    %s66 = sphi 0, %s64
    %s67 = sphi 0, %s66
    %s81 = sphi 0, %s67
    %s87 = sphi 0, %s89
    %s90 = sphi 0, %s87
    %s91 = sphi 0, %s90
    %s107 = sphi 0, %s91
  $region4: #{shufflenet_cs_block.4} parent=0 // loop_header_branch
    %12 = sbr.rel (%p10) target = $region8
  $region5: #{shufflenet_cs_block.4} parent=0 // loop_body
    %s14 = ssub.s32 %s9, 1
    %s15 = ssub.s32 %s9, 2
    %s16 = sadd.s32 %s9, 1
    %s17 = ssub.s32 %s9, %s16
    %p18 = scmp.eq.s32.totalorder %s17, 0
    %s20 = sadd.s32 %s19, 1
    %s21 = scalar_select %p18, %s19, %s20
    %p24 = pneg %p18
    %p25 = scmp.eq.s32.totalorder %s9, 1
    %p26 = por %p24, %p25
    %p27 = scmp.ne.s32.totalorder %s19, %s22
    %p28 = scmp.eq.s32.totalorder %s9, 0
    %p29 = por %p27, %p28
    %p30 = scmp.ne.s32.totalorder %s19, %s22
    %p31 = scmp.eq.s32.totalorder %s14, 1
    %p32 = por %p30, %p31
    %p33 = scmp.ne.s32.totalorder %s22, %s23
    %p34 = scmp.eq.s32.totalorder %s14, 0
    %p35 = por %p33, %p34
    %p36 = scmp.ne.s32.totalorder %s22, %s23
    %p37 = scmp.eq.s32.totalorder %s15, 1
    %p38 = por %p36, %p37
    %p40 = scmp.ne.s32.totalorder %s23, %s39
    %p41 = scmp.eq.s32.totalorder %s15, 0
    %p42 = por %p40, %p41
    %s44 = sadd.s32 %s43, 1
    %p47 = scmp.eq.s32.totalorder %s9, 1
    %p48 = scmp.ne.s32.totalorder %s43, %s45
    %p49 = scmp.eq.s32.totalorder %s9, 0
    %p50 = por %p48, %p49
    %p51 = scmp.ne.s32.totalorder %s43, %s45
    %p52 = scmp.eq.s32.totalorder %s14, 1
    %p53 = por %p51, %p52
    %p54 = scmp.ne.s32.totalorder %s45, %s46
    %p55 = scmp.eq.s32.totalorder %s14, 0
    %p56 = por %p54, %p55
    %p57 = scmp.ne.s32.totalorder %s45, %s46
    %p58 = scmp.eq.s32.totalorder %s15, 1
    %p59 = por %p57, %p58
    %p61 = scmp.ne.s32.totalorder %s46, %s60
    %p62 = scmp.eq.s32.totalorder %s15, 0
    %p63 = por %p61, %p62
    %s65 = sadd.s32 %s64, 1
    %p68 = scmp.eq.s32.totalorder %s9, 1
    %p69 = scmp.ne.s32.totalorder %s64, %s66
    %p70 = scmp.eq.s32.totalorder %s9, 0
    %p71 = por %p69, %p70
    %p72 = scmp.ne.s32.totalorder %s64, %s66
    %p73 = scmp.eq.s32.totalorder %s14, 1
    %p74 = por %p72, %p73
    %p75 = scmp.ne.s32.totalorder %s66, %s67
    %p76 = scmp.eq.s32.totalorder %s14, 0
    %p77 = por %p75, %p76
    %p78 = scmp.ne.s32.totalorder %s66, %s67
    %p79 = scmp.eq.s32.totalorder %s15, 1
    %p80 = por %p78, %p79
    %p82 = scmp.ne.s32.totalorder %s67, %s81
    %p83 = scmp.eq.s32.totalorder %s15, 0
    %p84 = por %p82, %p83
    %s85 = ssub.s32 %s9, %s16
    %p86 = scmp.eq.s32.totalorder %s85, 0
    %s88 = sadd.s32 %s87, 1
    %s89 = scalar_select %p86, %s87, %s88
    %p92 = pneg %p86
    %p93 = scmp.eq.s32.totalorder %s9, 1
    %p94 = por %p92, %p93
    %p95 = scmp.ne.s32.totalorder %s87, %s90
    %p96 = scmp.eq.s32.totalorder %s9, 0
    %p97 = por %p95, %p96
    %p98 = scmp.ne.s32.totalorder %s87, %s90
    %p99 = scmp.eq.s32.totalorder %s14, 1
    %p100 = por %p98, %p99
    %p101 = scmp.ne.s32.totalorder %s90, %s91
    %p102 = scmp.eq.s32.totalorder %s14, 0
    %p103 = por %p101, %p102
    %p104 = scmp.ne.s32.totalorder %s90, %s91
    %p105 = scmp.eq.s32.totalorder %s15, 1
    %p106 = por %p104, %p105
    %p108 = scmp.ne.s32.totalorder %s91, %s107
    %p109 = scmp.eq.s32.totalorder %s15, 0
    %p110 = por %p108, %p109
    %p111 = scmp.le.s32.totalorder 1, %s9
    %p112 = scmp.lt.s32.totalorder %s9, 3
    %p113 = pnand %p111, %p112
    %p114 = pneg %p113
    // Predicated region
    $region9: #{shufflenet_cs_block.4} parent=5 // pred_check
      _
    $region10: #{shufflenet_cs_block.4} parent=5 // pred_check_branch
      %116 = sbr.rel (%p113) target = $region12
    $region11: #{shufflenet_cs_block.4} parent=5 // pred_region
      %s117 = ssub.s32 %s9, 1
      // Predicated region
      $region13: #{shufflenet_cs_block.4} parent=11 // pred_check
        %p118 = pneg %p56
      $region14: #{shufflenet_cs_block.4} parent=11 // pred_check_branch
        %120 = sbr.rel (%p118) target = $region16
      $region15: #{shufflenet_cs_block.4} parent=11 // pred_region
        _
      $region16: #{shufflenet_cs_block.4} parent=11 // pred_fallthru
        _
      // Predicated region
      $region17: #{shufflenet_cs_block.4} parent=11 // pred_check
        %p121 = pneg %p77
      $region18: #{shufflenet_cs_block.4} parent=11 // pred_check_branch
        %123 = sbr.rel (%p121) target = $region20
      $region19: #{shufflenet_cs_block.4} parent=11 // pred_region
        _
      $region20: #{shufflenet_cs_block.4} parent=11 // pred_fallthru
        _
    $region12: #{shufflenet_cs_block.4} parent=5 // pred_fallthru
      _
    %p124 = scmp.lt.s32.totalorder %s9, 2
    // Predicated region
    $region21: #{shufflenet_cs_block.4} parent=5 // pred_check
      %p125 = pneg %p124
    $region22: #{shufflenet_cs_block.4} parent=5 // pred_check_branch
      %127 = sbr.rel (%p125) target = $region24
    $region23: #{shufflenet_cs_block.4} parent=5 // pred_region
      // Predicated region
      $region25: #{shufflenet_cs_block.4} parent=23 // pred_check
        %p128 = pneg %p29
      $region26: #{shufflenet_cs_block.4} parent=23 // pred_check_branch
        %130 = sbr.rel (%p128) target = $region28
      $region27: #{shufflenet_cs_block.4} parent=23 // pred_region
        %p131 = scmp.lt.s32.totalorder %s9, 1
        %s132 = scalar_select %p131, %s9, 1
        %s133 = smul.addr %s132, 48
        %s134 = smul.addr %s133, 8
        %s135 = scalar_lea.vmem %s0, %s134
      $region28: #{shufflenet_cs_block.4} parent=23 // pred_fallthru
        _
    $region24: #{shufflenet_cs_block.4} parent=5 // pred_fallthru
      _
    %p136 = scmp.le.s32.totalorder 1, %s9
    %p137 = scmp.lt.s32.totalorder %s9, 3
    %p138 = pnand %p136, %p137
    %p139 = pneg %p138
    // Predicated region
    $region29: #{shufflenet_cs_block.4} parent=5 // pred_check
      _
    $region30: #{shufflenet_cs_block.4} parent=5 // pred_check_branch
      %141 = sbr.rel (%p138) target = $region32
    $region31: #{shufflenet_cs_block.4} parent=5 // pred_region
      %s142 = ssub.s32 %s9, 1
      %p143 = scmp.lt.s32.totalorder %s14, 1
      %s144 = scalar_select %p143, %s14, 1
      %s145 = smul.addr %s144, 48
      %s146 = smul.addr %s145, 8
      %s147 = scalar_lea.vmem %s0, %s146
      %p148 = pneg %p35
      %p149 = pneg %p32
      %p150 = pneg %p56
      %p151 = pneg %p53
      %p152 = pneg %p77
      %p153 = pneg %p74
      %p154 = pneg %p103
      %p155 = pneg %p100
      %p156 = scmp.lt.s32.totalorder %s14, 1
      %s157 = scalar_select %p156, %s14, 1
      %s158 = smul.addr %s157, 32
      %s159 = smul.addr %s158, 8
      %s160 = scalar_lea.vmem %s3, %s159
      %p161 = scmp.lt.s32.totalorder %s14, 1
      %s162 = scalar_select %p161, %s14, 1
      %s163 = smul.addr %s162, 48
      %s164 = smul.addr %s163, 8
      %s165 = scalar_lea.vmem %s0, %s164
      %p166 = scmp.lt.s32.totalorder %s14, 1
      %s167 = scalar_select %p166, %s14, 1
      %s168 = smul.addr %s167, 32
      %s169 = smul.addr %s168, 8
      %s170 = scalar_lea.vmem %s3, %s169
      %v171 = vld [vmem:[%s165] sm:$0xff]
      %v172 = vld [vmem:[%s165 + $0x8] sm:$0xff]
      %v173 = vld [vmem:[%s165 + $0x10] sm:$0x3]
      %v174 = vld [vmem:[%s165 + $0x18] sm:$0xff]
      %v175 = vld [vmem:[%s165 + $0x20] sm:$0xff]
      %v176 = vld [vmem:[%s165 + $0x28] sm:$0x3]
      %v177 = vld [vmem:[%s165 + $0x30] sm:$0xff]
      %v178 = vld [vmem:[%s165 + $0x38] sm:$0xff]
      %v179 = vld [vmem:[%s165 + $0x40] sm:$0x3]
      %v180 = vld [vmem:[%s165 + $0x48] sm:$0xff]
      %v181 = vld [vmem:[%s165 + $0x50] sm:$0xff]
      %v182 = vld [vmem:[%s165 + $0x58] sm:$0x3]
      %v183 = vld [vmem:[%s165 + $0x60] sm:$0xff]
      %v184 = vld [vmem:[%s165 + $0x68] sm:$0xff]
      %v185 = vld [vmem:[%s165 + $0x70] sm:$0x3]
      %v186 = vld [vmem:[%s165 + $0x78] sm:$0xff]
      %v187 = vld [vmem:[%s165 + $0x80] sm:$0xff]
      %v188 = vld [vmem:[%s165 + $0x88] sm:$0x3]
      %v189 = vld [vmem:[%s165 + $0x90] sm:$0xff]
      %v190 = vld [vmem:[%s165 + $0x98] sm:$0xff]
      %v191 = vld [vmem:[%s165 + $0xa0] sm:$0x3]
      %v192 = vld [vmem:[%s165 + $0xa8] sm:$0xff]
      %v193 = vld [vmem:[%s165 + $0xb0] sm:$0xff]
      %v194 = vld [vmem:[%s165 + $0xb8] sm:$0x3]
      %v195 = vld [vmem:[%s165 + $0xc0] sm:$0xff]
      %v196 = vld [vmem:[%s165 + $0xc8] sm:$0xff]
      %v197 = vld [vmem:[%s165 + $0xd0] sm:$0x3]
      %v198 = vld [vmem:[%s165 + $0xd8] sm:$0xff]
      %v199 = vld [vmem:[%s165 + $0xe0] sm:$0xff]
      %v200 = vld [vmem:[%s165 + $0xe8] sm:$0x3]
      %v201 = vld [vmem:[%s165 + $0xf0] sm:$0xff]
      %v202 = vld [vmem:[%s165 + $0xf8] sm:$0xff]
      %v203 = vld [vmem:[%s165 + $0x100] sm:$0x3]
      %v204 = vld [vmem:[%s165 + $0x108] sm:$0xff]
      %v205 = vld [vmem:[%s165 + $0x110] sm:$0xff]
      %v206 = vld [vmem:[%s165 + $0x118] sm:$0x3]
      %v207 = vld [vmem:[%s165 + $0x120] sm:$0xff]
      %v208 = vld [vmem:[%s165 + $0x128] sm:$0xff]
      %v209 = vld [vmem:[%s165 + $0x130] sm:$0x3]
      %v210 = vld [vmem:[%s165 + $0x138] sm:$0xff]
      %v211 = vld [vmem:[%s165 + $0x140] sm:$0xff]
      %v212 = vld [vmem:[%s165 + $0x148] sm:$0x3]
      %v213 = vld [vmem:[%s165 + $0x150] sm:$0xff]
      %v214 = vld [vmem:[%s165 + $0x158] sm:$0xff]
      %v215 = vld [vmem:[%s165 + $0x160] sm:$0x3]
      %v216 = vld [vmem:[%s165 + $0x168] sm:$0xff]
      %v217 = vld [vmem:[%s165 + $0x170] sm:$0xff]
      %v218 = vld [vmem:[%s165 + $0x178] sm:$0x3]
      %v219 = vld [vmem:[%s1] sm:$0x1]
      %v220 = vld [vmem:[%s1 + $0x1] sm:$0x1]
      %v221 = vld [vmem:[%s1 + $0x2] sm:$0x1]
      %v222 = vld [vmem:[%s1 + $0x3] sm:$0x1]
      %v223 = vld [vmem:[%s1 + $0x4] sm:$0x1]
      %v224 = vld [vmem:[%s1 + $0x5] sm:$0x1]
      %v225 = vld [vmem:[%s1 + $0x6] sm:$0x1]
      %v226 = vld [vmem:[%s1 + $0x7] sm:$0x1]
      %v227 = vld [vmem:[%s1 + $0x8] sm:$0x1]
      %v228 = vld [vmem:[%s1 + $0x9] sm:$0x1]
      %v229 = vld [vmem:[%s1 + $0xa] sm:$0x1]
      %v230 = vld [vmem:[%s1 + $0xb] sm:$0x1]
      %v231 = vld [vmem:[%s1 + $0xc] sm:$0x1]
      %v232 = vld [vmem:[%s1 + $0xd] sm:$0x1]
      %v233 = vld [vmem:[%s1 + $0xe] sm:$0x1]
      %v234 = vld [vmem:[%s1 + $0xf] sm:$0x1]
      %v251 = vperm.slane %v219, 0
      %v252 = vperm.slane %v220, 0
      %v253 = vperm.slane %v221, 0
      %v254 = vperm.slane %v222, 0
      %v255 = vperm.slane %v223, 0
      %v256 = vperm.slane %v224, 0
      %v257 = vperm.slane %v225, 0
      %v258 = vperm.slane %v226, 0
      %v259 = vperm.slane %v227, 0
      %v260 = vperm.slane %v228, 0
      %v261 = vperm.slane %v229, 0
      %v262 = vperm.slane %v230, 0
      %v263 = vperm.slane %v231, 0
      %v264 = vperm.slane %v232, 0
      %v265 = vperm.slane %v233, 0
      %v266 = vperm.slane %v234, 0
      %v283 = vmul.f32 %v171, %v251
      %v284 = vmul.f32 %v172, %v251
      %v285 = vmul.f32 %v174, %v252
      %v286 = vmul.f32 %v175, %v252
      %v287 = vmul.f32 %v177, %v253
      %v288 = vmul.f32 %v178, %v253
      %v289 = vmul.f32 %v180, %v254
      %v290 = vmul.f32 %v181, %v254
      %v291 = vmul.f32 %v183, %v255
      %v292 = vmul.f32 %v184, %v255
      %v293 = vmul.f32 %v186, %v256
      %v294 = vmul.f32 %v187, %v256
      %v295 = vmul.f32 %v189, %v257
      %v296 = vmul.f32 %v190, %v257
      %v297 = vmul.f32 %v192, %v258
      %v298 = vmul.f32 %v193, %v258
      %v299 = vmul.f32 %v195, %v259
      %v300 = vmul.f32 %v196, %v259
      %v301 = vmul.f32 %v198, %v260
      %v302 = vmul.f32 %v199, %v260
      %v303 = vmul.f32 %v201, %v261
      %v304 = vmul.f32 %v202, %v261
      %v305 = vmul.f32 %v204, %v262
      %v306 = vmul.f32 %v205, %v262
      %v307 = vmul.f32 %v207, %v263
      %v308 = vmul.f32 %v208, %v263
      %v309 = vmul.f32 %v210, %v264
      %v310 = vmul.f32 %v211, %v264
      %v311 = vmul.f32 %v213, %v265
      %v312 = vmul.f32 %v214, %v265
      %v313 = vmul.f32 %v216, %v266
      %v314 = vmul.f32 %v217, %v266
      %v315 = vadd.f32 %v283, 0.0
      %v316 = vadd.f32 %v284, 0.0
      %v317 = vadd.f32 %v285, 0.0
      %v318 = vadd.f32 %v286, 0.0
      %v319 = vadd.f32 %v287, 0.0
      %v320 = vadd.f32 %v288, 0.0
      %v321 = vadd.f32 %v289, 0.0
      %v322 = vadd.f32 %v290, 0.0
      %v323 = vadd.f32 %v291, 0.0
      %v324 = vadd.f32 %v292, 0.0
      %v325 = vadd.f32 %v293, 0.0
      %v326 = vadd.f32 %v294, 0.0
      %v327 = vadd.f32 %v295, 0.0
      %v328 = vadd.f32 %v296, 0.0
      %v329 = vadd.f32 %v297, 0.0
      %v330 = vadd.f32 %v298, 0.0
      %v331 = vadd.f32 %v299, 0.0
      %v332 = vadd.f32 %v300, 0.0
      %v333 = vadd.f32 %v301, 0.0
      %v334 = vadd.f32 %v302, 0.0
      %v335 = vadd.f32 %v303, 0.0
      %v336 = vadd.f32 %v304, 0.0
      %v337 = vadd.f32 %v305, 0.0
      %v338 = vadd.f32 %v306, 0.0
      %v339 = vadd.f32 %v307, 0.0
      %v340 = vadd.f32 %v308, 0.0
      %v341 = vadd.f32 %v309, 0.0
      %v342 = vadd.f32 %v310, 0.0
      %v343 = vadd.f32 %v311, 0.0
      %v344 = vadd.f32 %v312, 0.0
      %v345 = vadd.f32 %v313, 0.0
      %v346 = vadd.f32 %v314, 0.0
      %s347 = scalar_lea.vmem %s1, 16
      %v348 = vld [vmem:[%s347] sm:$0x1]
      %v349 = vld [vmem:[%s347 + $0x1] sm:$0x1]
      %v350 = vld [vmem:[%s347 + $0x2] sm:$0x1]
      %v351 = vld [vmem:[%s347 + $0x3] sm:$0x1]
      %v352 = vld [vmem:[%s347 + $0x4] sm:$0x1]
      %v353 = vld [vmem:[%s347 + $0x5] sm:$0x1]
      %v354 = vld [vmem:[%s347 + $0x6] sm:$0x1]
      %v355 = vld [vmem:[%s347 + $0x7] sm:$0x1]
      %v356 = vld [vmem:[%s347 + $0x8] sm:$0x1]
      %v357 = vld [vmem:[%s347 + $0x9] sm:$0x1]
      %v358 = vld [vmem:[%s347 + $0xa] sm:$0x1]
      %v359 = vld [vmem:[%s347 + $0xb] sm:$0x1]
      %v360 = vld [vmem:[%s347 + $0xc] sm:$0x1]
      %v361 = vld [vmem:[%s347 + $0xd] sm:$0x1]
      %v362 = vld [vmem:[%s347 + $0xe] sm:$0x1]
      %v363 = vld [vmem:[%s347 + $0xf] sm:$0x1]
      %v380 = vperm.slane %v348, 0
      %v381 = vperm.slane %v349, 0
      %v382 = vperm.slane %v350, 0
      %v383 = vperm.slane %v351, 0
      %v384 = vperm.slane %v352, 0
      %v385 = vperm.slane %v353, 0
      %v386 = vperm.slane %v354, 0
      %v387 = vperm.slane %v355, 0
      %v388 = vperm.slane %v356, 0
      %v389 = vperm.slane %v357, 0
      %v390 = vperm.slane %v358, 0
      %v391 = vperm.slane %v359, 0
      %v392 = vperm.slane %v360, 0
      %v393 = vperm.slane %v361, 0
      %v394 = vperm.slane %v362, 0
      %v395 = vperm.slane %v363, 0
      %396 = vrot.lane.b32.xlu0 %v380, 1
      %v397 = vpop.permute.xlu0 %396
      %398 = vrot.lane.b32.xlu0 %v381, 1
      %v399 = vpop.permute.xlu0 %398
      %400 = vrot.lane.b32.xlu0 %v382, 1
      %v401 = vpop.permute.xlu0 %400
      %402 = vrot.lane.b32.xlu0 %v383, 1
      %v403 = vpop.permute.xlu0 %402
      %404 = vrot.lane.b32.xlu0 %v384, 1
      %v405 = vpop.permute.xlu0 %404
      %406 = vrot.lane.b32.xlu0 %v385, 1
      %v407 = vpop.permute.xlu0 %406
      %408 = vrot.lane.b32.xlu0 %v386, 1
      %v409 = vpop.permute.xlu0 %408
      %410 = vrot.lane.b32.xlu0 %v387, 1
      %v411 = vpop.permute.xlu0 %410
      %412 = vrot.lane.b32.xlu0 %v388, 1
      %v413 = vpop.permute.xlu0 %412
      %414 = vrot.lane.b32.xlu0 %v389, 1
      %v415 = vpop.permute.xlu0 %414
      %416 = vrot.lane.b32.xlu0 %v390, 1
      %v417 = vpop.permute.xlu0 %416
      %418 = vrot.lane.b32.xlu0 %v391, 1
      %v419 = vpop.permute.xlu0 %418
      %420 = vrot.lane.b32.xlu0 %v392, 1
      %v421 = vpop.permute.xlu0 %420
      %422 = vrot.lane.b32.xlu0 %v393, 1
      %v423 = vpop.permute.xlu0 %422
      %424 = vrot.lane.b32.xlu0 %v394, 1
      %v425 = vpop.permute.xlu0 %424
      %426 = vrot.lane.b32.xlu0 %v395, 1
      %v427 = vpop.permute.xlu0 %426
      %v444 = vmul.f32 %v171, %v397
      %v445 = vmul.f32 %v172, %v397
      %v446 = vmul.f32 %v174, %v399
      %v447 = vmul.f32 %v175, %v399
      %v448 = vmul.f32 %v177, %v401
      %v449 = vmul.f32 %v178, %v401
      %v450 = vmul.f32 %v180, %v403
      %v451 = vmul.f32 %v181, %v403
      %v452 = vmul.f32 %v183, %v405
      %v453 = vmul.f32 %v184, %v405
      %v454 = vmul.f32 %v186, %v407
      %v455 = vmul.f32 %v187, %v407
      %v456 = vmul.f32 %v189, %v409
      %v457 = vmul.f32 %v190, %v409
      %v458 = vmul.f32 %v192, %v411
      %v459 = vmul.f32 %v193, %v411
      %v460 = vmul.f32 %v195, %v413
      %v461 = vmul.f32 %v196, %v413
      %v462 = vmul.f32 %v198, %v415
      %v463 = vmul.f32 %v199, %v415
      %v464 = vmul.f32 %v201, %v417
      %v465 = vmul.f32 %v202, %v417
      %v466 = vmul.f32 %v204, %v419
      %v467 = vmul.f32 %v205, %v419
      %v468 = vmul.f32 %v207, %v421
      %v469 = vmul.f32 %v208, %v421
      %v470 = vmul.f32 %v210, %v423
      %v471 = vmul.f32 %v211, %v423
      %v472 = vmul.f32 %v213, %v425
      %v473 = vmul.f32 %v214, %v425
      %v474 = vmul.f32 %v216, %v427
      %v475 = vmul.f32 %v217, %v427
      %508 = vrot.lane.b32.xlu0 %v444, 127
      %v509 = vpop.permute.xlu0 %508
      %510 = vrot.lane.b32.xlu0 %v445, 127
      %v511 = vpop.permute.xlu0 %510
      %512 = vrot.lane.b32.xlu0 %v446, 127
      %v513 = vpop.permute.xlu0 %512
      %514 = vrot.lane.b32.xlu0 %v447, 127
      %v515 = vpop.permute.xlu0 %514
      %516 = vrot.lane.b32.xlu0 %v448, 127
      %v517 = vpop.permute.xlu0 %516
      %518 = vrot.lane.b32.xlu0 %v449, 127
      %v519 = vpop.permute.xlu0 %518
      %520 = vrot.lane.b32.xlu0 %v450, 127
      %v521 = vpop.permute.xlu0 %520
      %522 = vrot.lane.b32.xlu0 %v451, 127
      %v523 = vpop.permute.xlu0 %522
      %524 = vrot.lane.b32.xlu0 %v452, 127
      %v525 = vpop.permute.xlu0 %524
      %526 = vrot.lane.b32.xlu0 %v453, 127
      %v527 = vpop.permute.xlu0 %526
      %528 = vrot.lane.b32.xlu0 %v454, 127
      %v529 = vpop.permute.xlu0 %528
      %530 = vrot.lane.b32.xlu0 %v455, 127
      %v531 = vpop.permute.xlu0 %530
      %532 = vrot.lane.b32.xlu0 %v456, 127
      %v533 = vpop.permute.xlu0 %532
      %534 = vrot.lane.b32.xlu0 %v457, 127
      %v535 = vpop.permute.xlu0 %534
      %536 = vrot.lane.b32.xlu0 %v458, 127
      %v537 = vpop.permute.xlu0 %536
      %538 = vrot.lane.b32.xlu0 %v459, 127
      %v539 = vpop.permute.xlu0 %538
      %540 = vrot.lane.b32.xlu0 %v460, 127
      %v541 = vpop.permute.xlu0 %540
      %542 = vrot.lane.b32.xlu0 %v461, 127
      %v543 = vpop.permute.xlu0 %542
      %544 = vrot.lane.b32.xlu0 %v462, 127
      %v545 = vpop.permute.xlu0 %544
      %546 = vrot.lane.b32.xlu0 %v463, 127
      %v547 = vpop.permute.xlu0 %546
      %548 = vrot.lane.b32.xlu0 %v464, 127
      %v549 = vpop.permute.xlu0 %548
      %550 = vrot.lane.b32.xlu0 %v465, 127
      %v551 = vpop.permute.xlu0 %550
      %552 = vrot.lane.b32.xlu0 %v466, 127
      %v553 = vpop.permute.xlu0 %552
      %554 = vrot.lane.b32.xlu0 %v467, 127
      %v555 = vpop.permute.xlu0 %554
      %556 = vrot.lane.b32.xlu0 %v468, 127
      %v557 = vpop.permute.xlu0 %556
      %558 = vrot.lane.b32.xlu0 %v469, 127
      %v559 = vpop.permute.xlu0 %558
      %560 = vrot.lane.b32.xlu0 %v470, 127
      %v561 = vpop.permute.xlu0 %560
      %562 = vrot.lane.b32.xlu0 %v471, 127
      %v563 = vpop.permute.xlu0 %562
      %564 = vrot.lane.b32.xlu0 %v472, 127
      %v565 = vpop.permute.xlu0 %564
      %566 = vrot.lane.b32.xlu0 %v473, 127
      %v567 = vpop.permute.xlu0 %566
      %568 = vrot.lane.b32.xlu0 %v474, 127
      %v569 = vpop.permute.xlu0 %568
      %570 = vrot.lane.b32.xlu0 %v475, 127
      %v571 = vpop.permute.xlu0 %570
      %v604 = vadd.f32 %v315, %v509
      %v605 = vadd.f32 %v316, %v511
      %v606 = vadd.f32 %v317, %v513
      %v607 = vadd.f32 %v318, %v515
      %v608 = vadd.f32 %v319, %v517
      %v609 = vadd.f32 %v320, %v519
      %v610 = vadd.f32 %v321, %v521
      %v611 = vadd.f32 %v322, %v523
      %v612 = vadd.f32 %v323, %v525
      %v613 = vadd.f32 %v324, %v527
      %v614 = vadd.f32 %v325, %v529
      %v615 = vadd.f32 %v326, %v531
      %v616 = vadd.f32 %v327, %v533
      %v617 = vadd.f32 %v328, %v535
      %v618 = vadd.f32 %v329, %v537
      %v619 = vadd.f32 %v330, %v539
      %v620 = vadd.f32 %v331, %v541
      %v621 = vadd.f32 %v332, %v543
      %v622 = vadd.f32 %v333, %v545
      %v623 = vadd.f32 %v334, %v547
      %v624 = vadd.f32 %v335, %v549
      %v625 = vadd.f32 %v336, %v551
      %v626 = vadd.f32 %v337, %v553
      %v627 = vadd.f32 %v338, %v555
      %v628 = vadd.f32 %v339, %v557
      %v629 = vadd.f32 %v340, %v559
      %v630 = vadd.f32 %v341, %v561
      %v631 = vadd.f32 %v342, %v563
      %v632 = vadd.f32 %v343, %v565
      %v633 = vadd.f32 %v344, %v567
      %v634 = vadd.f32 %v345, %v569
      %v635 = vadd.f32 %v346, %v571
      %s636 = scalar_lea.vmem %s1, 32
      %v637 = vld [vmem:[%s636] sm:$0x1]
      %v638 = vld [vmem:[%s636 + $0x1] sm:$0x1]
      %v639 = vld [vmem:[%s636 + $0x2] sm:$0x1]
      %v640 = vld [vmem:[%s636 + $0x3] sm:$0x1]
      %v641 = vld [vmem:[%s636 + $0x4] sm:$0x1]
      %v642 = vld [vmem:[%s636 + $0x5] sm:$0x1]
      %v643 = vld [vmem:[%s636 + $0x6] sm:$0x1]
      %v644 = vld [vmem:[%s636 + $0x7] sm:$0x1]
      %v645 = vld [vmem:[%s636 + $0x8] sm:$0x1]
      %v646 = vld [vmem:[%s636 + $0x9] sm:$0x1]
      %v647 = vld [vmem:[%s636 + $0xa] sm:$0x1]
      %v648 = vld [vmem:[%s636 + $0xb] sm:$0x1]
      %v649 = vld [vmem:[%s636 + $0xc] sm:$0x1]
      %v650 = vld [vmem:[%s636 + $0xd] sm:$0x1]
      %v651 = vld [vmem:[%s636 + $0xe] sm:$0x1]
      %v652 = vld [vmem:[%s636 + $0xf] sm:$0x1]
      %v669 = vperm.slane %v637, 0
      %v670 = vperm.slane %v638, 0
      %v671 = vperm.slane %v639, 0
      %v672 = vperm.slane %v640, 0
      %v673 = vperm.slane %v641, 0
      %v674 = vperm.slane %v642, 0
      %v675 = vperm.slane %v643, 0
      %v676 = vperm.slane %v644, 0
      %v677 = vperm.slane %v645, 0
      %v678 = vperm.slane %v646, 0
      %v679 = vperm.slane %v647, 0
      %v680 = vperm.slane %v648, 0
      %v681 = vperm.slane %v649, 0
      %v682 = vperm.slane %v650, 0
      %v683 = vperm.slane %v651, 0
      %v684 = vperm.slane %v652, 0
      %685 = vrot.lane.b32.xlu0 %v669, 2
      %v686 = vpop.permute.xlu0 %685
      %687 = vrot.lane.b32.xlu0 %v670, 2
      %v688 = vpop.permute.xlu0 %687
      %689 = vrot.lane.b32.xlu0 %v671, 2
      %v690 = vpop.permute.xlu0 %689
      %691 = vrot.lane.b32.xlu0 %v672, 2
      %v692 = vpop.permute.xlu0 %691
      %693 = vrot.lane.b32.xlu0 %v673, 2
      %v694 = vpop.permute.xlu0 %693
      %695 = vrot.lane.b32.xlu0 %v674, 2
      %v696 = vpop.permute.xlu0 %695
      %697 = vrot.lane.b32.xlu0 %v675, 2
      %v698 = vpop.permute.xlu0 %697
      %699 = vrot.lane.b32.xlu0 %v676, 2
      %v700 = vpop.permute.xlu0 %699
      %701 = vrot.lane.b32.xlu0 %v677, 2
      %v702 = vpop.permute.xlu0 %701
      %703 = vrot.lane.b32.xlu0 %v678, 2
      %v704 = vpop.permute.xlu0 %703
      %705 = vrot.lane.b32.xlu0 %v679, 2
      %v706 = vpop.permute.xlu0 %705
      %707 = vrot.lane.b32.xlu0 %v680, 2
      %v708 = vpop.permute.xlu0 %707
      %709 = vrot.lane.b32.xlu0 %v681, 2
      %v710 = vpop.permute.xlu0 %709
      %711 = vrot.lane.b32.xlu0 %v682, 2
      %v712 = vpop.permute.xlu0 %711
      %713 = vrot.lane.b32.xlu0 %v683, 2
      %v714 = vpop.permute.xlu0 %713
      %715 = vrot.lane.b32.xlu0 %v684, 2
      %v716 = vpop.permute.xlu0 %715
      %v733 = vmul.f32 %v171, %v686
      %v734 = vmul.f32 %v172, %v686
      %v735 = vmul.f32 %v174, %v688
      %v736 = vmul.f32 %v175, %v688
      %v737 = vmul.f32 %v177, %v690
      %v738 = vmul.f32 %v178, %v690
      %v739 = vmul.f32 %v180, %v692
      %v740 = vmul.f32 %v181, %v692
      %v741 = vmul.f32 %v183, %v694
      %v742 = vmul.f32 %v184, %v694
      %v743 = vmul.f32 %v186, %v696
      %v744 = vmul.f32 %v187, %v696
      %v745 = vmul.f32 %v189, %v698
      %v746 = vmul.f32 %v190, %v698
      %v747 = vmul.f32 %v192, %v700
      %v748 = vmul.f32 %v193, %v700
      %v749 = vmul.f32 %v195, %v702
      %v750 = vmul.f32 %v196, %v702
      %v751 = vmul.f32 %v198, %v704
      %v752 = vmul.f32 %v199, %v704
      %v753 = vmul.f32 %v201, %v706
      %v754 = vmul.f32 %v202, %v706
      %v755 = vmul.f32 %v204, %v708
      %v756 = vmul.f32 %v205, %v708
      %v757 = vmul.f32 %v207, %v710
      %v758 = vmul.f32 %v208, %v710
      %v759 = vmul.f32 %v210, %v712
      %v760 = vmul.f32 %v211, %v712
      %v761 = vmul.f32 %v213, %v714
      %v762 = vmul.f32 %v214, %v714
      %v763 = vmul.f32 %v216, %v716
      %v764 = vmul.f32 %v217, %v716
      %797 = vrot.lane.b32.xlu0 %v733, 126
      %v798 = vpop.permute.xlu0 %797
      %799 = vrot.lane.b32.xlu0 %v734, 126
      %v800 = vpop.permute.xlu0 %799
      %801 = vrot.lane.b32.xlu0 %v735, 126
      %v802 = vpop.permute.xlu0 %801
      %803 = vrot.lane.b32.xlu0 %v736, 126
      %v804 = vpop.permute.xlu0 %803
      %805 = vrot.lane.b32.xlu0 %v737, 126
      %v806 = vpop.permute.xlu0 %805
      %807 = vrot.lane.b32.xlu0 %v738, 126
      %v808 = vpop.permute.xlu0 %807
      %809 = vrot.lane.b32.xlu0 %v739, 126
      %v810 = vpop.permute.xlu0 %809
      %811 = vrot.lane.b32.xlu0 %v740, 126
      %v812 = vpop.permute.xlu0 %811
      %813 = vrot.lane.b32.xlu0 %v741, 126
      %v814 = vpop.permute.xlu0 %813
      %815 = vrot.lane.b32.xlu0 %v742, 126
      %v816 = vpop.permute.xlu0 %815
      %817 = vrot.lane.b32.xlu0 %v743, 126
      %v818 = vpop.permute.xlu0 %817
      %819 = vrot.lane.b32.xlu0 %v744, 126
      %v820 = vpop.permute.xlu0 %819
      %821 = vrot.lane.b32.xlu0 %v745, 126
      %v822 = vpop.permute.xlu0 %821
      %823 = vrot.lane.b32.xlu0 %v746, 126
      %v824 = vpop.permute.xlu0 %823
      %825 = vrot.lane.b32.xlu0 %v747, 126
      %v826 = vpop.permute.xlu0 %825
      %827 = vrot.lane.b32.xlu0 %v748, 126
      %v828 = vpop.permute.xlu0 %827
      %829 = vrot.lane.b32.xlu0 %v749, 126
      %v830 = vpop.permute.xlu0 %829
      %831 = vrot.lane.b32.xlu0 %v750, 126
      %v832 = vpop.permute.xlu0 %831
      %833 = vrot.lane.b32.xlu0 %v751, 126
      %v834 = vpop.permute.xlu0 %833
      %835 = vrot.lane.b32.xlu0 %v752, 126
      %v836 = vpop.permute.xlu0 %835
      %837 = vrot.lane.b32.xlu0 %v753, 126
      %v838 = vpop.permute.xlu0 %837
      %839 = vrot.lane.b32.xlu0 %v754, 126
      %v840 = vpop.permute.xlu0 %839
      %841 = vrot.lane.b32.xlu0 %v755, 126
      %v842 = vpop.permute.xlu0 %841
      %843 = vrot.lane.b32.xlu0 %v756, 126
      %v844 = vpop.permute.xlu0 %843
      %845 = vrot.lane.b32.xlu0 %v757, 126
      %v846 = vpop.permute.xlu0 %845
      %847 = vrot.lane.b32.xlu0 %v758, 126
      %v848 = vpop.permute.xlu0 %847
      %849 = vrot.lane.b32.xlu0 %v759, 126
      %v850 = vpop.permute.xlu0 %849
      %851 = vrot.lane.b32.xlu0 %v760, 126
      %v852 = vpop.permute.xlu0 %851
      %853 = vrot.lane.b32.xlu0 %v761, 126
      %v854 = vpop.permute.xlu0 %853
      %855 = vrot.lane.b32.xlu0 %v762, 126
      %v856 = vpop.permute.xlu0 %855
      %857 = vrot.lane.b32.xlu0 %v763, 126
      %v858 = vpop.permute.xlu0 %857
      %859 = vrot.lane.b32.xlu0 %v764, 126
      %v860 = vpop.permute.xlu0 %859
      %v893 = vadd.f32 %v604, %v798
      %v894 = vadd.f32 %v605, %v800
      %v895 = vadd.f32 %v606, %v802
      %v896 = vadd.f32 %v607, %v804
      %v897 = vadd.f32 %v608, %v806
      %v898 = vadd.f32 %v609, %v808
      %v899 = vadd.f32 %v610, %v810
      %v900 = vadd.f32 %v611, %v812
      %v901 = vadd.f32 %v612, %v814
      %v902 = vadd.f32 %v613, %v816
      %v903 = vadd.f32 %v614, %v818
      %v904 = vadd.f32 %v615, %v820
      %v905 = vadd.f32 %v616, %v822
      %v906 = vadd.f32 %v617, %v824
      %v907 = vadd.f32 %v618, %v826
      %v908 = vadd.f32 %v619, %v828
      %v909 = vadd.f32 %v620, %v830
      %v910 = vadd.f32 %v621, %v832
      %v911 = vadd.f32 %v622, %v834
      %v912 = vadd.f32 %v623, %v836
      %v913 = vadd.f32 %v624, %v838
      %v914 = vadd.f32 %v625, %v840
      %v915 = vadd.f32 %v626, %v842
      %v916 = vadd.f32 %v627, %v844
      %v917 = vadd.f32 %v628, %v846
      %v918 = vadd.f32 %v629, %v848
      %v919 = vadd.f32 %v630, %v850
      %v920 = vadd.f32 %v631, %v852
      %v921 = vadd.f32 %v632, %v854
      %v922 = vadd.f32 %v633, %v856
      %v923 = vadd.f32 %v634, %v858
      %v924 = vadd.f32 %v635, %v860
      %s925 = scalar_lea.vmem %s1, 48
      %v926 = vld [vmem:[%s925] sm:$0x1]
      %v927 = vld [vmem:[%s925 + $0x1] sm:$0x1]
      %v928 = vld [vmem:[%s925 + $0x2] sm:$0x1]
      %v929 = vld [vmem:[%s925 + $0x3] sm:$0x1]
      %v930 = vld [vmem:[%s925 + $0x4] sm:$0x1]
      %v931 = vld [vmem:[%s925 + $0x5] sm:$0x1]
      %v932 = vld [vmem:[%s925 + $0x6] sm:$0x1]
      %v933 = vld [vmem:[%s925 + $0x7] sm:$0x1]
      %v934 = vld [vmem:[%s925 + $0x8] sm:$0x1]
      %v935 = vld [vmem:[%s925 + $0x9] sm:$0x1]
      %v936 = vld [vmem:[%s925 + $0xa] sm:$0x1]
      %v937 = vld [vmem:[%s925 + $0xb] sm:$0x1]
      %v938 = vld [vmem:[%s925 + $0xc] sm:$0x1]
      %v939 = vld [vmem:[%s925 + $0xd] sm:$0x1]
      %v940 = vld [vmem:[%s925 + $0xe] sm:$0x1]
      %v941 = vld [vmem:[%s925 + $0xf] sm:$0x1]
      %v958 = vperm.slane %v926, 0
      %v959 = vperm.slane %v927, 0
      %v960 = vperm.slane %v928, 0
      %v961 = vperm.slane %v929, 0
      %v962 = vperm.slane %v930, 0
      %v963 = vperm.slane %v931, 0
      %v964 = vperm.slane %v932, 0
      %v965 = vperm.slane %v933, 0
      %v966 = vperm.slane %v934, 0
      %v967 = vperm.slane %v935, 0
      %v968 = vperm.slane %v936, 0
      %v969 = vperm.slane %v937, 0
      %v970 = vperm.slane %v938, 0
      %v971 = vperm.slane %v939, 0
      %v972 = vperm.slane %v940, 0
      %v973 = vperm.slane %v941, 0
      %v990 = vmul.f32 %v171, %v958
      %v991 = vmul.f32 %v172, %v958
      %v992 = vmul.f32 %v173, %v958
      %v993 = vmul.f32 %v174, %v959
      %v994 = vmul.f32 %v175, %v959
      %v995 = vmul.f32 %v176, %v959
      %v996 = vmul.f32 %v177, %v960
      %v997 = vmul.f32 %v178, %v960
      %v998 = vmul.f32 %v179, %v960
      %v999 = vmul.f32 %v180, %v961
      %v1000 = vmul.f32 %v181, %v961
      %v1001 = vmul.f32 %v182, %v961
      %v1002 = vmul.f32 %v183, %v962
      %v1003 = vmul.f32 %v184, %v962
      %v1004 = vmul.f32 %v185, %v962
      %v1005 = vmul.f32 %v186, %v963
      %v1006 = vmul.f32 %v187, %v963
      %v1007 = vmul.f32 %v188, %v963
      %v1008 = vmul.f32 %v189, %v964
      %v1009 = vmul.f32 %v190, %v964
      %v1010 = vmul.f32 %v191, %v964
      %v1011 = vmul.f32 %v192, %v965
      %v1012 = vmul.f32 %v193, %v965
      %v1013 = vmul.f32 %v194, %v965
      %v1014 = vmul.f32 %v195, %v966
      %v1015 = vmul.f32 %v196, %v966
      %v1016 = vmul.f32 %v197, %v966
      %v1017 = vmul.f32 %v198, %v967
      %v1018 = vmul.f32 %v199, %v967
      %v1019 = vmul.f32 %v200, %v967
      %v1020 = vmul.f32 %v201, %v968
      %v1021 = vmul.f32 %v202, %v968
      %v1022 = vmul.f32 %v203, %v968
      %v1023 = vmul.f32 %v204, %v969
      %v1024 = vmul.f32 %v205, %v969
      %v1025 = vmul.f32 %v206, %v969
      %v1026 = vmul.f32 %v207, %v970
      %v1027 = vmul.f32 %v208, %v970
      %v1028 = vmul.f32 %v209, %v970
      %v1029 = vmul.f32 %v210, %v971
      %v1030 = vmul.f32 %v211, %v971
      %v1031 = vmul.f32 %v212, %v971
      %v1032 = vmul.f32 %v213, %v972
      %v1033 = vmul.f32 %v214, %v972
      %v1034 = vmul.f32 %v215, %v972
      %v1035 = vmul.f32 %v216, %v973
      %v1036 = vmul.f32 %v217, %v973
      %v1037 = vmul.f32 %v218, %v973
      %vm1086 = vcmask 1046528
      %v1087 = vrot.slane %v990, 1
      %v1088 = vrot.slane %v991, 1
      %v1089 = vsel %vm1086, %v1087, %v1088
      %v1090 = vrot.slane %v992, 1
      %v1091 = vsel %vm1086, %v1088, %v1090
      %v1092 = vrot.slane %v993, 1
      %v1093 = vrot.slane %v994, 1
      %v1094 = vsel %vm1086, %v1092, %v1093
      %v1095 = vrot.slane %v995, 1
      %v1096 = vsel %vm1086, %v1093, %v1095
      %v1097 = vrot.slane %v996, 1
      %v1098 = vrot.slane %v997, 1
      %v1099 = vsel %vm1086, %v1097, %v1098
      %v1100 = vrot.slane %v998, 1
      %v1101 = vsel %vm1086, %v1098, %v1100
      %v1102 = vrot.slane %v999, 1
      %v1103 = vrot.slane %v1000, 1
      %v1104 = vsel %vm1086, %v1102, %v1103
      %v1105 = vrot.slane %v1001, 1
      %v1106 = vsel %vm1086, %v1103, %v1105
      %v1107 = vrot.slane %v1002, 1
      %v1108 = vrot.slane %v1003, 1
      %v1109 = vsel %vm1086, %v1107, %v1108
      %v1110 = vrot.slane %v1004, 1
      %v1111 = vsel %vm1086, %v1108, %v1110
      %v1112 = vrot.slane %v1005, 1
      %v1113 = vrot.slane %v1006, 1
      %v1114 = vsel %vm1086, %v1112, %v1113
      %v1115 = vrot.slane %v1007, 1
      %v1116 = vsel %vm1086, %v1113, %v1115
      %v1117 = vrot.slane %v1008, 1
      %v1118 = vrot.slane %v1009, 1
      %v1119 = vsel %vm1086, %v1117, %v1118
      %v1120 = vrot.slane %v1010, 1
      %v1121 = vsel %vm1086, %v1118, %v1120
      %v1122 = vrot.slane %v1011, 1
      %v1123 = vrot.slane %v1012, 1
      %v1124 = vsel %vm1086, %v1122, %v1123
      %v1125 = vrot.slane %v1013, 1
      %v1126 = vsel %vm1086, %v1123, %v1125
      %v1127 = vrot.slane %v1014, 1
      %v1128 = vrot.slane %v1015, 1
      %v1129 = vsel %vm1086, %v1127, %v1128
      %v1130 = vrot.slane %v1016, 1
      %v1131 = vsel %vm1086, %v1128, %v1130
      %v1132 = vrot.slane %v1017, 1
      %v1133 = vrot.slane %v1018, 1
      %v1134 = vsel %vm1086, %v1132, %v1133
      %v1135 = vrot.slane %v1019, 1
      %v1136 = vsel %vm1086, %v1133, %v1135
      %v1137 = vrot.slane %v1020, 1
      %v1138 = vrot.slane %v1021, 1
      %v1139 = vsel %vm1086, %v1137, %v1138
      %v1140 = vrot.slane %v1022, 1
      %v1141 = vsel %vm1086, %v1138, %v1140
      %v1142 = vrot.slane %v1023, 1
      %v1143 = vrot.slane %v1024, 1
      %v1144 = vsel %vm1086, %v1142, %v1143
      %v1145 = vrot.slane %v1025, 1
      %v1146 = vsel %vm1086, %v1143, %v1145
      %v1147 = vrot.slane %v1026, 1
      %v1148 = vrot.slane %v1027, 1
      %v1149 = vsel %vm1086, %v1147, %v1148
      %v1150 = vrot.slane %v1028, 1
      %v1151 = vsel %vm1086, %v1148, %v1150
      %v1152 = vrot.slane %v1029, 1
      %v1153 = vrot.slane %v1030, 1
      %v1154 = vsel %vm1086, %v1152, %v1153
      %v1155 = vrot.slane %v1031, 1
      %v1156 = vsel %vm1086, %v1153, %v1155
      %v1157 = vrot.slane %v1032, 1
      %v1158 = vrot.slane %v1033, 1
      %v1159 = vsel %vm1086, %v1157, %v1158
      %v1160 = vrot.slane %v1034, 1
      %v1161 = vsel %vm1086, %v1158, %v1160
      %v1162 = vrot.slane %v1035, 1
      %v1163 = vrot.slane %v1036, 1
      %v1164 = vsel %vm1086, %v1162, %v1163
      %v1165 = vrot.slane %v1037, 1
      %v1166 = vsel %vm1086, %v1163, %v1165
      %v1199 = vadd.f32 %v893, %v1089
      %v1200 = vadd.f32 %v894, %v1091
      %v1201 = vadd.f32 %v895, %v1094
      %v1202 = vadd.f32 %v896, %v1096
      %v1203 = vadd.f32 %v897, %v1099
      %v1204 = vadd.f32 %v898, %v1101
      %v1205 = vadd.f32 %v899, %v1104
      %v1206 = vadd.f32 %v900, %v1106
      %v1207 = vadd.f32 %v901, %v1109
      %v1208 = vadd.f32 %v902, %v1111
      %v1209 = vadd.f32 %v903, %v1114
      %v1210 = vadd.f32 %v904, %v1116
      %v1211 = vadd.f32 %v905, %v1119
      %v1212 = vadd.f32 %v906, %v1121
      %v1213 = vadd.f32 %v907, %v1124
      %v1214 = vadd.f32 %v908, %v1126
      %v1215 = vadd.f32 %v909, %v1129
      %v1216 = vadd.f32 %v910, %v1131
      %v1217 = vadd.f32 %v911, %v1134
      %v1218 = vadd.f32 %v912, %v1136
      %v1219 = vadd.f32 %v913, %v1139
      %v1220 = vadd.f32 %v914, %v1141
      %v1221 = vadd.f32 %v915, %v1144
      %v1222 = vadd.f32 %v916, %v1146
      %v1223 = vadd.f32 %v917, %v1149
      %v1224 = vadd.f32 %v918, %v1151
      %v1225 = vadd.f32 %v919, %v1154
      %v1226 = vadd.f32 %v920, %v1156
      %v1227 = vadd.f32 %v921, %v1159
      %v1228 = vadd.f32 %v922, %v1161
      %v1229 = vadd.f32 %v923, %v1164
      %v1230 = vadd.f32 %v924, %v1166
      %s1231 = scalar_lea.vmem %s1, 64
      %v1232 = vld [vmem:[%s1231] sm:$0x1]
      %v1233 = vld [vmem:[%s1231 + $0x1] sm:$0x1]
      %v1234 = vld [vmem:[%s1231 + $0x2] sm:$0x1]
      %v1235 = vld [vmem:[%s1231 + $0x3] sm:$0x1]
      %v1236 = vld [vmem:[%s1231 + $0x4] sm:$0x1]
      %v1237 = vld [vmem:[%s1231 + $0x5] sm:$0x1]
      %v1238 = vld [vmem:[%s1231 + $0x6] sm:$0x1]
      %v1239 = vld [vmem:[%s1231 + $0x7] sm:$0x1]
      %v1240 = vld [vmem:[%s1231 + $0x8] sm:$0x1]
      %v1241 = vld [vmem:[%s1231 + $0x9] sm:$0x1]
      %v1242 = vld [vmem:[%s1231 + $0xa] sm:$0x1]
      %v1243 = vld [vmem:[%s1231 + $0xb] sm:$0x1]
      %v1244 = vld [vmem:[%s1231 + $0xc] sm:$0x1]
      %v1245 = vld [vmem:[%s1231 + $0xd] sm:$0x1]
      %v1246 = vld [vmem:[%s1231 + $0xe] sm:$0x1]
      %v1247 = vld [vmem:[%s1231 + $0xf] sm:$0x1]
      %v1264 = vperm.slane %v1232, 0
      %v1265 = vperm.slane %v1233, 0
      %v1266 = vperm.slane %v1234, 0
      %v1267 = vperm.slane %v1235, 0
      %v1268 = vperm.slane %v1236, 0
      %v1269 = vperm.slane %v1237, 0
      %v1270 = vperm.slane %v1238, 0
      %v1271 = vperm.slane %v1239, 0
      %v1272 = vperm.slane %v1240, 0
      %v1273 = vperm.slane %v1241, 0
      %v1274 = vperm.slane %v1242, 0
      %v1275 = vperm.slane %v1243, 0
      %v1276 = vperm.slane %v1244, 0
      %v1277 = vperm.slane %v1245, 0
      %v1278 = vperm.slane %v1246, 0
      %v1279 = vperm.slane %v1247, 0
      %1280 = vrot.lane.b32.xlu0 %v1264, 1
      %v1281 = vpop.permute.xlu0 %1280
      %1282 = vrot.lane.b32.xlu0 %v1265, 1
      %v1283 = vpop.permute.xlu0 %1282
      %1284 = vrot.lane.b32.xlu0 %v1266, 1
      %v1285 = vpop.permute.xlu0 %1284
      %1286 = vrot.lane.b32.xlu0 %v1267, 1
      %v1287 = vpop.permute.xlu0 %1286
      %1288 = vrot.lane.b32.xlu0 %v1268, 1
      %v1289 = vpop.permute.xlu0 %1288
      %1290 = vrot.lane.b32.xlu0 %v1269, 1
      %v1291 = vpop.permute.xlu0 %1290
      %1292 = vrot.lane.b32.xlu0 %v1270, 1
      %v1293 = vpop.permute.xlu0 %1292
      %1294 = vrot.lane.b32.xlu0 %v1271, 1
      %v1295 = vpop.permute.xlu0 %1294
      %1296 = vrot.lane.b32.xlu0 %v1272, 1
      %v1297 = vpop.permute.xlu0 %1296
      %1298 = vrot.lane.b32.xlu0 %v1273, 1
      %v1299 = vpop.permute.xlu0 %1298
      %1300 = vrot.lane.b32.xlu0 %v1274, 1
      %v1301 = vpop.permute.xlu0 %1300
      %1302 = vrot.lane.b32.xlu0 %v1275, 1
      %v1303 = vpop.permute.xlu0 %1302
      %1304 = vrot.lane.b32.xlu0 %v1276, 1
      %v1305 = vpop.permute.xlu0 %1304
      %1306 = vrot.lane.b32.xlu0 %v1277, 1
      %v1307 = vpop.permute.xlu0 %1306
      %1308 = vrot.lane.b32.xlu0 %v1278, 1
      %v1309 = vpop.permute.xlu0 %1308
      %1310 = vrot.lane.b32.xlu0 %v1279, 1
      %v1311 = vpop.permute.xlu0 %1310
      %v1328 = vmul.f32 %v171, %v1281
      %v1329 = vmul.f32 %v172, %v1281
      %v1330 = vmul.f32 %v173, %v1281
      %v1331 = vmul.f32 %v174, %v1283
      %v1332 = vmul.f32 %v175, %v1283
      %v1333 = vmul.f32 %v176, %v1283
      %v1334 = vmul.f32 %v177, %v1285
      %v1335 = vmul.f32 %v178, %v1285
      %v1336 = vmul.f32 %v179, %v1285
      %v1337 = vmul.f32 %v180, %v1287
      %v1338 = vmul.f32 %v181, %v1287
      %v1339 = vmul.f32 %v182, %v1287
      %v1340 = vmul.f32 %v183, %v1289
      %v1341 = vmul.f32 %v184, %v1289
      %v1342 = vmul.f32 %v185, %v1289
      %v1343 = vmul.f32 %v186, %v1291
      %v1344 = vmul.f32 %v187, %v1291
      %v1345 = vmul.f32 %v188, %v1291
      %v1346 = vmul.f32 %v189, %v1293
      %v1347 = vmul.f32 %v190, %v1293
      %v1348 = vmul.f32 %v191, %v1293
      %v1349 = vmul.f32 %v192, %v1295
      %v1350 = vmul.f32 %v193, %v1295
      %v1351 = vmul.f32 %v194, %v1295
      %v1352 = vmul.f32 %v195, %v1297
      %v1353 = vmul.f32 %v196, %v1297
      %v1354 = vmul.f32 %v197, %v1297
      %v1355 = vmul.f32 %v198, %v1299
      %v1356 = vmul.f32 %v199, %v1299
      %v1357 = vmul.f32 %v200, %v1299
      %v1358 = vmul.f32 %v201, %v1301
      %v1359 = vmul.f32 %v202, %v1301
      %v1360 = vmul.f32 %v203, %v1301
      %v1361 = vmul.f32 %v204, %v1303
      %v1362 = vmul.f32 %v205, %v1303
      %v1363 = vmul.f32 %v206, %v1303
      %v1364 = vmul.f32 %v207, %v1305
      %v1365 = vmul.f32 %v208, %v1305
      %v1366 = vmul.f32 %v209, %v1305
      %v1367 = vmul.f32 %v210, %v1307
      %v1368 = vmul.f32 %v211, %v1307
      %v1369 = vmul.f32 %v212, %v1307
      %v1370 = vmul.f32 %v213, %v1309
      %v1371 = vmul.f32 %v214, %v1309
      %v1372 = vmul.f32 %v215, %v1309
      %v1373 = vmul.f32 %v216, %v1311
      %v1374 = vmul.f32 %v217, %v1311
      %v1375 = vmul.f32 %v218, %v1311
      %v1424 = vrot.slane %v1328, 1
      %v1425 = vrot.slane %v1329, 1
      %v1426 = vsel %vm1086, %v1424, %v1425
      %v1427 = vrot.slane %v1330, 1
      %v1428 = vsel %vm1086, %v1425, %v1427
      %v1429 = vrot.slane %v1331, 1
      %v1430 = vrot.slane %v1332, 1
      %v1431 = vsel %vm1086, %v1429, %v1430
      %v1432 = vrot.slane %v1333, 1
      %v1433 = vsel %vm1086, %v1430, %v1432
      %v1434 = vrot.slane %v1334, 1
      %v1435 = vrot.slane %v1335, 1
      %v1436 = vsel %vm1086, %v1434, %v1435
      %v1437 = vrot.slane %v1336, 1
      %v1438 = vsel %vm1086, %v1435, %v1437
      %v1439 = vrot.slane %v1337, 1
      %v1440 = vrot.slane %v1338, 1
      %v1441 = vsel %vm1086, %v1439, %v1440
      %v1442 = vrot.slane %v1339, 1
      %v1443 = vsel %vm1086, %v1440, %v1442
      %v1444 = vrot.slane %v1340, 1
      %v1445 = vrot.slane %v1341, 1
      %v1446 = vsel %vm1086, %v1444, %v1445
      %v1447 = vrot.slane %v1342, 1
      %v1448 = vsel %vm1086, %v1445, %v1447
      %v1449 = vrot.slane %v1343, 1
      %v1450 = vrot.slane %v1344, 1
      %v1451 = vsel %vm1086, %v1449, %v1450
      %v1452 = vrot.slane %v1345, 1
      %v1453 = vsel %vm1086, %v1450, %v1452
      %v1454 = vrot.slane %v1346, 1
      %v1455 = vrot.slane %v1347, 1
      %v1456 = vsel %vm1086, %v1454, %v1455
      %v1457 = vrot.slane %v1348, 1
      %v1458 = vsel %vm1086, %v1455, %v1457
      %v1459 = vrot.slane %v1349, 1
      %v1460 = vrot.slane %v1350, 1
      %v1461 = vsel %vm1086, %v1459, %v1460
      %v1462 = vrot.slane %v1351, 1
      %v1463 = vsel %vm1086, %v1460, %v1462
      %v1464 = vrot.slane %v1352, 1
      %v1465 = vrot.slane %v1353, 1
      %v1466 = vsel %vm1086, %v1464, %v1465
      %v1467 = vrot.slane %v1354, 1
      %v1468 = vsel %vm1086, %v1465, %v1467
      %v1469 = vrot.slane %v1355, 1
      %v1470 = vrot.slane %v1356, 1
      %v1471 = vsel %vm1086, %v1469, %v1470
      %v1472 = vrot.slane %v1357, 1
      %v1473 = vsel %vm1086, %v1470, %v1472
      %v1474 = vrot.slane %v1358, 1
      %v1475 = vrot.slane %v1359, 1
      %v1476 = vsel %vm1086, %v1474, %v1475
      %v1477 = vrot.slane %v1360, 1
      %v1478 = vsel %vm1086, %v1475, %v1477
      %v1479 = vrot.slane %v1361, 1
      %v1480 = vrot.slane %v1362, 1
      %v1481 = vsel %vm1086, %v1479, %v1480
      %v1482 = vrot.slane %v1363, 1
      %v1483 = vsel %vm1086, %v1480, %v1482
      %v1484 = vrot.slane %v1364, 1
      %v1485 = vrot.slane %v1365, 1
      %v1486 = vsel %vm1086, %v1484, %v1485
      %v1487 = vrot.slane %v1366, 1
      %v1488 = vsel %vm1086, %v1485, %v1487
      %v1489 = vrot.slane %v1367, 1
      %v1490 = vrot.slane %v1368, 1
      %v1491 = vsel %vm1086, %v1489, %v1490
      %v1492 = vrot.slane %v1369, 1
      %v1493 = vsel %vm1086, %v1490, %v1492
      %v1494 = vrot.slane %v1370, 1
      %v1495 = vrot.slane %v1371, 1
      %v1496 = vsel %vm1086, %v1494, %v1495
      %v1497 = vrot.slane %v1372, 1
      %v1498 = vsel %vm1086, %v1495, %v1497
      %v1499 = vrot.slane %v1373, 1
      %v1500 = vrot.slane %v1374, 1
      %v1501 = vsel %vm1086, %v1499, %v1500
      %v1502 = vrot.slane %v1375, 1
      %v1503 = vsel %vm1086, %v1500, %v1502
      %1504 = vrot.lane.b32.xlu0 %v1426, 127
      %v1505 = vpop.permute.xlu0 %1504
      %1506 = vrot.lane.b32.xlu0 %v1428, 127
      %v1507 = vpop.permute.xlu0 %1506
      %1508 = vrot.lane.b32.xlu0 %v1431, 127
      %v1509 = vpop.permute.xlu0 %1508
      %1510 = vrot.lane.b32.xlu0 %v1433, 127
      %v1511 = vpop.permute.xlu0 %1510
      %1512 = vrot.lane.b32.xlu0 %v1436, 127
      %v1513 = vpop.permute.xlu0 %1512
      %1514 = vrot.lane.b32.xlu0 %v1438, 127
      %v1515 = vpop.permute.xlu0 %1514
      %1516 = vrot.lane.b32.xlu0 %v1441, 127
      %v1517 = vpop.permute.xlu0 %1516
      %1518 = vrot.lane.b32.xlu0 %v1443, 127
      %v1519 = vpop.permute.xlu0 %1518
      %1520 = vrot.lane.b32.xlu0 %v1446, 127
      %v1521 = vpop.permute.xlu0 %1520
      %1522 = vrot.lane.b32.xlu0 %v1448, 127
      %v1523 = vpop.permute.xlu0 %1522
      %1524 = vrot.lane.b32.xlu0 %v1451, 127
      %v1525 = vpop.permute.xlu0 %1524
      %1526 = vrot.lane.b32.xlu0 %v1453, 127
      %v1527 = vpop.permute.xlu0 %1526
      %1528 = vrot.lane.b32.xlu0 %v1456, 127
      %v1529 = vpop.permute.xlu0 %1528
      %1530 = vrot.lane.b32.xlu0 %v1458, 127
      %v1531 = vpop.permute.xlu0 %1530
      %1532 = vrot.lane.b32.xlu0 %v1461, 127
      %v1533 = vpop.permute.xlu0 %1532
      %1534 = vrot.lane.b32.xlu0 %v1463, 127
      %v1535 = vpop.permute.xlu0 %1534
      %1536 = vrot.lane.b32.xlu0 %v1466, 127
      %v1537 = vpop.permute.xlu0 %1536
      %1538 = vrot.lane.b32.xlu0 %v1468, 127
      %v1539 = vpop.permute.xlu0 %1538
      %1540 = vrot.lane.b32.xlu0 %v1471, 127
      %v1541 = vpop.permute.xlu0 %1540
      %1542 = vrot.lane.b32.xlu0 %v1473, 127
      %v1543 = vpop.permute.xlu0 %1542
      %1544 = vrot.lane.b32.xlu0 %v1476, 127
      %v1545 = vpop.permute.xlu0 %1544
      %1546 = vrot.lane.b32.xlu0 %v1478, 127
      %v1547 = vpop.permute.xlu0 %1546
      %1548 = vrot.lane.b32.xlu0 %v1481, 127
      %v1549 = vpop.permute.xlu0 %1548
      %1550 = vrot.lane.b32.xlu0 %v1483, 127
      %v1551 = vpop.permute.xlu0 %1550
      %1552 = vrot.lane.b32.xlu0 %v1486, 127
      %v1553 = vpop.permute.xlu0 %1552
      %1554 = vrot.lane.b32.xlu0 %v1488, 127
      %v1555 = vpop.permute.xlu0 %1554
      %1556 = vrot.lane.b32.xlu0 %v1491, 127
      %v1557 = vpop.permute.xlu0 %1556
      %1558 = vrot.lane.b32.xlu0 %v1493, 127
      %v1559 = vpop.permute.xlu0 %1558
      %1560 = vrot.lane.b32.xlu0 %v1496, 127
      %v1561 = vpop.permute.xlu0 %1560
      %1562 = vrot.lane.b32.xlu0 %v1498, 127
      %v1563 = vpop.permute.xlu0 %1562
      %1564 = vrot.lane.b32.xlu0 %v1501, 127
      %v1565 = vpop.permute.xlu0 %1564
      %1566 = vrot.lane.b32.xlu0 %v1503, 127
      %v1567 = vpop.permute.xlu0 %1566
      %v1600 = vadd.f32 %v1199, %v1505
      %v1601 = vadd.f32 %v1200, %v1507
      %v1602 = vadd.f32 %v1201, %v1509
      %v1603 = vadd.f32 %v1202, %v1511
      %v1604 = vadd.f32 %v1203, %v1513
      %v1605 = vadd.f32 %v1204, %v1515
      %v1606 = vadd.f32 %v1205, %v1517
      %v1607 = vadd.f32 %v1206, %v1519
      %v1608 = vadd.f32 %v1207, %v1521
      %v1609 = vadd.f32 %v1208, %v1523
      %v1610 = vadd.f32 %v1209, %v1525
      %v1611 = vadd.f32 %v1210, %v1527
      %v1612 = vadd.f32 %v1211, %v1529
      %v1613 = vadd.f32 %v1212, %v1531
      %v1614 = vadd.f32 %v1213, %v1533
      %v1615 = vadd.f32 %v1214, %v1535
      %v1616 = vadd.f32 %v1215, %v1537
      %v1617 = vadd.f32 %v1216, %v1539
      %v1618 = vadd.f32 %v1217, %v1541
      %v1619 = vadd.f32 %v1218, %v1543
      %v1620 = vadd.f32 %v1219, %v1545
      %v1621 = vadd.f32 %v1220, %v1547
      %v1622 = vadd.f32 %v1221, %v1549
      %v1623 = vadd.f32 %v1222, %v1551
      %v1624 = vadd.f32 %v1223, %v1553
      %v1625 = vadd.f32 %v1224, %v1555
      %v1626 = vadd.f32 %v1225, %v1557
      %v1627 = vadd.f32 %v1226, %v1559
      %v1628 = vadd.f32 %v1227, %v1561
      %v1629 = vadd.f32 %v1228, %v1563
      %v1630 = vadd.f32 %v1229, %v1565
      %v1631 = vadd.f32 %v1230, %v1567
      %s1632 = scalar_lea.vmem %s1, 80
      %v1633 = vld [vmem:[%s1632] sm:$0x1]
      %v1634 = vld [vmem:[%s1632 + $0x1] sm:$0x1]
      %v1635 = vld [vmem:[%s1632 + $0x2] sm:$0x1]
      %v1636 = vld [vmem:[%s1632 + $0x3] sm:$0x1]
      %v1637 = vld [vmem:[%s1632 + $0x4] sm:$0x1]
      %v1638 = vld [vmem:[%s1632 + $0x5] sm:$0x1]
      %v1639 = vld [vmem:[%s1632 + $0x6] sm:$0x1]
      %v1640 = vld [vmem:[%s1632 + $0x7] sm:$0x1]
      %v1641 = vld [vmem:[%s1632 + $0x8] sm:$0x1]
      %v1642 = vld [vmem:[%s1632 + $0x9] sm:$0x1]
      %v1643 = vld [vmem:[%s1632 + $0xa] sm:$0x1]
      %v1644 = vld [vmem:[%s1632 + $0xb] sm:$0x1]
      %v1645 = vld [vmem:[%s1632 + $0xc] sm:$0x1]
      %v1646 = vld [vmem:[%s1632 + $0xd] sm:$0x1]
      %v1647 = vld [vmem:[%s1632 + $0xe] sm:$0x1]
      %v1648 = vld [vmem:[%s1632 + $0xf] sm:$0x1]
      %v1665 = vperm.slane %v1633, 0
      %v1666 = vperm.slane %v1634, 0
      %v1667 = vperm.slane %v1635, 0
      %v1668 = vperm.slane %v1636, 0
      %v1669 = vperm.slane %v1637, 0
      %v1670 = vperm.slane %v1638, 0
      %v1671 = vperm.slane %v1639, 0
      %v1672 = vperm.slane %v1640, 0
      %v1673 = vperm.slane %v1641, 0
      %v1674 = vperm.slane %v1642, 0
      %v1675 = vperm.slane %v1643, 0
      %v1676 = vperm.slane %v1644, 0
      %v1677 = vperm.slane %v1645, 0
      %v1678 = vperm.slane %v1646, 0
      %v1679 = vperm.slane %v1647, 0
      %v1680 = vperm.slane %v1648, 0
      %1681 = vrot.lane.b32.xlu0 %v1665, 2
      %v1682 = vpop.permute.xlu0 %1681
      %1683 = vrot.lane.b32.xlu0 %v1666, 2
      %v1684 = vpop.permute.xlu0 %1683
      %1685 = vrot.lane.b32.xlu0 %v1667, 2
      %v1686 = vpop.permute.xlu0 %1685
      %1687 = vrot.lane.b32.xlu0 %v1668, 2
      %v1688 = vpop.permute.xlu0 %1687
      %1689 = vrot.lane.b32.xlu0 %v1669, 2
      %v1690 = vpop.permute.xlu0 %1689
      %1691 = vrot.lane.b32.xlu0 %v1670, 2
      %v1692 = vpop.permute.xlu0 %1691
      %1693 = vrot.lane.b32.xlu0 %v1671, 2
      %v1694 = vpop.permute.xlu0 %1693
      %1695 = vrot.lane.b32.xlu0 %v1672, 2
      %v1696 = vpop.permute.xlu0 %1695
      %1697 = vrot.lane.b32.xlu0 %v1673, 2
      %v1698 = vpop.permute.xlu0 %1697
      %1699 = vrot.lane.b32.xlu0 %v1674, 2
      %v1700 = vpop.permute.xlu0 %1699
      %1701 = vrot.lane.b32.xlu0 %v1675, 2
      %v1702 = vpop.permute.xlu0 %1701
      %1703 = vrot.lane.b32.xlu0 %v1676, 2
      %v1704 = vpop.permute.xlu0 %1703
      %1705 = vrot.lane.b32.xlu0 %v1677, 2
      %v1706 = vpop.permute.xlu0 %1705
      %1707 = vrot.lane.b32.xlu0 %v1678, 2
      %v1708 = vpop.permute.xlu0 %1707
      %1709 = vrot.lane.b32.xlu0 %v1679, 2
      %v1710 = vpop.permute.xlu0 %1709
      %1711 = vrot.lane.b32.xlu0 %v1680, 2
      %v1712 = vpop.permute.xlu0 %1711
      %v1729 = vmul.f32 %v171, %v1682
      %v1730 = vmul.f32 %v172, %v1682
      %v1731 = vmul.f32 %v173, %v1682
      %v1732 = vmul.f32 %v174, %v1684
      %v1733 = vmul.f32 %v175, %v1684
      %v1734 = vmul.f32 %v176, %v1684
      %v1735 = vmul.f32 %v177, %v1686
      %v1736 = vmul.f32 %v178, %v1686
      %v1737 = vmul.f32 %v179, %v1686
      %v1738 = vmul.f32 %v180, %v1688
      %v1739 = vmul.f32 %v181, %v1688
      %v1740 = vmul.f32 %v182, %v1688
      %v1741 = vmul.f32 %v183, %v1690
      %v1742 = vmul.f32 %v184, %v1690
      %v1743 = vmul.f32 %v185, %v1690
      %v1744 = vmul.f32 %v186, %v1692
      %v1745 = vmul.f32 %v187, %v1692
      %v1746 = vmul.f32 %v188, %v1692
      %v1747 = vmul.f32 %v189, %v1694
      %v1748 = vmul.f32 %v190, %v1694
      %v1749 = vmul.f32 %v191, %v1694
      %v1750 = vmul.f32 %v192, %v1696
      %v1751 = vmul.f32 %v193, %v1696
      %v1752 = vmul.f32 %v194, %v1696
      %v1753 = vmul.f32 %v195, %v1698
      %v1754 = vmul.f32 %v196, %v1698
      %v1755 = vmul.f32 %v197, %v1698
      %v1756 = vmul.f32 %v198, %v1700
      %v1757 = vmul.f32 %v199, %v1700
      %v1758 = vmul.f32 %v200, %v1700
      %v1759 = vmul.f32 %v201, %v1702
      %v1760 = vmul.f32 %v202, %v1702
      %v1761 = vmul.f32 %v203, %v1702
      %v1762 = vmul.f32 %v204, %v1704
      %v1763 = vmul.f32 %v205, %v1704
      %v1764 = vmul.f32 %v206, %v1704
      %v1765 = vmul.f32 %v207, %v1706
      %v1766 = vmul.f32 %v208, %v1706
      %v1767 = vmul.f32 %v209, %v1706
      %v1768 = vmul.f32 %v210, %v1708
      %v1769 = vmul.f32 %v211, %v1708
      %v1770 = vmul.f32 %v212, %v1708
      %v1771 = vmul.f32 %v213, %v1710
      %v1772 = vmul.f32 %v214, %v1710
      %v1773 = vmul.f32 %v215, %v1710
      %v1774 = vmul.f32 %v216, %v1712
      %v1775 = vmul.f32 %v217, %v1712
      %v1776 = vmul.f32 %v218, %v1712
      %v1825 = vrot.slane %v1729, 1
      %v1826 = vrot.slane %v1730, 1
      %v1827 = vsel %vm1086, %v1825, %v1826
      %v1828 = vrot.slane %v1731, 1
      %v1829 = vsel %vm1086, %v1826, %v1828
      %v1830 = vrot.slane %v1732, 1
      %v1831 = vrot.slane %v1733, 1
      %v1832 = vsel %vm1086, %v1830, %v1831
      %v1833 = vrot.slane %v1734, 1
      %v1834 = vsel %vm1086, %v1831, %v1833
      %v1835 = vrot.slane %v1735, 1
      %v1836 = vrot.slane %v1736, 1
      %v1837 = vsel %vm1086, %v1835, %v1836
      %v1838 = vrot.slane %v1737, 1
      %v1839 = vsel %vm1086, %v1836, %v1838
      %v1840 = vrot.slane %v1738, 1
      %v1841 = vrot.slane %v1739, 1
      %v1842 = vsel %vm1086, %v1840, %v1841
      %v1843 = vrot.slane %v1740, 1
      %v1844 = vsel %vm1086, %v1841, %v1843
      %v1845 = vrot.slane %v1741, 1
      %v1846 = vrot.slane %v1742, 1
      %v1847 = vsel %vm1086, %v1845, %v1846
      %v1848 = vrot.slane %v1743, 1
      %v1849 = vsel %vm1086, %v1846, %v1848
      %v1850 = vrot.slane %v1744, 1
      %v1851 = vrot.slane %v1745, 1
      %v1852 = vsel %vm1086, %v1850, %v1851
      %v1853 = vrot.slane %v1746, 1
      %v1854 = vsel %vm1086, %v1851, %v1853
      %v1855 = vrot.slane %v1747, 1
      %v1856 = vrot.slane %v1748, 1
      %v1857 = vsel %vm1086, %v1855, %v1856
      %v1858 = vrot.slane %v1749, 1
      %v1859 = vsel %vm1086, %v1856, %v1858
      %v1860 = vrot.slane %v1750, 1
      %v1861 = vrot.slane %v1751, 1
      %v1862 = vsel %vm1086, %v1860, %v1861
      %v1863 = vrot.slane %v1752, 1
      %v1864 = vsel %vm1086, %v1861, %v1863
      %v1865 = vrot.slane %v1753, 1
      %v1866 = vrot.slane %v1754, 1
      %v1867 = vsel %vm1086, %v1865, %v1866
      %v1868 = vrot.slane %v1755, 1
      %v1869 = vsel %vm1086, %v1866, %v1868
      %v1870 = vrot.slane %v1756, 1
      %v1871 = vrot.slane %v1757, 1
      %v1872 = vsel %vm1086, %v1870, %v1871
      %v1873 = vrot.slane %v1758, 1
      %v1874 = vsel %vm1086, %v1871, %v1873
      %v1875 = vrot.slane %v1759, 1
      %v1876 = vrot.slane %v1760, 1
      %v1877 = vsel %vm1086, %v1875, %v1876
      %v1878 = vrot.slane %v1761, 1
      %v1879 = vsel %vm1086, %v1876, %v1878
      %v1880 = vrot.slane %v1762, 1
      %v1881 = vrot.slane %v1763, 1
      %v1882 = vsel %vm1086, %v1880, %v1881
      %v1883 = vrot.slane %v1764, 1
      %v1884 = vsel %vm1086, %v1881, %v1883
      %v1885 = vrot.slane %v1765, 1
      %v1886 = vrot.slane %v1766, 1
      %v1887 = vsel %vm1086, %v1885, %v1886
      %v1888 = vrot.slane %v1767, 1
      %v1889 = vsel %vm1086, %v1886, %v1888
      %v1890 = vrot.slane %v1768, 1
      %v1891 = vrot.slane %v1769, 1
      %v1892 = vsel %vm1086, %v1890, %v1891
      %v1893 = vrot.slane %v1770, 1
      %v1894 = vsel %vm1086, %v1891, %v1893
      %v1895 = vrot.slane %v1771, 1
      %v1896 = vrot.slane %v1772, 1
      %v1897 = vsel %vm1086, %v1895, %v1896
      %v1898 = vrot.slane %v1773, 1
      %v1899 = vsel %vm1086, %v1896, %v1898
      %v1900 = vrot.slane %v1774, 1
      %v1901 = vrot.slane %v1775, 1
      %v1902 = vsel %vm1086, %v1900, %v1901
      %v1903 = vrot.slane %v1776, 1
      %v1904 = vsel %vm1086, %v1901, %v1903
      %1905 = vrot.lane.b32.xlu0 %v1827, 126
      %v1906 = vpop.permute.xlu0 %1905
      %1907 = vrot.lane.b32.xlu0 %v1829, 126
      %v1908 = vpop.permute.xlu0 %1907
      %1909 = vrot.lane.b32.xlu0 %v1832, 126
      %v1910 = vpop.permute.xlu0 %1909
      %1911 = vrot.lane.b32.xlu0 %v1834, 126
      %v1912 = vpop.permute.xlu0 %1911
      %1913 = vrot.lane.b32.xlu0 %v1837, 126
      %v1914 = vpop.permute.xlu0 %1913
      %1915 = vrot.lane.b32.xlu0 %v1839, 126
      %v1916 = vpop.permute.xlu0 %1915
      %1917 = vrot.lane.b32.xlu0 %v1842, 126
      %v1918 = vpop.permute.xlu0 %1917
      %1919 = vrot.lane.b32.xlu0 %v1844, 126
      %v1920 = vpop.permute.xlu0 %1919
      %1921 = vrot.lane.b32.xlu0 %v1847, 126
      %v1922 = vpop.permute.xlu0 %1921
      %1923 = vrot.lane.b32.xlu0 %v1849, 126
      %v1924 = vpop.permute.xlu0 %1923
      %1925 = vrot.lane.b32.xlu0 %v1852, 126
      %v1926 = vpop.permute.xlu0 %1925
      %1927 = vrot.lane.b32.xlu0 %v1854, 126
      %v1928 = vpop.permute.xlu0 %1927
      %1929 = vrot.lane.b32.xlu0 %v1857, 126
      %v1930 = vpop.permute.xlu0 %1929
      %1931 = vrot.lane.b32.xlu0 %v1859, 126
      %v1932 = vpop.permute.xlu0 %1931
      %1933 = vrot.lane.b32.xlu0 %v1862, 126
      %v1934 = vpop.permute.xlu0 %1933
      %1935 = vrot.lane.b32.xlu0 %v1864, 126
      %v1936 = vpop.permute.xlu0 %1935
      %1937 = vrot.lane.b32.xlu0 %v1867, 126
      %v1938 = vpop.permute.xlu0 %1937
      %1939 = vrot.lane.b32.xlu0 %v1869, 126
      %v1940 = vpop.permute.xlu0 %1939
      %1941 = vrot.lane.b32.xlu0 %v1872, 126
      %v1942 = vpop.permute.xlu0 %1941
      %1943 = vrot.lane.b32.xlu0 %v1874, 126
      %v1944 = vpop.permute.xlu0 %1943
      %1945 = vrot.lane.b32.xlu0 %v1877, 126
      %v1946 = vpop.permute.xlu0 %1945
      %1947 = vrot.lane.b32.xlu0 %v1879, 126
      %v1948 = vpop.permute.xlu0 %1947
      %1949 = vrot.lane.b32.xlu0 %v1882, 126
      %v1950 = vpop.permute.xlu0 %1949
      %1951 = vrot.lane.b32.xlu0 %v1884, 126
      %v1952 = vpop.permute.xlu0 %1951
      %1953 = vrot.lane.b32.xlu0 %v1887, 126
      %v1954 = vpop.permute.xlu0 %1953
      %1955 = vrot.lane.b32.xlu0 %v1889, 126
      %v1956 = vpop.permute.xlu0 %1955
      %1957 = vrot.lane.b32.xlu0 %v1892, 126
      %v1958 = vpop.permute.xlu0 %1957
      %1959 = vrot.lane.b32.xlu0 %v1894, 126
      %v1960 = vpop.permute.xlu0 %1959
      %1961 = vrot.lane.b32.xlu0 %v1897, 126
      %v1962 = vpop.permute.xlu0 %1961
      %1963 = vrot.lane.b32.xlu0 %v1899, 126
      %v1964 = vpop.permute.xlu0 %1963
      %1965 = vrot.lane.b32.xlu0 %v1902, 126
      %v1966 = vpop.permute.xlu0 %1965
      %1967 = vrot.lane.b32.xlu0 %v1904, 126
      %v1968 = vpop.permute.xlu0 %1967
      %v2001 = vadd.f32 %v1600, %v1906
      %v2002 = vadd.f32 %v1601, %v1908
      %v2003 = vadd.f32 %v1602, %v1910
      %v2004 = vadd.f32 %v1603, %v1912
      %v2005 = vadd.f32 %v1604, %v1914
      %v2006 = vadd.f32 %v1605, %v1916
      %v2007 = vadd.f32 %v1606, %v1918
      %v2008 = vadd.f32 %v1607, %v1920
      %v2009 = vadd.f32 %v1608, %v1922
      %v2010 = vadd.f32 %v1609, %v1924
      %v2011 = vadd.f32 %v1610, %v1926
      %v2012 = vadd.f32 %v1611, %v1928
      %v2013 = vadd.f32 %v1612, %v1930
      %v2014 = vadd.f32 %v1613, %v1932
      %v2015 = vadd.f32 %v1614, %v1934
      %v2016 = vadd.f32 %v1615, %v1936
      %v2017 = vadd.f32 %v1616, %v1938
      %v2018 = vadd.f32 %v1617, %v1940
      %v2019 = vadd.f32 %v1618, %v1942
      %v2020 = vadd.f32 %v1619, %v1944
      %v2021 = vadd.f32 %v1620, %v1946
      %v2022 = vadd.f32 %v1621, %v1948
      %v2023 = vadd.f32 %v1622, %v1950
      %v2024 = vadd.f32 %v1623, %v1952
      %v2025 = vadd.f32 %v1624, %v1954
      %v2026 = vadd.f32 %v1625, %v1956
      %v2027 = vadd.f32 %v1626, %v1958
      %v2028 = vadd.f32 %v1627, %v1960
      %v2029 = vadd.f32 %v1628, %v1962
      %v2030 = vadd.f32 %v1629, %v1964
      %v2031 = vadd.f32 %v1630, %v1966
      %v2032 = vadd.f32 %v1631, %v1968
      %s2033 = scalar_lea.vmem %s1, 96
      %v2034 = vld [vmem:[%s2033] sm:$0x1]
      %v2035 = vld [vmem:[%s2033 + $0x1] sm:$0x1]
      %v2036 = vld [vmem:[%s2033 + $0x2] sm:$0x1]
      %v2037 = vld [vmem:[%s2033 + $0x3] sm:$0x1]
      %v2038 = vld [vmem:[%s2033 + $0x4] sm:$0x1]
      %v2039 = vld [vmem:[%s2033 + $0x5] sm:$0x1]
      %v2040 = vld [vmem:[%s2033 + $0x6] sm:$0x1]
      %v2041 = vld [vmem:[%s2033 + $0x7] sm:$0x1]
      %v2042 = vld [vmem:[%s2033 + $0x8] sm:$0x1]
      %v2043 = vld [vmem:[%s2033 + $0x9] sm:$0x1]
      %v2044 = vld [vmem:[%s2033 + $0xa] sm:$0x1]
      %v2045 = vld [vmem:[%s2033 + $0xb] sm:$0x1]
      %v2046 = vld [vmem:[%s2033 + $0xc] sm:$0x1]
      %v2047 = vld [vmem:[%s2033 + $0xd] sm:$0x1]
      %v2048 = vld [vmem:[%s2033 + $0xe] sm:$0x1]
      %v2049 = vld [vmem:[%s2033 + $0xf] sm:$0x1]
      %v2066 = vperm.slane %v2034, 0
      %v2067 = vperm.slane %v2035, 0
      %v2068 = vperm.slane %v2036, 0
      %v2069 = vperm.slane %v2037, 0
      %v2070 = vperm.slane %v2038, 0
      %v2071 = vperm.slane %v2039, 0
      %v2072 = vperm.slane %v2040, 0
      %v2073 = vperm.slane %v2041, 0
      %v2074 = vperm.slane %v2042, 0
      %v2075 = vperm.slane %v2043, 0
      %v2076 = vperm.slane %v2044, 0
      %v2077 = vperm.slane %v2045, 0
      %v2078 = vperm.slane %v2046, 0
      %v2079 = vperm.slane %v2047, 0
      %v2080 = vperm.slane %v2048, 0
      %v2081 = vperm.slane %v2049, 0
      %v2098 = vmul.f32 %v171, %v2066
      %v2099 = vmul.f32 %v172, %v2066
      %v2100 = vmul.f32 %v173, %v2066
      %v2101 = vmul.f32 %v174, %v2067
      %v2102 = vmul.f32 %v175, %v2067
      %v2103 = vmul.f32 %v176, %v2067
      %v2104 = vmul.f32 %v177, %v2068
      %v2105 = vmul.f32 %v178, %v2068
      %v2106 = vmul.f32 %v179, %v2068
      %v2107 = vmul.f32 %v180, %v2069
      %v2108 = vmul.f32 %v181, %v2069
      %v2109 = vmul.f32 %v182, %v2069
      %v2110 = vmul.f32 %v183, %v2070
      %v2111 = vmul.f32 %v184, %v2070
      %v2112 = vmul.f32 %v185, %v2070
      %v2113 = vmul.f32 %v186, %v2071
      %v2114 = vmul.f32 %v187, %v2071
      %v2115 = vmul.f32 %v188, %v2071
      %v2116 = vmul.f32 %v189, %v2072
      %v2117 = vmul.f32 %v190, %v2072
      %v2118 = vmul.f32 %v191, %v2072
      %v2119 = vmul.f32 %v192, %v2073
      %v2120 = vmul.f32 %v193, %v2073
      %v2121 = vmul.f32 %v194, %v2073
      %v2122 = vmul.f32 %v195, %v2074
      %v2123 = vmul.f32 %v196, %v2074
      %v2124 = vmul.f32 %v197, %v2074
      %v2125 = vmul.f32 %v198, %v2075
      %v2126 = vmul.f32 %v199, %v2075
      %v2127 = vmul.f32 %v200, %v2075
      %v2128 = vmul.f32 %v201, %v2076
      %v2129 = vmul.f32 %v202, %v2076
      %v2130 = vmul.f32 %v203, %v2076
      %v2131 = vmul.f32 %v204, %v2077
      %v2132 = vmul.f32 %v205, %v2077
      %v2133 = vmul.f32 %v206, %v2077
      %v2134 = vmul.f32 %v207, %v2078
      %v2135 = vmul.f32 %v208, %v2078
      %v2136 = vmul.f32 %v209, %v2078
      %v2137 = vmul.f32 %v210, %v2079
      %v2138 = vmul.f32 %v211, %v2079
      %v2139 = vmul.f32 %v212, %v2079
      %v2140 = vmul.f32 %v213, %v2080
      %v2141 = vmul.f32 %v214, %v2080
      %v2142 = vmul.f32 %v215, %v2080
      %v2143 = vmul.f32 %v216, %v2081
      %v2144 = vmul.f32 %v217, %v2081
      %v2145 = vmul.f32 %v218, %v2081
      %vm2194 = vcmask 1045504
      %v2195 = vrot.slane %v2098, 2
      %v2196 = vrot.slane %v2099, 2
      %v2197 = vsel %vm2194, %v2195, %v2196
      %v2198 = vrot.slane %v2100, 2
      %v2199 = vsel %vm2194, %v2196, %v2198
      %v2200 = vrot.slane %v2101, 2
      %v2201 = vrot.slane %v2102, 2
      %v2202 = vsel %vm2194, %v2200, %v2201
      %v2203 = vrot.slane %v2103, 2
      %v2204 = vsel %vm2194, %v2201, %v2203
      %v2205 = vrot.slane %v2104, 2
      %v2206 = vrot.slane %v2105, 2
      %v2207 = vsel %vm2194, %v2205, %v2206
      %v2208 = vrot.slane %v2106, 2
      %v2209 = vsel %vm2194, %v2206, %v2208
      %v2210 = vrot.slane %v2107, 2
      %v2211 = vrot.slane %v2108, 2
      %v2212 = vsel %vm2194, %v2210, %v2211
      %v2213 = vrot.slane %v2109, 2
      %v2214 = vsel %vm2194, %v2211, %v2213
      %v2215 = vrot.slane %v2110, 2
      %v2216 = vrot.slane %v2111, 2
      %v2217 = vsel %vm2194, %v2215, %v2216
      %v2218 = vrot.slane %v2112, 2
      %v2219 = vsel %vm2194, %v2216, %v2218
      %v2220 = vrot.slane %v2113, 2
      %v2221 = vrot.slane %v2114, 2
      %v2222 = vsel %vm2194, %v2220, %v2221
      %v2223 = vrot.slane %v2115, 2
      %v2224 = vsel %vm2194, %v2221, %v2223
      %v2225 = vrot.slane %v2116, 2
      %v2226 = vrot.slane %v2117, 2
      %v2227 = vsel %vm2194, %v2225, %v2226
      %v2228 = vrot.slane %v2118, 2
      %v2229 = vsel %vm2194, %v2226, %v2228
      %v2230 = vrot.slane %v2119, 2
      %v2231 = vrot.slane %v2120, 2
      %v2232 = vsel %vm2194, %v2230, %v2231
      %v2233 = vrot.slane %v2121, 2
      %v2234 = vsel %vm2194, %v2231, %v2233
      %v2235 = vrot.slane %v2122, 2
      %v2236 = vrot.slane %v2123, 2
      %v2237 = vsel %vm2194, %v2235, %v2236
      %v2238 = vrot.slane %v2124, 2
      %v2239 = vsel %vm2194, %v2236, %v2238
      %v2240 = vrot.slane %v2125, 2
      %v2241 = vrot.slane %v2126, 2
      %v2242 = vsel %vm2194, %v2240, %v2241
      %v2243 = vrot.slane %v2127, 2
      %v2244 = vsel %vm2194, %v2241, %v2243
      %v2245 = vrot.slane %v2128, 2
      %v2246 = vrot.slane %v2129, 2
      %v2247 = vsel %vm2194, %v2245, %v2246
      %v2248 = vrot.slane %v2130, 2
      %v2249 = vsel %vm2194, %v2246, %v2248
      %v2250 = vrot.slane %v2131, 2
      %v2251 = vrot.slane %v2132, 2
      %v2252 = vsel %vm2194, %v2250, %v2251
      %v2253 = vrot.slane %v2133, 2
      %v2254 = vsel %vm2194, %v2251, %v2253
      %v2255 = vrot.slane %v2134, 2
      %v2256 = vrot.slane %v2135, 2
      %v2257 = vsel %vm2194, %v2255, %v2256
      %v2258 = vrot.slane %v2136, 2
      %v2259 = vsel %vm2194, %v2256, %v2258
      %v2260 = vrot.slane %v2137, 2
      %v2261 = vrot.slane %v2138, 2
      %v2262 = vsel %vm2194, %v2260, %v2261
      %v2263 = vrot.slane %v2139, 2
      %v2264 = vsel %vm2194, %v2261, %v2263
      %v2265 = vrot.slane %v2140, 2
      %v2266 = vrot.slane %v2141, 2
      %v2267 = vsel %vm2194, %v2265, %v2266
      %v2268 = vrot.slane %v2142, 2
      %v2269 = vsel %vm2194, %v2266, %v2268
      %v2270 = vrot.slane %v2143, 2
      %v2271 = vrot.slane %v2144, 2
      %v2272 = vsel %vm2194, %v2270, %v2271
      %v2273 = vrot.slane %v2145, 2
      %v2274 = vsel %vm2194, %v2271, %v2273
      %v2307 = vadd.f32 %v2001, %v2197
      %v2308 = vadd.f32 %v2002, %v2199
      %v2309 = vadd.f32 %v2003, %v2202
      %v2310 = vadd.f32 %v2004, %v2204
      %v2311 = vadd.f32 %v2005, %v2207
      %v2312 = vadd.f32 %v2006, %v2209
      %v2313 = vadd.f32 %v2007, %v2212
      %v2314 = vadd.f32 %v2008, %v2214
      %v2315 = vadd.f32 %v2009, %v2217
      %v2316 = vadd.f32 %v2010, %v2219
      %v2317 = vadd.f32 %v2011, %v2222
      %v2318 = vadd.f32 %v2012, %v2224
      %v2319 = vadd.f32 %v2013, %v2227
      %v2320 = vadd.f32 %v2014, %v2229
      %v2321 = vadd.f32 %v2015, %v2232
      %v2322 = vadd.f32 %v2016, %v2234
      %v2323 = vadd.f32 %v2017, %v2237
      %v2324 = vadd.f32 %v2018, %v2239
      %v2325 = vadd.f32 %v2019, %v2242
      %v2326 = vadd.f32 %v2020, %v2244
      %v2327 = vadd.f32 %v2021, %v2247
      %v2328 = vadd.f32 %v2022, %v2249
      %v2329 = vadd.f32 %v2023, %v2252
      %v2330 = vadd.f32 %v2024, %v2254
      %v2331 = vadd.f32 %v2025, %v2257
      %v2332 = vadd.f32 %v2026, %v2259
      %v2333 = vadd.f32 %v2027, %v2262
      %v2334 = vadd.f32 %v2028, %v2264
      %v2335 = vadd.f32 %v2029, %v2267
      %v2336 = vadd.f32 %v2030, %v2269
      %v2337 = vadd.f32 %v2031, %v2272
      %v2338 = vadd.f32 %v2032, %v2274
      %s2339 = scalar_lea.vmem %s1, 112
      %v2340 = vld [vmem:[%s2339] sm:$0x1]
      %v2341 = vld [vmem:[%s2339 + $0x1] sm:$0x1]
      %v2342 = vld [vmem:[%s2339 + $0x2] sm:$0x1]
      %v2343 = vld [vmem:[%s2339 + $0x3] sm:$0x1]
      %v2344 = vld [vmem:[%s2339 + $0x4] sm:$0x1]
      %v2345 = vld [vmem:[%s2339 + $0x5] sm:$0x1]
      %v2346 = vld [vmem:[%s2339 + $0x6] sm:$0x1]
      %v2347 = vld [vmem:[%s2339 + $0x7] sm:$0x1]
      %v2348 = vld [vmem:[%s2339 + $0x8] sm:$0x1]
      %v2349 = vld [vmem:[%s2339 + $0x9] sm:$0x1]
      %v2350 = vld [vmem:[%s2339 + $0xa] sm:$0x1]
      %v2351 = vld [vmem:[%s2339 + $0xb] sm:$0x1]
      %v2352 = vld [vmem:[%s2339 + $0xc] sm:$0x1]
      %v2353 = vld [vmem:[%s2339 + $0xd] sm:$0x1]
      %v2354 = vld [vmem:[%s2339 + $0xe] sm:$0x1]
      %v2355 = vld [vmem:[%s2339 + $0xf] sm:$0x1]
      %v2372 = vperm.slane %v2340, 0
      %v2373 = vperm.slane %v2341, 0
      %v2374 = vperm.slane %v2342, 0
      %v2375 = vperm.slane %v2343, 0
      %v2376 = vperm.slane %v2344, 0
      %v2377 = vperm.slane %v2345, 0
      %v2378 = vperm.slane %v2346, 0
      %v2379 = vperm.slane %v2347, 0
      %v2380 = vperm.slane %v2348, 0
      %v2381 = vperm.slane %v2349, 0
      %v2382 = vperm.slane %v2350, 0
      %v2383 = vperm.slane %v2351, 0
      %v2384 = vperm.slane %v2352, 0
      %v2385 = vperm.slane %v2353, 0
      %v2386 = vperm.slane %v2354, 0
      %v2387 = vperm.slane %v2355, 0
      %2388 = vrot.lane.b32.xlu0 %v2372, 1
      %v2389 = vpop.permute.xlu0 %2388
      %2390 = vrot.lane.b32.xlu0 %v2373, 1
      %v2391 = vpop.permute.xlu0 %2390
      %2392 = vrot.lane.b32.xlu0 %v2374, 1
      %v2393 = vpop.permute.xlu0 %2392
      %2394 = vrot.lane.b32.xlu0 %v2375, 1
      %v2395 = vpop.permute.xlu0 %2394
      %2396 = vrot.lane.b32.xlu0 %v2376, 1
      %v2397 = vpop.permute.xlu0 %2396
      %2398 = vrot.lane.b32.xlu0 %v2377, 1
      %v2399 = vpop.permute.xlu0 %2398
      %2400 = vrot.lane.b32.xlu0 %v2378, 1
      %v2401 = vpop.permute.xlu0 %2400
      %2402 = vrot.lane.b32.xlu0 %v2379, 1
      %v2403 = vpop.permute.xlu0 %2402
      %2404 = vrot.lane.b32.xlu0 %v2380, 1
      %v2405 = vpop.permute.xlu0 %2404
      %2406 = vrot.lane.b32.xlu0 %v2381, 1
      %v2407 = vpop.permute.xlu0 %2406
      %2408 = vrot.lane.b32.xlu0 %v2382, 1
      %v2409 = vpop.permute.xlu0 %2408
      %2410 = vrot.lane.b32.xlu0 %v2383, 1
      %v2411 = vpop.permute.xlu0 %2410
      %2412 = vrot.lane.b32.xlu0 %v2384, 1
      %v2413 = vpop.permute.xlu0 %2412
      %2414 = vrot.lane.b32.xlu0 %v2385, 1
      %v2415 = vpop.permute.xlu0 %2414
      %2416 = vrot.lane.b32.xlu0 %v2386, 1
      %v2417 = vpop.permute.xlu0 %2416
      %2418 = vrot.lane.b32.xlu0 %v2387, 1
      %v2419 = vpop.permute.xlu0 %2418
      %v2436 = vmul.f32 %v171, %v2389
      %v2437 = vmul.f32 %v172, %v2389
      %v2438 = vmul.f32 %v173, %v2389
      %v2439 = vmul.f32 %v174, %v2391
      %v2440 = vmul.f32 %v175, %v2391
      %v2441 = vmul.f32 %v176, %v2391
      %v2442 = vmul.f32 %v177, %v2393
      %v2443 = vmul.f32 %v178, %v2393
      %v2444 = vmul.f32 %v179, %v2393
      %v2445 = vmul.f32 %v180, %v2395
      %v2446 = vmul.f32 %v181, %v2395
      %v2447 = vmul.f32 %v182, %v2395
      %v2448 = vmul.f32 %v183, %v2397
      %v2449 = vmul.f32 %v184, %v2397
      %v2450 = vmul.f32 %v185, %v2397
      %v2451 = vmul.f32 %v186, %v2399
      %v2452 = vmul.f32 %v187, %v2399
      %v2453 = vmul.f32 %v188, %v2399
      %v2454 = vmul.f32 %v189, %v2401
      %v2455 = vmul.f32 %v190, %v2401
      %v2456 = vmul.f32 %v191, %v2401
      %v2457 = vmul.f32 %v192, %v2403
      %v2458 = vmul.f32 %v193, %v2403
      %v2459 = vmul.f32 %v194, %v2403
      %v2460 = vmul.f32 %v195, %v2405
      %v2461 = vmul.f32 %v196, %v2405
      %v2462 = vmul.f32 %v197, %v2405
      %v2463 = vmul.f32 %v198, %v2407
      %v2464 = vmul.f32 %v199, %v2407
      %v2465 = vmul.f32 %v200, %v2407
      %v2466 = vmul.f32 %v201, %v2409
      %v2467 = vmul.f32 %v202, %v2409
      %v2468 = vmul.f32 %v203, %v2409
      %v2469 = vmul.f32 %v204, %v2411
      %v2470 = vmul.f32 %v205, %v2411
      %v2471 = vmul.f32 %v206, %v2411
      %v2472 = vmul.f32 %v207, %v2413
      %v2473 = vmul.f32 %v208, %v2413
      %v2474 = vmul.f32 %v209, %v2413
      %v2475 = vmul.f32 %v210, %v2415
      %v2476 = vmul.f32 %v211, %v2415
      %v2477 = vmul.f32 %v212, %v2415
      %v2478 = vmul.f32 %v213, %v2417
      %v2479 = vmul.f32 %v214, %v2417
      %v2480 = vmul.f32 %v215, %v2417
      %v2481 = vmul.f32 %v216, %v2419
      %v2482 = vmul.f32 %v217, %v2419
      %v2483 = vmul.f32 %v218, %v2419
      %v2532 = vrot.slane %v2436, 2
      %v2533 = vrot.slane %v2437, 2
      %v2534 = vsel %vm2194, %v2532, %v2533
      %v2535 = vrot.slane %v2438, 2
      %v2536 = vsel %vm2194, %v2533, %v2535
      %v2537 = vrot.slane %v2439, 2
      %v2538 = vrot.slane %v2440, 2
      %v2539 = vsel %vm2194, %v2537, %v2538
      %v2540 = vrot.slane %v2441, 2
      %v2541 = vsel %vm2194, %v2538, %v2540
      %v2542 = vrot.slane %v2442, 2
      %v2543 = vrot.slane %v2443, 2
      %v2544 = vsel %vm2194, %v2542, %v2543
      %v2545 = vrot.slane %v2444, 2
      %v2546 = vsel %vm2194, %v2543, %v2545
      %v2547 = vrot.slane %v2445, 2
      %v2548 = vrot.slane %v2446, 2
      %v2549 = vsel %vm2194, %v2547, %v2548
      %v2550 = vrot.slane %v2447, 2
      %v2551 = vsel %vm2194, %v2548, %v2550
      %v2552 = vrot.slane %v2448, 2
      %v2553 = vrot.slane %v2449, 2
      %v2554 = vsel %vm2194, %v2552, %v2553
      %v2555 = vrot.slane %v2450, 2
      %v2556 = vsel %vm2194, %v2553, %v2555
      %v2557 = vrot.slane %v2451, 2
      %v2558 = vrot.slane %v2452, 2
      %v2559 = vsel %vm2194, %v2557, %v2558
      %v2560 = vrot.slane %v2453, 2
      %v2561 = vsel %vm2194, %v2558, %v2560
      %v2562 = vrot.slane %v2454, 2
      %v2563 = vrot.slane %v2455, 2
      %v2564 = vsel %vm2194, %v2562, %v2563
      %v2565 = vrot.slane %v2456, 2
      %v2566 = vsel %vm2194, %v2563, %v2565
      %v2567 = vrot.slane %v2457, 2
      %v2568 = vrot.slane %v2458, 2
      %v2569 = vsel %vm2194, %v2567, %v2568
      %v2570 = vrot.slane %v2459, 2
      %v2571 = vsel %vm2194, %v2568, %v2570
      %v2572 = vrot.slane %v2460, 2
      %v2573 = vrot.slane %v2461, 2
      %v2574 = vsel %vm2194, %v2572, %v2573
      %v2575 = vrot.slane %v2462, 2
      %v2576 = vsel %vm2194, %v2573, %v2575
      %v2577 = vrot.slane %v2463, 2
      %v2578 = vrot.slane %v2464, 2
      %v2579 = vsel %vm2194, %v2577, %v2578
      %v2580 = vrot.slane %v2465, 2
      %v2581 = vsel %vm2194, %v2578, %v2580
      %v2582 = vrot.slane %v2466, 2
      %v2583 = vrot.slane %v2467, 2
      %v2584 = vsel %vm2194, %v2582, %v2583
      %v2585 = vrot.slane %v2468, 2
      %v2586 = vsel %vm2194, %v2583, %v2585
      %v2587 = vrot.slane %v2469, 2
      %v2588 = vrot.slane %v2470, 2
      %v2589 = vsel %vm2194, %v2587, %v2588
      %v2590 = vrot.slane %v2471, 2
      %v2591 = vsel %vm2194, %v2588, %v2590
      %v2592 = vrot.slane %v2472, 2
      %v2593 = vrot.slane %v2473, 2
      %v2594 = vsel %vm2194, %v2592, %v2593
      %v2595 = vrot.slane %v2474, 2
      %v2596 = vsel %vm2194, %v2593, %v2595
      %v2597 = vrot.slane %v2475, 2
      %v2598 = vrot.slane %v2476, 2
      %v2599 = vsel %vm2194, %v2597, %v2598
      %v2600 = vrot.slane %v2477, 2
      %v2601 = vsel %vm2194, %v2598, %v2600
      %v2602 = vrot.slane %v2478, 2
      %v2603 = vrot.slane %v2479, 2
      %v2604 = vsel %vm2194, %v2602, %v2603
      %v2605 = vrot.slane %v2480, 2
      %v2606 = vsel %vm2194, %v2603, %v2605
      %v2607 = vrot.slane %v2481, 2
      %v2608 = vrot.slane %v2482, 2
      %v2609 = vsel %vm2194, %v2607, %v2608
      %v2610 = vrot.slane %v2483, 2
      %v2611 = vsel %vm2194, %v2608, %v2610
      %2612 = vrot.lane.b32.xlu0 %v2534, 127
      %v2613 = vpop.permute.xlu0 %2612
      %2614 = vrot.lane.b32.xlu0 %v2536, 127
      %v2615 = vpop.permute.xlu0 %2614
      %2616 = vrot.lane.b32.xlu0 %v2539, 127
      %v2617 = vpop.permute.xlu0 %2616
      %2618 = vrot.lane.b32.xlu0 %v2541, 127
      %v2619 = vpop.permute.xlu0 %2618
      %2620 = vrot.lane.b32.xlu0 %v2544, 127
      %v2621 = vpop.permute.xlu0 %2620
      %2622 = vrot.lane.b32.xlu0 %v2546, 127
      %v2623 = vpop.permute.xlu0 %2622
      %2624 = vrot.lane.b32.xlu0 %v2549, 127
      %v2625 = vpop.permute.xlu0 %2624
      %2626 = vrot.lane.b32.xlu0 %v2551, 127
      %v2627 = vpop.permute.xlu0 %2626
      %2628 = vrot.lane.b32.xlu0 %v2554, 127
      %v2629 = vpop.permute.xlu0 %2628
      %2630 = vrot.lane.b32.xlu0 %v2556, 127
      %v2631 = vpop.permute.xlu0 %2630
      %2632 = vrot.lane.b32.xlu0 %v2559, 127
      %v2633 = vpop.permute.xlu0 %2632
      %2634 = vrot.lane.b32.xlu0 %v2561, 127
      %v2635 = vpop.permute.xlu0 %2634
      %2636 = vrot.lane.b32.xlu0 %v2564, 127
      %v2637 = vpop.permute.xlu0 %2636
      %2638 = vrot.lane.b32.xlu0 %v2566, 127
      %v2639 = vpop.permute.xlu0 %2638
      %2640 = vrot.lane.b32.xlu0 %v2569, 127
      %v2641 = vpop.permute.xlu0 %2640
      %2642 = vrot.lane.b32.xlu0 %v2571, 127
      %v2643 = vpop.permute.xlu0 %2642
      %2644 = vrot.lane.b32.xlu0 %v2574, 127
      %v2645 = vpop.permute.xlu0 %2644
      %2646 = vrot.lane.b32.xlu0 %v2576, 127
      %v2647 = vpop.permute.xlu0 %2646
      %2648 = vrot.lane.b32.xlu0 %v2579, 127
      %v2649 = vpop.permute.xlu0 %2648
      %2650 = vrot.lane.b32.xlu0 %v2581, 127
      %v2651 = vpop.permute.xlu0 %2650
      %2652 = vrot.lane.b32.xlu0 %v2584, 127
      %v2653 = vpop.permute.xlu0 %2652
      %2654 = vrot.lane.b32.xlu0 %v2586, 127
      %v2655 = vpop.permute.xlu0 %2654
      %2656 = vrot.lane.b32.xlu0 %v2589, 127
      %v2657 = vpop.permute.xlu0 %2656
      %2658 = vrot.lane.b32.xlu0 %v2591, 127
      %v2659 = vpop.permute.xlu0 %2658
      %2660 = vrot.lane.b32.xlu0 %v2594, 127
      %v2661 = vpop.permute.xlu0 %2660
      %2662 = vrot.lane.b32.xlu0 %v2596, 127
      %v2663 = vpop.permute.xlu0 %2662
      %2664 = vrot.lane.b32.xlu0 %v2599, 127
      %v2665 = vpop.permute.xlu0 %2664
      %2666 = vrot.lane.b32.xlu0 %v2601, 127
      %v2667 = vpop.permute.xlu0 %2666
      %2668 = vrot.lane.b32.xlu0 %v2604, 127
      %v2669 = vpop.permute.xlu0 %2668
      %2670 = vrot.lane.b32.xlu0 %v2606, 127
      %v2671 = vpop.permute.xlu0 %2670
      %2672 = vrot.lane.b32.xlu0 %v2609, 127
      %v2673 = vpop.permute.xlu0 %2672
      %2674 = vrot.lane.b32.xlu0 %v2611, 127
      %v2675 = vpop.permute.xlu0 %2674
      %v2708 = vadd.f32 %v2307, %v2613
      %v2709 = vadd.f32 %v2308, %v2615
      %v2710 = vadd.f32 %v2309, %v2617
      %v2711 = vadd.f32 %v2310, %v2619
      %v2712 = vadd.f32 %v2311, %v2621
      %v2713 = vadd.f32 %v2312, %v2623
      %v2714 = vadd.f32 %v2313, %v2625
      %v2715 = vadd.f32 %v2314, %v2627
      %v2716 = vadd.f32 %v2315, %v2629
      %v2717 = vadd.f32 %v2316, %v2631
      %v2718 = vadd.f32 %v2317, %v2633
      %v2719 = vadd.f32 %v2318, %v2635
      %v2720 = vadd.f32 %v2319, %v2637
      %v2721 = vadd.f32 %v2320, %v2639
      %v2722 = vadd.f32 %v2321, %v2641
      %v2723 = vadd.f32 %v2322, %v2643
      %v2724 = vadd.f32 %v2323, %v2645
      %v2725 = vadd.f32 %v2324, %v2647
      %v2726 = vadd.f32 %v2325, %v2649
      %v2727 = vadd.f32 %v2326, %v2651
      %v2728 = vadd.f32 %v2327, %v2653
      %v2729 = vadd.f32 %v2328, %v2655
      %v2730 = vadd.f32 %v2329, %v2657
      %v2731 = vadd.f32 %v2330, %v2659
      %v2732 = vadd.f32 %v2331, %v2661
      %v2733 = vadd.f32 %v2332, %v2663
      %v2734 = vadd.f32 %v2333, %v2665
      %v2735 = vadd.f32 %v2334, %v2667
      %v2736 = vadd.f32 %v2335, %v2669
      %v2737 = vadd.f32 %v2336, %v2671
      %v2738 = vadd.f32 %v2337, %v2673
      %v2739 = vadd.f32 %v2338, %v2675
      %s2740 = scalar_lea.vmem %s1, 128
      %v2741 = vld [vmem:[%s2740] sm:$0x1]
      %v2742 = vld [vmem:[%s2740 + $0x1] sm:$0x1]
      %v2743 = vld [vmem:[%s2740 + $0x2] sm:$0x1]
      %v2744 = vld [vmem:[%s2740 + $0x3] sm:$0x1]
      %v2745 = vld [vmem:[%s2740 + $0x4] sm:$0x1]
      %v2746 = vld [vmem:[%s2740 + $0x5] sm:$0x1]
      %v2747 = vld [vmem:[%s2740 + $0x6] sm:$0x1]
      %v2748 = vld [vmem:[%s2740 + $0x7] sm:$0x1]
      %v2749 = vld [vmem:[%s2740 + $0x8] sm:$0x1]
      %v2750 = vld [vmem:[%s2740 + $0x9] sm:$0x1]
      %v2751 = vld [vmem:[%s2740 + $0xa] sm:$0x1]
      %v2752 = vld [vmem:[%s2740 + $0xb] sm:$0x1]
      %v2753 = vld [vmem:[%s2740 + $0xc] sm:$0x1]
      %v2754 = vld [vmem:[%s2740 + $0xd] sm:$0x1]
      %v2755 = vld [vmem:[%s2740 + $0xe] sm:$0x1]
      %v2756 = vld [vmem:[%s2740 + $0xf] sm:$0x1]
      %v2773 = vperm.slane %v2741, 0
      %v2774 = vperm.slane %v2742, 0
      %v2775 = vperm.slane %v2743, 0
      %v2776 = vperm.slane %v2744, 0
      %v2777 = vperm.slane %v2745, 0
      %v2778 = vperm.slane %v2746, 0
      %v2779 = vperm.slane %v2747, 0
      %v2780 = vperm.slane %v2748, 0
      %v2781 = vperm.slane %v2749, 0
      %v2782 = vperm.slane %v2750, 0
      %v2783 = vperm.slane %v2751, 0
      %v2784 = vperm.slane %v2752, 0
      %v2785 = vperm.slane %v2753, 0
      %v2786 = vperm.slane %v2754, 0
      %v2787 = vperm.slane %v2755, 0
      %v2788 = vperm.slane %v2756, 0
      %2789 = vrot.lane.b32.xlu0 %v2773, 2
      %v2790 = vpop.permute.xlu0 %2789
      %2791 = vrot.lane.b32.xlu0 %v2774, 2
      %v2792 = vpop.permute.xlu0 %2791
      %2793 = vrot.lane.b32.xlu0 %v2775, 2
      %v2794 = vpop.permute.xlu0 %2793
      %2795 = vrot.lane.b32.xlu0 %v2776, 2
      %v2796 = vpop.permute.xlu0 %2795
      %2797 = vrot.lane.b32.xlu0 %v2777, 2
      %v2798 = vpop.permute.xlu0 %2797
      %2799 = vrot.lane.b32.xlu0 %v2778, 2
      %v2800 = vpop.permute.xlu0 %2799
      %2801 = vrot.lane.b32.xlu0 %v2779, 2
      %v2802 = vpop.permute.xlu0 %2801
      %2803 = vrot.lane.b32.xlu0 %v2780, 2
      %v2804 = vpop.permute.xlu0 %2803
      %2805 = vrot.lane.b32.xlu0 %v2781, 2
      %v2806 = vpop.permute.xlu0 %2805
      %2807 = vrot.lane.b32.xlu0 %v2782, 2
      %v2808 = vpop.permute.xlu0 %2807
      %2809 = vrot.lane.b32.xlu0 %v2783, 2
      %v2810 = vpop.permute.xlu0 %2809
      %2811 = vrot.lane.b32.xlu0 %v2784, 2
      %v2812 = vpop.permute.xlu0 %2811
      %2813 = vrot.lane.b32.xlu0 %v2785, 2
      %v2814 = vpop.permute.xlu0 %2813
      %2815 = vrot.lane.b32.xlu0 %v2786, 2
      %v2816 = vpop.permute.xlu0 %2815
      %2817 = vrot.lane.b32.xlu0 %v2787, 2
      %v2818 = vpop.permute.xlu0 %2817
      %2819 = vrot.lane.b32.xlu0 %v2788, 2
      %v2820 = vpop.permute.xlu0 %2819
      %v2837 = vmul.f32 %v171, %v2790
      %v2838 = vmul.f32 %v172, %v2790
      %v2839 = vmul.f32 %v173, %v2790
      %v2840 = vmul.f32 %v174, %v2792
      %v2841 = vmul.f32 %v175, %v2792
      %v2842 = vmul.f32 %v176, %v2792
      %v2843 = vmul.f32 %v177, %v2794
      %v2844 = vmul.f32 %v178, %v2794
      %v2845 = vmul.f32 %v179, %v2794
      %v2846 = vmul.f32 %v180, %v2796
      %v2847 = vmul.f32 %v181, %v2796
      %v2848 = vmul.f32 %v182, %v2796
      %v2849 = vmul.f32 %v183, %v2798
      %v2850 = vmul.f32 %v184, %v2798
      %v2851 = vmul.f32 %v185, %v2798
      %v2852 = vmul.f32 %v186, %v2800
      %v2853 = vmul.f32 %v187, %v2800
      %v2854 = vmul.f32 %v188, %v2800
      %v2855 = vmul.f32 %v189, %v2802
      %v2856 = vmul.f32 %v190, %v2802
      %v2857 = vmul.f32 %v191, %v2802
      %v2858 = vmul.f32 %v192, %v2804
      %v2859 = vmul.f32 %v193, %v2804
      %v2860 = vmul.f32 %v194, %v2804
      %v2861 = vmul.f32 %v195, %v2806
      %v2862 = vmul.f32 %v196, %v2806
      %v2863 = vmul.f32 %v197, %v2806
      %v2864 = vmul.f32 %v198, %v2808
      %v2865 = vmul.f32 %v199, %v2808
      %v2866 = vmul.f32 %v200, %v2808
      %v2867 = vmul.f32 %v201, %v2810
      %v2868 = vmul.f32 %v202, %v2810
      %v2869 = vmul.f32 %v203, %v2810
      %v2870 = vmul.f32 %v204, %v2812
      %v2871 = vmul.f32 %v205, %v2812
      %v2872 = vmul.f32 %v206, %v2812
      %v2873 = vmul.f32 %v207, %v2814
      %v2874 = vmul.f32 %v208, %v2814
      %v2875 = vmul.f32 %v209, %v2814
      %v2876 = vmul.f32 %v210, %v2816
      %v2877 = vmul.f32 %v211, %v2816
      %v2878 = vmul.f32 %v212, %v2816
      %v2879 = vmul.f32 %v213, %v2818
      %v2880 = vmul.f32 %v214, %v2818
      %v2881 = vmul.f32 %v215, %v2818
      %v2882 = vmul.f32 %v216, %v2820
      %v2883 = vmul.f32 %v217, %v2820
      %v2884 = vmul.f32 %v218, %v2820
      %v2933 = vrot.slane %v2837, 2
      %v2934 = vrot.slane %v2838, 2
      %v2935 = vsel %vm2194, %v2933, %v2934
      %v2936 = vrot.slane %v2839, 2
      %v2937 = vsel %vm2194, %v2934, %v2936
      %v2938 = vrot.slane %v2840, 2
      %v2939 = vrot.slane %v2841, 2
      %v2940 = vsel %vm2194, %v2938, %v2939
      %v2941 = vrot.slane %v2842, 2
      %v2942 = vsel %vm2194, %v2939, %v2941
      %v2943 = vrot.slane %v2843, 2
      %v2944 = vrot.slane %v2844, 2
      %v2945 = vsel %vm2194, %v2943, %v2944
      %v2946 = vrot.slane %v2845, 2
      %v2947 = vsel %vm2194, %v2944, %v2946
      %v2948 = vrot.slane %v2846, 2
      %v2949 = vrot.slane %v2847, 2
      %v2950 = vsel %vm2194, %v2948, %v2949
      %v2951 = vrot.slane %v2848, 2
      %v2952 = vsel %vm2194, %v2949, %v2951
      %v2953 = vrot.slane %v2849, 2
      %v2954 = vrot.slane %v2850, 2
      %v2955 = vsel %vm2194, %v2953, %v2954
      %v2956 = vrot.slane %v2851, 2
      %v2957 = vsel %vm2194, %v2954, %v2956
      %v2958 = vrot.slane %v2852, 2
      %v2959 = vrot.slane %v2853, 2
      %v2960 = vsel %vm2194, %v2958, %v2959
      %v2961 = vrot.slane %v2854, 2
      %v2962 = vsel %vm2194, %v2959, %v2961
      %v2963 = vrot.slane %v2855, 2
      %v2964 = vrot.slane %v2856, 2
      %v2965 = vsel %vm2194, %v2963, %v2964
      %v2966 = vrot.slane %v2857, 2
      %v2967 = vsel %vm2194, %v2964, %v2966
      %v2968 = vrot.slane %v2858, 2
      %v2969 = vrot.slane %v2859, 2
      %v2970 = vsel %vm2194, %v2968, %v2969
      %v2971 = vrot.slane %v2860, 2
      %v2972 = vsel %vm2194, %v2969, %v2971
      %v2973 = vrot.slane %v2861, 2
      %v2974 = vrot.slane %v2862, 2
      %v2975 = vsel %vm2194, %v2973, %v2974
      %v2976 = vrot.slane %v2863, 2
      %v2977 = vsel %vm2194, %v2974, %v2976
      %v2978 = vrot.slane %v2864, 2
      %v2979 = vrot.slane %v2865, 2
      %v2980 = vsel %vm2194, %v2978, %v2979
      %v2981 = vrot.slane %v2866, 2
      %v2982 = vsel %vm2194, %v2979, %v2981
      %v2983 = vrot.slane %v2867, 2
      %v2984 = vrot.slane %v2868, 2
      %v2985 = vsel %vm2194, %v2983, %v2984
      %v2986 = vrot.slane %v2869, 2
      %v2987 = vsel %vm2194, %v2984, %v2986
      %v2988 = vrot.slane %v2870, 2
      %v2989 = vrot.slane %v2871, 2
      %v2990 = vsel %vm2194, %v2988, %v2989
      %v2991 = vrot.slane %v2872, 2
      %v2992 = vsel %vm2194, %v2989, %v2991
      %v2993 = vrot.slane %v2873, 2
      %v2994 = vrot.slane %v2874, 2
      %v2995 = vsel %vm2194, %v2993, %v2994
      %v2996 = vrot.slane %v2875, 2
      %v2997 = vsel %vm2194, %v2994, %v2996
      %v2998 = vrot.slane %v2876, 2
      %v2999 = vrot.slane %v2877, 2
      %v3000 = vsel %vm2194, %v2998, %v2999
      %v3001 = vrot.slane %v2878, 2
      %v3002 = vsel %vm2194, %v2999, %v3001
      %v3003 = vrot.slane %v2879, 2
      %v3004 = vrot.slane %v2880, 2
      %v3005 = vsel %vm2194, %v3003, %v3004
      %v3006 = vrot.slane %v2881, 2
      %v3007 = vsel %vm2194, %v3004, %v3006
      %v3008 = vrot.slane %v2882, 2
      %v3009 = vrot.slane %v2883, 2
      %v3010 = vsel %vm2194, %v3008, %v3009
      %v3011 = vrot.slane %v2884, 2
      %v3012 = vsel %vm2194, %v3009, %v3011
      %3013 = vrot.lane.b32.xlu0 %v2935, 126
      %v3014 = vpop.permute.xlu0 %3013
      %3015 = vrot.lane.b32.xlu0 %v2937, 126
      %v3016 = vpop.permute.xlu0 %3015
      %3017 = vrot.lane.b32.xlu0 %v2940, 126
      %v3018 = vpop.permute.xlu0 %3017
      %3019 = vrot.lane.b32.xlu0 %v2942, 126
      %v3020 = vpop.permute.xlu0 %3019
      %3021 = vrot.lane.b32.xlu0 %v2945, 126
      %v3022 = vpop.permute.xlu0 %3021
      %3023 = vrot.lane.b32.xlu0 %v2947, 126
      %v3024 = vpop.permute.xlu0 %3023
      %3025 = vrot.lane.b32.xlu0 %v2950, 126
      %v3026 = vpop.permute.xlu0 %3025
      %3027 = vrot.lane.b32.xlu0 %v2952, 126
      %v3028 = vpop.permute.xlu0 %3027
      %3029 = vrot.lane.b32.xlu0 %v2955, 126
      %v3030 = vpop.permute.xlu0 %3029
      %3031 = vrot.lane.b32.xlu0 %v2957, 126
      %v3032 = vpop.permute.xlu0 %3031
      %3033 = vrot.lane.b32.xlu0 %v2960, 126
      %v3034 = vpop.permute.xlu0 %3033
      %3035 = vrot.lane.b32.xlu0 %v2962, 126
      %v3036 = vpop.permute.xlu0 %3035
      %3037 = vrot.lane.b32.xlu0 %v2965, 126
      %v3038 = vpop.permute.xlu0 %3037
      %3039 = vrot.lane.b32.xlu0 %v2967, 126
      %v3040 = vpop.permute.xlu0 %3039
      %3041 = vrot.lane.b32.xlu0 %v2970, 126
      %v3042 = vpop.permute.xlu0 %3041
      %3043 = vrot.lane.b32.xlu0 %v2972, 126
      %v3044 = vpop.permute.xlu0 %3043
      %3045 = vrot.lane.b32.xlu0 %v2975, 126
      %v3046 = vpop.permute.xlu0 %3045
      %3047 = vrot.lane.b32.xlu0 %v2977, 126
      %v3048 = vpop.permute.xlu0 %3047
      %3049 = vrot.lane.b32.xlu0 %v2980, 126
      %v3050 = vpop.permute.xlu0 %3049
      %3051 = vrot.lane.b32.xlu0 %v2982, 126
      %v3052 = vpop.permute.xlu0 %3051
      %3053 = vrot.lane.b32.xlu0 %v2985, 126
      %v3054 = vpop.permute.xlu0 %3053
      %3055 = vrot.lane.b32.xlu0 %v2987, 126
      %v3056 = vpop.permute.xlu0 %3055
      %3057 = vrot.lane.b32.xlu0 %v2990, 126
      %v3058 = vpop.permute.xlu0 %3057
      %3059 = vrot.lane.b32.xlu0 %v2992, 126
      %v3060 = vpop.permute.xlu0 %3059
      %3061 = vrot.lane.b32.xlu0 %v2995, 126
      %v3062 = vpop.permute.xlu0 %3061
      %3063 = vrot.lane.b32.xlu0 %v2997, 126
      %v3064 = vpop.permute.xlu0 %3063
      %3065 = vrot.lane.b32.xlu0 %v3000, 126
      %v3066 = vpop.permute.xlu0 %3065
      %3067 = vrot.lane.b32.xlu0 %v3002, 126
      %v3068 = vpop.permute.xlu0 %3067
      %3069 = vrot.lane.b32.xlu0 %v3005, 126
      %v3070 = vpop.permute.xlu0 %3069
      %3071 = vrot.lane.b32.xlu0 %v3007, 126
      %v3072 = vpop.permute.xlu0 %3071
      %3073 = vrot.lane.b32.xlu0 %v3010, 126
      %v3074 = vpop.permute.xlu0 %3073
      %3075 = vrot.lane.b32.xlu0 %v3012, 126
      %v3076 = vpop.permute.xlu0 %3075
      %v3109 = vadd.f32 %v2708, %v3014
      %v3110 = vadd.f32 %v2709, %v3016
      %v3111 = vadd.f32 %v2710, %v3018
      %v3112 = vadd.f32 %v2711, %v3020
      %v3113 = vadd.f32 %v2712, %v3022
      %v3114 = vadd.f32 %v2713, %v3024
      %v3115 = vadd.f32 %v2714, %v3026
      %v3116 = vadd.f32 %v2715, %v3028
      %v3117 = vadd.f32 %v2716, %v3030
      %v3118 = vadd.f32 %v2717, %v3032
      %v3119 = vadd.f32 %v2718, %v3034
      %v3120 = vadd.f32 %v2719, %v3036
      %v3121 = vadd.f32 %v2720, %v3038
      %v3122 = vadd.f32 %v2721, %v3040
      %v3123 = vadd.f32 %v2722, %v3042
      %v3124 = vadd.f32 %v2723, %v3044
      %v3125 = vadd.f32 %v2724, %v3046
      %v3126 = vadd.f32 %v2725, %v3048
      %v3127 = vadd.f32 %v2726, %v3050
      %v3128 = vadd.f32 %v2727, %v3052
      %v3129 = vadd.f32 %v2728, %v3054
      %v3130 = vadd.f32 %v2729, %v3056
      %v3131 = vadd.f32 %v2730, %v3058
      %v3132 = vadd.f32 %v2731, %v3060
      %v3133 = vadd.f32 %v2732, %v3062
      %v3134 = vadd.f32 %v2733, %v3064
      %v3135 = vadd.f32 %v2734, %v3066
      %v3136 = vadd.f32 %v2735, %v3068
      %v3137 = vadd.f32 %v2736, %v3070
      %v3138 = vadd.f32 %v2737, %v3072
      %v3139 = vadd.f32 %v2738, %v3074
      %v3140 = vadd.f32 %v2739, %v3076
      %v3141 = vld [vmem:[%s2] sm:$0x1]
      %v3142 = vld [vmem:[%s2 + $0x1] sm:$0x1]
      %v3143 = vld [vmem:[%s2 + $0x2] sm:$0x1]
      %v3144 = vld [vmem:[%s2 + $0x3] sm:$0x1]
      %v3145 = vld [vmem:[%s2 + $0x4] sm:$0x1]
      %v3146 = vld [vmem:[%s2 + $0x5] sm:$0x1]
      %v3147 = vld [vmem:[%s2 + $0x6] sm:$0x1]
      %v3148 = vld [vmem:[%s2 + $0x7] sm:$0x1]
      %v3149 = vld [vmem:[%s2 + $0x8] sm:$0x1]
      %v3150 = vld [vmem:[%s2 + $0x9] sm:$0x1]
      %v3151 = vld [vmem:[%s2 + $0xa] sm:$0x1]
      %v3152 = vld [vmem:[%s2 + $0xb] sm:$0x1]
      %v3153 = vld [vmem:[%s2 + $0xc] sm:$0x1]
      %v3154 = vld [vmem:[%s2 + $0xd] sm:$0x1]
      %v3155 = vld [vmem:[%s2 + $0xe] sm:$0x1]
      %v3156 = vld [vmem:[%s2 + $0xf] sm:$0x1]
      %v3173 = vperm.slane %v3141, 0
      %v3174 = vperm.slane %v3142, 0
      %v3175 = vperm.slane %v3143, 0
      %v3176 = vperm.slane %v3144, 0
      %v3177 = vperm.slane %v3145, 0
      %v3178 = vperm.slane %v3146, 0
      %v3179 = vperm.slane %v3147, 0
      %v3180 = vperm.slane %v3148, 0
      %v3181 = vperm.slane %v3149, 0
      %v3182 = vperm.slane %v3150, 0
      %v3183 = vperm.slane %v3151, 0
      %v3184 = vperm.slane %v3152, 0
      %v3185 = vperm.slane %v3153, 0
      %v3186 = vperm.slane %v3154, 0
      %v3187 = vperm.slane %v3155, 0
      %v3188 = vperm.slane %v3156, 0
      %v3205 = vadd.f32 %v3109, %v3173
      %v3206 = vadd.f32 %v3110, %v3173
      %v3207 = vadd.f32 %v3111, %v3174
      %v3208 = vadd.f32 %v3112, %v3174
      %v3209 = vadd.f32 %v3113, %v3175
      %v3210 = vadd.f32 %v3114, %v3175
      %v3211 = vadd.f32 %v3115, %v3176
      %v3212 = vadd.f32 %v3116, %v3176
      %v3213 = vadd.f32 %v3117, %v3177
      %v3214 = vadd.f32 %v3118, %v3177
      %v3215 = vadd.f32 %v3119, %v3178
      %v3216 = vadd.f32 %v3120, %v3178
      %v3217 = vadd.f32 %v3121, %v3179
      %v3218 = vadd.f32 %v3122, %v3179
      %v3219 = vadd.f32 %v3123, %v3180
      %v3220 = vadd.f32 %v3124, %v3180
      %v3221 = vadd.f32 %v3125, %v3181
      %v3222 = vadd.f32 %v3126, %v3181
      %v3223 = vadd.f32 %v3127, %v3182
      %v3224 = vadd.f32 %v3128, %v3182
      %v3225 = vadd.f32 %v3129, %v3183
      %v3226 = vadd.f32 %v3130, %v3183
      %v3227 = vadd.f32 %v3131, %v3184
      %v3228 = vadd.f32 %v3132, %v3184
      %v3229 = vadd.f32 %v3133, %v3185
      %v3230 = vadd.f32 %v3134, %v3185
      %v3231 = vadd.f32 %v3135, %v3186
      %v3232 = vadd.f32 %v3136, %v3186
      %v3233 = vadd.f32 %v3137, %v3187
      %v3234 = vadd.f32 %v3138, %v3187
      %v3235 = vadd.f32 %v3139, %v3188
      %v3236 = vadd.f32 %v3140, %v3188
      %vm3237 = vcmask 130048
      %3238 = vst.msk [vmem:[%s170] sm:$0xff] %vm3237, %v3205
      %3239 = vst.msk [vmem:[%s170 + $0x8] sm:$0xff] %vm3237, %v3206
      %3240 = vst.msk [vmem:[%s170 + $0x10] sm:$0xff] %vm3237, %v3207
      %3241 = vst.msk [vmem:[%s170 + $0x18] sm:$0xff] %vm3237, %v3208
      %3242 = vst.msk [vmem:[%s170 + $0x20] sm:$0xff] %vm3237, %v3209
      %3243 = vst.msk [vmem:[%s170 + $0x28] sm:$0xff] %vm3237, %v3210
      %3244 = vst.msk [vmem:[%s170 + $0x30] sm:$0xff] %vm3237, %v3211
      %3245 = vst.msk [vmem:[%s170 + $0x38] sm:$0xff] %vm3237, %v3212
      %3246 = vst.msk [vmem:[%s170 + $0x40] sm:$0xff] %vm3237, %v3213
      %3247 = vst.msk [vmem:[%s170 + $0x48] sm:$0xff] %vm3237, %v3214
      %3248 = vst.msk [vmem:[%s170 + $0x50] sm:$0xff] %vm3237, %v3215
      %3249 = vst.msk [vmem:[%s170 + $0x58] sm:$0xff] %vm3237, %v3216
      %3250 = vst.msk [vmem:[%s170 + $0x60] sm:$0xff] %vm3237, %v3217
      %3251 = vst.msk [vmem:[%s170 + $0x68] sm:$0xff] %vm3237, %v3218
      %3252 = vst.msk [vmem:[%s170 + $0x70] sm:$0xff] %vm3237, %v3219
      %3253 = vst.msk [vmem:[%s170 + $0x78] sm:$0xff] %vm3237, %v3220
      %3254 = vst.msk [vmem:[%s170 + $0x80] sm:$0xff] %vm3237, %v3221
      %3255 = vst.msk [vmem:[%s170 + $0x88] sm:$0xff] %vm3237, %v3222
      %3256 = vst.msk [vmem:[%s170 + $0x90] sm:$0xff] %vm3237, %v3223
      %3257 = vst.msk [vmem:[%s170 + $0x98] sm:$0xff] %vm3237, %v3224
      %3258 = vst.msk [vmem:[%s170 + $0xa0] sm:$0xff] %vm3237, %v3225
      %3259 = vst.msk [vmem:[%s170 + $0xa8] sm:$0xff] %vm3237, %v3226
      %3260 = vst.msk [vmem:[%s170 + $0xb0] sm:$0xff] %vm3237, %v3227
      %3261 = vst.msk [vmem:[%s170 + $0xb8] sm:$0xff] %vm3237, %v3228
      %3262 = vst.msk [vmem:[%s170 + $0xc0] sm:$0xff] %vm3237, %v3229
      %3263 = vst.msk [vmem:[%s170 + $0xc8] sm:$0xff] %vm3237, %v3230
      %3264 = vst.msk [vmem:[%s170 + $0xd0] sm:$0xff] %vm3237, %v3231
      %3265 = vst.msk [vmem:[%s170 + $0xd8] sm:$0xff] %vm3237, %v3232
      %3266 = vst.msk [vmem:[%s170 + $0xe0] sm:$0xff] %vm3237, %v3233
      %3267 = vst.msk [vmem:[%s170 + $0xe8] sm:$0xff] %vm3237, %v3234
      %3268 = vst.msk [vmem:[%s170 + $0xf0] sm:$0xff] %vm3237, %v3235
      %3269 = vst.msk [vmem:[%s170 + $0xf8] sm:$0xff] %vm3237, %v3236
      %p3270 = scmp.lt.s32.totalorder %s14, 1
      %s3271 = scalar_select %p3270, %s14, 1
      %s3272 = smul.addr %s3271, 32
      %s3273 = smul.addr %s3272, 8
      %s3274 = scalar_lea.vmem %s3, %s3273
      // Predicated region
      $region33: #{shufflenet_cs_block.4} parent=31 // pred_check
        %p3275 = pneg %p100
      $region34: #{shufflenet_cs_block.4} parent=31 // pred_check_branch
        %3277 = sbr.rel (%p3275) target = $region36
      $region35: #{shufflenet_cs_block.4} parent=31 // pred_region
        _
      $region36: #{shufflenet_cs_block.4} parent=31 // pred_fallthru
        _
    $region32: #{shufflenet_cs_block.4} parent=5 // pred_fallthru
      _
    %p3278 = scmp.le.s32.totalorder 2, %s9
    // Predicated region
    $region37: #{shufflenet_cs_block.4} parent=5 // pred_check
      %p3279 = pneg %p3278
    $region38: #{shufflenet_cs_block.4} parent=5 // pred_check_branch
      %3281 = sbr.rel (%p3279) target = $region40
    $region39: #{shufflenet_cs_block.4} parent=5 // pred_region
      %s3282 = ssub.s32 %s9, 2
      // Predicated region
      $region41: #{shufflenet_cs_block.4} parent=39 // pred_check
        %p3283 = pneg %p106
      $region42: #{shufflenet_cs_block.4} parent=39 // pred_check_branch
        %3285 = sbr.rel (%p3283) target = $region44
      $region43: #{shufflenet_cs_block.4} parent=39 // pred_region
        %p3286 = scmp.lt.s32.totalorder %s15, 1
        %s3287 = scalar_select %p3286, %s15, 1
        %s3288 = smul.addr %s3287, 32
        %s3289 = smul.addr %s3288, 8
        %s3290 = scalar_lea.vmem %s3, %s3289
      $region44: #{shufflenet_cs_block.4} parent=39 // pred_fallthru
        _
    $region40: #{shufflenet_cs_block.4} parent=5 // pred_fallthru
      _
  $region6: #{shufflenet_cs_block.4} parent=0 // loop_footer
    %s13 = sadd.s32 1, %s9
  $region7: #{shufflenet_cs_block.4} parent=0 // loop_footer_branch
    %8 = sbr.rel target = $region3
  $region8: #{shufflenet_cs_block.4} parent=0 // loop_exit
    _

</llo_original>
